<compile_context>
chip_gen: v6e
topology: v6e:2x2x1
jax: 0.10.0
libtpu: 0.0.40
codegen_flags: <defaults>
</compile_context>

<pallas_src>
import functools

import jax
import jax.numpy as jnp
from jax import lax
from jax.experimental import pallas as pl
from jax.experimental.pallas import tpu as pltpu

# batch_hist constants: bins=73 over [-10, 10)
BINS = 73
HIST_MIN = -10.0
HIST_MAX = 10.0
LO_BIN = 36          # ReLU => h >= 0 => floor((h+10)*73/20) >= 36: bins < 36 never hit
CS = 128             # channel-slab width for the fused conv3+histogram loop

CIN_PAD = 8          # pad the 3 input channels only to 8 (last dim == full array dim)
CLS_PAD = 128        # class dim padded to 128 lanes (lane-dense store; slice in wrapper)
VMEM_LIMIT = 48 * 1024 * 1024


def _w_spec(p):
    # 2-D weights/biases, resident across the whole grid (constant index map).
    return pl.BlockSpec(p.shape, lambda *_: (0, 0))


def _bf16(w):
    return w.astype(jnp.bfloat16)


# --------------------------------------------------------------------------------------
# Encoder kernels
# --------------------------------------------------------------------------------------
def _encoder_fused_kernel(x_ref, w1, b1, w2, b2, w3, b3, g_ref, *, n_points):
    """conv1..conv3 (BN folded) + running max over point tiles. Default (no fstn) path."""
    t = pl.program_id(1)
    tn = x_ref.shape[1]
    x = x_ref[0].astype(jnp.bfloat16)                                    # (tn, 8)
    h1 = jnp.maximum(
        jnp.dot(x, w1[...], preferred_element_type=jnp.float32) + b1[...], 0.0)
    h2 = jnp.maximum(
        jnp.dot(h1.astype(jnp.bfloat16), w2[...],
                preferred_element_type=jnp.float32) + b2[...], 0.0)
    # NOTE: reference applies bn3(conv3(x)) with NO ReLU before the max-pool.
    h3 = jnp.dot(h2.astype(jnp.bfloat16), w3[...],
                 preferred_element_type=jnp.float32) + b3[...]           # (tn, 1024) f32
    if n_points % tn != 0:                                               # static: tail mask
        row = lax.broadcasted_iota(jnp.int32, (tn, 1), 0)
        h3 = jnp.where(row < (n_points - t * tn), h3, -jnp.inf)
    tmax = jnp.max(h3, axis=0, keepdims=True)                            # (1, 1024)

    @pl.when(t == 0)
    def _():
        g_ref[0] = tmax

    @pl.when(t != 0)
    def _():
        g_ref[0] = jnp.maximum(g_ref[0], tmax)


def _stage_a_kernel(x_ref, w1, b1, h1_ref):
    """conv1+bn1+relu only (needed before the feature transformer). h1 stored bf16."""
    h1 = jnp.maximum(
        jnp.dot(x_ref[0].astype(jnp.bfloat16), w1[...],
                preferred_element_type=jnp.float32) + b1[...], 0.0)
    h1_ref[0] = h1.astype(jnp.bfloat16)


def _stage_b_kernel(h1_ref, trans_ref, w2, b2, w3, b3, g_ref, *, n_points):
    """feature transform (bmm) + conv2/conv3 + running max over point tiles."""
    t = pl.program_id(1)
    tn = h1_ref.shape[1]
    pf = jnp.dot(h1_ref[0], trans_ref[0].astype(jnp.bfloat16),
                 preferred_element_type=jnp.float32)                     # (tn, 64) f32
    h2 = jnp.maximum(
        jnp.dot(pf.astype(jnp.bfloat16), w2[...],
                preferred_element_type=jnp.float32) + b2[...], 0.0)
    h3 = jnp.dot(h2.astype(jnp.bfloat16), w3[...],
                 preferred_element_type=jnp.float32) + b3[...]
    if n_points % tn != 0:
        row = lax.broadcasted_iota(jnp.int32, (tn, 1), 0)
        h3 = jnp.where(row < (n_points - t * tn), h3, -jnp.inf)
    tmax = jnp.max(h3, axis=0, keepdims=True)

    @pl.when(t == 0)
    def _():
        g_ref[0] = tmax

    @pl.when(t != 0)
    def _():
        g_ref[0] = jnp.maximum(g_ref[0], tmax)


# --------------------------------------------------------------------------------------
# STNkd (k=64) point-MLP + histogram pooling kernel (feature_transform=True path only)
# --------------------------------------------------------------------------------------
def _stn_hist_kernel(h1_ref, w1, b1, w2, b2, w3, b3, feat_ref):
    h = h1_ref[0]                                                        # (N, 64) bf16
    s1 = jnp.maximum(
        jnp.dot(h, w1[...], preferred_element_type=jnp.float32) + b1[...], 0.0)
    s2 = jnp.maximum(
        jnp.dot(s1.astype(jnp.bfloat16), w2[...],
                preferred_element_type=jnp.float32) + b2[...], 0.0)      # (N, 128) f32
    s2b = s2.astype(jnp.bfloat16)

    scale = BINS / (HIST_MAX - HIST_MIN)
    n_slabs = w3.shape[1] // CS

    # conv3 fused into CS-wide channel slabs: never materialize the (N, 1024) activation.
    for s in range(n_slabs):
        sl = slice(s * CS, (s + 1) * CS)
        h3 = jnp.maximum(
            jnp.dot(s2b, w3[:, sl], preferred_element_type=jnp.float32) + b3[:, sl], 0.0)
        binf = jnp.floor((h3 - HIST_MIN) * scale)   # >= LO_BIN since h3 >= 0; >= BINS dropped

        def body(j, carry, binf=binf):
            best_cnt, best_idx = carry
            jf = j.astype(jnp.float32)
            ind = (binf == jf).astype(jnp.float32)                       # (N, CS)
            # per-bin point count as a VPU column reduction (keeps the MXU free)
            cnt = jnp.sum(ind, axis=0, keepdims=True)                    # (1, CS)
            upd = cnt > best_cnt                                         # first max wins
            return jnp.where(upd, cnt, best_cnt), jnp.where(upd, jf, best_idx)

        init = (jnp.full((1, CS), -1.0, jnp.float32),
                jnp.full((1, CS), float(LO_BIN), jnp.float32))
        _, best = jax.lax.fori_loop(LO_BIN, BINS, body, init, unroll=4)
        feat_ref[0, :, sl] = best


# --------------------------------------------------------------------------------------
# Segmentation head kernels (conv1, conv2, conv3, conv4, log_softmax)
# --------------------------------------------------------------------------------------
def _seg_tail(pf, gb, wp, w2, b2, w3, b3, w4, b4):
    """Shared seg-head tail: returns the (tn, CLS_PAD) lane-dense log-softmax block."""
    # gb = global_feat @ Wg + b1 (per batch, precomputed); add the pointfeat half here.
    s1 = jnp.maximum(
        jnp.dot(pf.astype(jnp.bfloat16), wp[...],
                preferred_element_type=jnp.float32) + gb, 0.0)
    s2 = jnp.maximum(
        jnp.dot(s1.astype(jnp.bfloat16), w2[...],
                preferred_element_type=jnp.float32) + b2[...], 0.0)
    s3 = jnp.maximum(
        jnp.dot(s2.astype(jnp.bfloat16), w3[...],
                preferred_element_type=jnp.float32) + b3[...], 0.0)
    # class dim padded to CLS_PAD lanes; padded biases are -1e30 (f32) so they never win.
    logits = jnp.dot(s3.astype(jnp.bfloat16), w4[...],
                     preferred_element_type=jnp.float32) + b4[...]       # (tn, 128) f32
    m = jnp.max(logits, axis=-1, keepdims=True)
    z = logits - m
    lse = jnp.log(jnp.sum(jnp.exp(z), axis=-1, keepdims=True))
    return z - lse


def _seg_head_kernel(x_ref, w1, b1, wp, gb_ref, w2, b2, w3, b3, w4, b4, out_ref):
    """Default path: recompute pointfeat = relu(conv1(x)) from the 8-channel x tile."""
    pf = jnp.maximum(
        jnp.dot(x_ref[0].astype(jnp.bfloat16), w1[...],
                preferred_element_type=jnp.float32) + b1[...], 0.0)      # (tn, 64)
    out_ref[0] = _seg_tail(pf, gb_ref[0], wp, w2, b2, w3, b3, w4, b4)


def _seg_head_ft_kernel(h1_ref, trans_ref, gb_ref, wp, w2, b2, w3, b3, w4, b4, out_ref):
    """feature_transform path: recompute pointfeat = h1 @ trans from the bf16 h1 tile."""
    pf = jnp.dot(h1_ref[0], trans_ref[0].astype(jnp.bfloat16),
                 preferred_element_type=jnp.float32)                     # (tn, 64)
    out_ref[0] = _seg_tail(pf, gb_ref[0], wp, w2, b2, w3, b3, w4, b4)


# --------------------------------------------------------------------------------------
# pallas_call wrappers
# --------------------------------------------------------------------------------------
def _run_encoder_fused(x_nl, params, tn):
    B, N, C = x_nl.shape
    ws = [_bf16(params['enc_w1']), params['enc_b1'],
          _bf16(params['enc_w2']), params['enc_b2'],
          _bf16(params['enc_w3']), params['enc_b3']]
    return pl.pallas_call(
        functools.partial(_encoder_fused_kernel, n_points=N),
        out_shape=jax.ShapeDtypeStruct((B, 1, 1024), jnp.float32),
        grid_spec=pltpu.PrefetchScalarGridSpec(
            num_scalar_prefetch=0, grid=(B, pl.cdiv(N, tn)),
            in_specs=[pl.BlockSpec((1, tn, C), lambda b, t: (b, t, 0))] +
                     [_w_spec(p) for p in ws],
            out_specs=pl.BlockSpec((1, 1, 1024), lambda b, t: (b, 0, 0))),
        compiler_params=pltpu.CompilerParams(
            dimension_semantics=("parallel", "arbitrary"),
            vmem_limit_bytes=VMEM_LIMIT),
    )(x_nl, *ws)


def _run_stage_a(x_nl, params, tn):
    B, N, C = x_nl.shape
    w1, b1 = _bf16(params['enc_w1']), params['enc_b1']
    return pl.pallas_call(
        _stage_a_kernel,
        out_shape=jax.ShapeDtypeStruct((B, N, 64), jnp.bfloat16),
        grid_spec=pltpu.PrefetchScalarGridSpec(
            num_scalar_prefetch=0, grid=(B, pl.cdiv(N, tn)),
            in_specs=[pl.BlockSpec((1, tn, C), lambda b, t: (b, t, 0)),
                      _w_spec(w1), _w_spec(b1)],
            out_specs=pl.BlockSpec((1, tn, 64), lambda b, t: (b, t, 0))),
        compiler_params=pltpu.CompilerParams(
            dimension_semantics=("parallel", "parallel"),
            vmem_limit_bytes=VMEM_LIMIT),
    )(x_nl, w1, b1)


def _run_stage_b(h1, trans, params, tn):
    B, N, _ = h1.shape
    ws = [_bf16(params['enc_w2']), params['enc_b2'],
          _bf16(params['enc_w3']), params['enc_b3']]
    return pl.pallas_call(
        functools.partial(_stage_b_kernel, n_points=N),
        out_shape=jax.ShapeDtypeStruct((B, 1, 1024), jnp.float32),
        grid_spec=pltpu.PrefetchScalarGridSpec(
            num_scalar_prefetch=0, grid=(B, pl.cdiv(N, tn)),
            in_specs=[pl.BlockSpec((1, tn, 64), lambda b, t: (b, t, 0)),
                      pl.BlockSpec((1, 64, 64), lambda b, t: (b, 0, 0))] +
                     [_w_spec(p) for p in ws],
            out_specs=pl.BlockSpec((1, 1, 1024), lambda b, t: (b, 0, 0))),
        compiler_params=pltpu.CompilerParams(
            dimension_semantics=("parallel", "arbitrary"),
            vmem_limit_bytes=VMEM_LIMIT),
    )(h1, trans, *ws)


def _run_stn_point_hist(h1, params):
    B, N, _ = h1.shape
    ws = [_bf16(params['stn_w1']), params['stn_b1'],
          _bf16(params['stn_w2']), params['stn_b2'],
          _bf16(params['stn_w3']), params['stn_b3']]
    return pl.pallas_call(
        _stn_hist_kernel,
        out_shape=jax.ShapeDtypeStruct((B, 1, 1024), jnp.float32),
        grid_spec=pltpu.PrefetchScalarGridSpec(
            num_scalar_prefetch=0, grid=(B,),
            in_specs=[pl.BlockSpec((1, N, 64), lambda b: (b, 0, 0))] +
                     [_w_spec(p) for p in ws],
            out_specs=pl.BlockSpec((1, 1, 1024), lambda b: (b, 0, 0))),
        compiler_params=pltpu.CompilerParams(
            dimension_semantics=("parallel",),
            vmem_limit_bytes=VMEM_LIMIT),
    )(h1, *ws)


def _stn_fc_head(feat, params):
    # Hoisted out of the per-batch kernel: batched over B, amortizes weight streaming.
    y = jnp.maximum(jnp.dot(feat, params['stn_f1']) + params['stn_c1'], 0.0)
    y = jnp.maximum(jnp.dot(y, params['stn_f2']) + params['stn_c2'], 0.0)
    y = jnp.dot(y, params['stn_f3']) + params['stn_c3']   # identity already folded into bias
    return y.reshape(-1, 64, 64)


def _seg_head_common(params):
    return [_bf16(params['seg_wp']),
            _bf16(params['seg_w2']), params['seg_b2'],
            _bf16(params['seg_w3']), params['seg_b3'],
            _bf16(params['seg_w4']), params['seg_b4']]


def _run_seg_head(x_nl, gbias, params, tn):
    B, N, C = x_nl.shape
    w1, b1 = _bf16(params['enc_w1']), params['enc_b1']
    tail = _seg_head_common(params)
    wp, rest = tail[0], tail[1:]
    return pl.pallas_call(
        _seg_head_kernel,
        out_shape=jax.ShapeDtypeStruct((B, N, CLS_PAD), jnp.float32),
        grid_spec=pltpu.PrefetchScalarGridSpec(
            num_scalar_prefetch=0, grid=(B, pl.cdiv(N, tn)),
            in_specs=[pl.BlockSpec((1, tn, C), lambda b, t: (b, t, 0)),
                      _w_spec(w1), _w_spec(b1), _w_spec(wp),
                      pl.BlockSpec((1, 1, 512), lambda b, t: (b, 0, 0))] +
                     [_w_spec(p) for p in rest],
            out_specs=pl.BlockSpec((1, tn, CLS_PAD), lambda b, t: (b, t, 0))),
        compiler_params=pltpu.CompilerParams(
            dimension_semantics=("parallel", "parallel"),
            vmem_limit_bytes=VMEM_LIMIT),
    )(x_nl, w1, b1, wp, gbias, *rest)


def _run_seg_head_ft(h1, trans, gbias, params, tn):
    B, N, _ = h1.shape
    tail = _seg_head_common(params)
    return pl.pallas_call(
        _seg_head_ft_kernel,
        out_shape=jax.ShapeDtypeStruct((B, N, CLS_PAD), jnp.float32),
        grid_spec=pltpu.PrefetchScalarGridSpec(
            num_scalar_prefetch=0, grid=(B, pl.cdiv(N, tn)),
            in_specs=[pl.BlockSpec((1, tn, 64), lambda b, t: (b, t, 0)),
                      pl.BlockSpec((1, 64, 64), lambda b, t: (b, 0, 0)),
                      pl.BlockSpec((1, 1, 512), lambda b, t: (b, 0, 0))] +
                     [_w_spec(p) for p in tail],
            out_specs=pl.BlockSpec((1, tn, CLS_PAD), lambda b, t: (b, t, 0))),
        compiler_params=pltpu.CompilerParams(
            dimension_semantics=("parallel", "parallel"),
            vmem_limit_bytes=VMEM_LIMIT),
    )(h1, trans, gbias, *tail)


# --------------------------------------------------------------------------------------
# Full forward
# --------------------------------------------------------------------------------------
def pointnet_seg_forward(x, params, *, num_class, feature_transform=False, tn=512):
    """x: (B, 3, N) float32 in the PyTorch NCW layout. Returns (log_probs (B,N,k), trans_feat)."""
    B, Cin, N = x.shape
    tn = min(tn, N)
    x_nl = jnp.transpose(x, (0, 2, 1))                                   # (B, N, 3)
    x_nl = jnp.pad(x_nl, ((0, 0), (0, 0), (0, CIN_PAD - Cin)))           # (B, N, 8)

    if feature_transform:
        h1 = _run_stage_a(x_nl, params, tn)                              # (B, N, 64) bf16
        feat = _run_stn_point_hist(h1, params)                           # (B, 1, 1024)
        trans_feat = _stn_fc_head(feat.reshape(B, 1024), params)         # (B, 64, 64)
        gfeat = _run_stage_b(h1, trans_feat, params, tn)                 # (B, 1, 1024)
    else:
        trans_feat = None
        gfeat = _run_encoder_fused(x_nl, params, tn)                     # (B, 1, 1024)

    # Global-feature half of seg conv1 folded into a per-batch bias (one batched matmul).
    gbias = jnp.dot(gfeat.reshape(B, 1024), params['seg_wg'],
                    preferred_element_type=jnp.float32) + params['seg_b1']   # (B, 512)
    gbias = gbias.reshape(B, 1, 512)

    if feature_transform:
        logp_pad = _run_seg_head_ft(h1, trans_feat, gbias, params, tn)
    else:
        logp_pad = _run_seg_head(x_nl, gbias, params, tn)
    # lane-dense kernel output (B, N, 128); the class slice happens here, not in-kernel.
    return logp_pad[..., :num_class], trans_feat


# --------------------------------------------------------------------------------------
# Deterministic synthetic parameters (BN folded, eval mode)
# --------------------------------------------------------------------------------------
def _fold_bn(w, b, gamma, beta, mean, var, eps=1e-5):
    s = gamma / jnp.sqrt(var + eps)
    return w * s[None, :], (s * (b - mean) + beta).reshape(1, -1)


def _bn_layer(key, cin, cout):
    kw, kb, kg, kbt, km, kv = jax.random.split(key, 6)
    w = jax.random.normal(kw, (cin, cout), jnp.float32) / jnp.sqrt(cin)
    b = 0.05 * jax.random.normal(kb, (cout,), jnp.float32)
    gamma = 1.0 + 0.1 * jax.random.normal(kg, (cout,), jnp.float32)
    beta = 0.1 * jax.random.normal(kbt, (cout,), jnp.float32)
    mean = 0.1 * jax.random.normal(km, (cout,), jnp.float32)
    var = 1.0 + 0.1 * jax.random.uniform(kv, (cout,), jnp.float32)
    return _fold_bn(w, b, gamma, beta, mean, var)


def _plain_layer(key, cin, cout):
    kw, kb = jax.random.split(key, 2)
    w = jax.random.normal(kw, (cin, cout), jnp.float32) / jnp.sqrt(cin)
    b = 0.05 * jax.random.normal(kb, (cout,), jnp.float32)
    return w, b.reshape(1, -1)


def init_params(key, num_class, feature_transform=False):
    assert num_class <= CLS_PAD
    keys = jax.random.split(key, 13)
    p = {}
    # ---- PointNetEncoder (semseg=False): conv1..conv3 + bn1..bn3 ----
    w1, b1 = _bn_layer(keys[0], 3, 64)
    p['enc_w1'] = jnp.pad(w1, ((0, CIN_PAD - 3), (0, 0)))   # zero rows: exact
    p['enc_b1'] = b1
    p['enc_w2'], p['enc_b2'] = _bn_layer(keys[1], 64, 128)
    p['enc_w3'], p['enc_b3'] = _bn_layer(keys[2], 128, 1024)
    # ---- PointNetSeg head: conv1(1088->512)+bn1, conv2+bn2, conv3+bn3, conv4 ----
    w1s, b1s = _bn_layer(keys[3], 1088, 512)
    p['seg_wg'] = w1s[:1024]          # global-feature half (concat order: [global, pointfeat])
    p['seg_wp'] = w1s[1024:]          # pointfeat half
    p['seg_b1'] = b1s
    p['seg_w2'], p['seg_b2'] = _bn_layer(keys[4], 512, 256)
    p['seg_w3'], p['seg_b3'] = _bn_layer(keys[5], 256, 128)
    w4, b4 = _plain_layer(keys[6], 128, num_class)
    p['seg_w4'] = jnp.pad(w4, ((0, 0), (0, CLS_PAD - num_class)))
    p['seg_b4'] = jnp.pad(b4, ((0, 0), (0, CLS_PAD - num_class)), constant_values=-1e30)
    if feature_transform:
        # ---- STNkd(k=64): conv1..conv3 (+bn), fc1/fc2 (+bn), fc3 (+identity folded) ----
        p['stn_w1'], p['stn_b1'] = _bn_layer(keys[7], 64, 64)
        p['stn_w2'], p['stn_b2'] = _bn_layer(keys[8], 64, 128)
        p['stn_w3'], p['stn_b3'] = _bn_layer(keys[9], 128, 1024)
        p['stn_f1'], p['stn_c1'] = _bn_layer(keys[10], 1024, 512)
        p['stn_f2'], p['stn_c2'] = _bn_layer(keys[11], 512, 256)
        f3, c3 = _plain_layer(keys[12], 256, 64 * 64)
        p['stn_f3'] = f3
        p['stn_c3'] = c3 + jnp.eye(64, dtype=jnp.float32).reshape(1, -1)
    return p


if __name__ == "__main__":
    B, N, NUM_CLASS = 2, 256, 13
    root = jax.random.PRNGKey(0)
    kx, kp, kp2 = jax.random.split(root, 3)
    x = jax.random.normal(kx, (B, 3, N), jnp.float32)       # PyTorch layout (B, 3, N)

    # Default PointNetSeg config (feature_transform=False, semseg=False).
    params = init_params(kp, NUM_CLASS, feature_transform=False)
    fwd = jax.jit(functools.partial(pointnet_seg_forward, num_class=NUM_CLASS,
                                    feature_transform=False))
    logp, trans_feat = fwd(x, params)
    logp = jax.block_until_ready(logp)
    assert logp.shape == (B, N, NUM_CLASS), logp.shape
    assert trans_feat is None
    assert bool(jnp.all(jnp.isfinite(logp)))
    assert bool(jnp.allclose(jnp.sum(jnp.exp(logp), axis=-1), 1.0, atol=1e-3))

    # feature_transform=True exercises the STNkd histogram kernel + FT seg head.
    params_ft = init_params(kp2, NUM_CLASS, feature_transform=True)
    fwd_ft = jax.jit(functools.partial(pointnet_seg_forward, num_class=NUM_CLASS,
                                       feature_transform=True))
    logp_ft, tf = fwd_ft(x, params_ft)
    logp_ft = jax.block_until_ready(logp_ft)
    assert logp_ft.shape == (B, N, NUM_CLASS) and tf.shape == (B, 64, 64)
    assert bool(jnp.all(jnp.isfinite(logp_ft))) and bool(jnp.all(jnp.isfinite(tf)))
    assert bool(jnp.allclose(jnp.sum(jnp.exp(logp_ft), axis=-1), 1.0, atol=1e-3))

    print("KERNEL_OK")
</pallas_src>

<mosaic_0001>
module attributes {stable_mosaic.version = 11 : i64} {
  func.func @_encoder_fused_kernel(%arg0: i32, %arg1: i32, %arg2: memref<1x256x8xf32, #tpu.memory_space<vmem>>, %arg3: memref<8x64xbf16, #tpu.memory_space<vmem>>, %arg4: memref<1x64xf32, #tpu.memory_space<vmem>>, %arg5: memref<64x128xbf16, #tpu.memory_space<vmem>>, %arg6: memref<1x128xf32, #tpu.memory_space<vmem>>, %arg7: memref<128x1024xbf16, #tpu.memory_space<vmem>>, %arg8: memref<1x1024xf32, #tpu.memory_space<vmem>>, %arg9: memref<1x1x1024xf32, #tpu.memory_space<vmem>>) attributes {dimension_semantics = [#tpu.dimension_semantics<parallel>, #tpu.dimension_semantics<arbitrary>], iteration_bounds = array<i64: 2, 1>, scalar_prefetch = 0 : i64, scratch_operands = 0 : i64, tpu.core_type = #tpu.core_type<tc>, window_params = [{transform_indices = @transform_0, window_bounds = array<i64: 1, 256, 8>}, {pipeline_mode = #tpu.pipeline_mode<synchronous>, transform_indices = @transform_1, window_bounds = array<i64: 8, 64>}, {pipeline_mode = #tpu.pipeline_mode<synchronous>, transform_indices = @transform_2, window_bounds = array<i64: 1, 64>}, {pipeline_mode = #tpu.pipeline_mode<synchronous>, transform_indices = @transform_3, window_bounds = array<i64: 64, 128>}, {pipeline_mode = #tpu.pipeline_mode<synchronous>, transform_indices = @transform_4, window_bounds = array<i64: 1, 128>}, {pipeline_mode = #tpu.pipeline_mode<synchronous>, transform_indices = @transform_5, window_bounds = array<i64: 128, 1024>}, {pipeline_mode = #tpu.pipeline_mode<synchronous>, transform_indices = @transform_6, window_bounds = array<i64: 1, 1024>}, {transform_indices = @transform_7, window_bounds = array<i64: 1, 1, 1024>}]} {
    %c0 = arith.constant 0 : index
    %c0_0 = arith.constant 0 : index
    %c0_1 = arith.constant 0 : index
    %0 = vector.load %arg2[%c0, %c0_0, %c0_1] : memref<1x256x8xf32, #tpu.memory_space<vmem>>, vector<1x256x8xf32>
    %1 = vector.shape_cast %0 : vector<1x256x8xf32> to vector<256x8xf32>
    %2 = arith.truncf %1 : vector<256x8xf32> to vector<256x8xbf16>
    %c0_2 = arith.constant 0 : index
    %c0_3 = arith.constant 0 : index
    %3 = vector.load %arg3[%c0_2, %c0_3] : memref<8x64xbf16, #tpu.memory_space<vmem>>, vector<8x64xbf16>
    %cst = arith.constant dense<0.000000e+00> : vector<256x64xf32>
    %4 = tpu.matmul %2, %3, %cst {dimension_numbers = #tpu.dot_dimension_numbers<[1], [0], [0], [1], [0, 0, 1, 1], [], []>} : vector<256x8xbf16>, vector<8x64xbf16>, vector<256x64xf32> -> vector<256x64xf32>
    %c0_4 = arith.constant 0 : index
    %c0_5 = arith.constant 0 : index
    %5 = vector.load %arg4[%c0_4, %c0_5] : memref<1x64xf32, #tpu.memory_space<vmem>>, vector<1x64xf32>
    %6 = vector.broadcast %5 : vector<1x64xf32> to vector<256x64xf32>
    %7 = arith.addf %4, %6 : vector<256x64xf32>
    %cst_6 = arith.constant 0.000000e+00 : f32
    %8 = vector.broadcast %cst_6 : f32 to vector<256x64xf32>
    %9 = arith.maximumf %7, %8 : vector<256x64xf32>
    %10 = arith.truncf %9 : vector<256x64xf32> to vector<256x64xbf16>
    %c0_7 = arith.constant 0 : index
    %c0_8 = arith.constant 0 : index
    %11 = vector.load %arg5[%c0_7, %c0_8] : memref<64x128xbf16, #tpu.memory_space<vmem>>, vector<64x128xbf16>
    %cst_9 = arith.constant dense<0.000000e+00> : vector<256x128xf32>
    %12 = tpu.matmul %10, %11, %cst_9 {dimension_numbers = #tpu.dot_dimension_numbers<[1], [0], [0], [1], [0, 0, 1, 1], [], []>} : vector<256x64xbf16>, vector<64x128xbf16>, vector<256x128xf32> -> vector<256x128xf32>
    %c0_10 = arith.constant 0 : index
    %c0_11 = arith.constant 0 : index
    %13 = vector.load %arg6[%c0_10, %c0_11] : memref<1x128xf32, #tpu.memory_space<vmem>>, vector<1x128xf32>
    %14 = vector.broadcast %13 : vector<1x128xf32> to vector<256x128xf32>
    %15 = arith.addf %12, %14 : vector<256x128xf32>
    %cst_12 = arith.constant 0.000000e+00 : f32
    %16 = vector.broadcast %cst_12 : f32 to vector<256x128xf32>
    %17 = arith.maximumf %15, %16 : vector<256x128xf32>
    %18 = arith.truncf %17 : vector<256x128xf32> to vector<256x128xbf16>
    %c0_13 = arith.constant 0 : index
    %c0_14 = arith.constant 0 : index
    %19 = vector.load %arg7[%c0_13, %c0_14] : memref<128x1024xbf16, #tpu.memory_space<vmem>>, vector<128x1024xbf16>
    %cst_15 = arith.constant dense<0.000000e+00> : vector<256x1024xf32>
    %20 = tpu.matmul %18, %19, %cst_15 {dimension_numbers = #tpu.dot_dimension_numbers<[1], [0], [0], [1], [0, 0, 1, 1], [], []>} : vector<256x128xbf16>, vector<128x1024xbf16>, vector<256x1024xf32> -> vector<256x1024xf32>
    %c0_16 = arith.constant 0 : index
    %c0_17 = arith.constant 0 : index
    %21 = vector.load %arg8[%c0_16, %c0_17] : memref<1x1024xf32, #tpu.memory_space<vmem>>, vector<1x1024xf32>
    %22 = vector.broadcast %21 : vector<1x1024xf32> to vector<256x1024xf32>
    %23 = arith.addf %20, %22 : vector<256x1024xf32>
    %cst_18 = arith.constant dense<0xFF800000> : vector<1024xf32>
    %24 = vector.multi_reduction <maximumf>, %23, %cst_18 [0] : vector<256x1024xf32> to vector<1024xf32>
    %25 = vector.shape_cast %24 : vector<1024xf32> to vector<1x1024xf32>
    %c0_i32 = arith.constant 0 : i32
    %26 = arith.cmpi eq, %arg1, %c0_i32 : i32
    %27 = arith.extui %26 : i1 to i32
    %c0_i32_19 = arith.constant 0 : i32
    %28 = arith.cmpi ne, %27, %c0_i32_19 : i32
    scf.if %28 {
      %c0_22 = arith.constant 0 : index
      %c0_23 = arith.constant 0 : index
      %c0_24 = arith.constant 0 : index
      %32 = vector.load %arg9[%c0_22, %c0_23, %c0_24] : memref<1x1x1024xf32, #tpu.memory_space<vmem>>, vector<1x1x1024xf32>
      %33 = vector.shape_cast %32 : vector<1x1x1024xf32> to vector<1x1024xf32>
      %34 = vector.shape_cast %25 : vector<1x1024xf32> to vector<1x1x1024xf32>
      tpu.vector_store %arg9[%c0_22, %c0_23, %c0_24], %34 {strides = array<i32>} : memref<1x1x1024xf32, #tpu.memory_space<vmem>>, vector<1x1x1024xf32>,
    } else {
    }
    %c0_i32_20 = arith.constant 0 : i32
    %29 = arith.cmpi ne, %arg1, %c0_i32_20 : i32
    %30 = arith.extui %29 : i1 to i32
    %c0_i32_21 = arith.constant 0 : i32
    %31 = arith.cmpi ne, %30, %c0_i32_21 : i32
    scf.if %31 {
      %c0_22 = arith.constant 0 : index
      %c0_23 = arith.constant 0 : index
      %c0_24 = arith.constant 0 : index
      %32 = vector.load %arg9[%c0_22, %c0_23, %c0_24] : memref<1x1x1024xf32, #tpu.memory_space<vmem>>, vector<1x1x1024xf32>
      %33 = vector.shape_cast %32 : vector<1x1x1024xf32> to vector<1x1024xf32>
      %34 = arith.maximumf %33, %25 : vector<1x1024xf32>
      %c0_25 = arith.constant 0 : index
      %c0_26 = arith.constant 0 : index
      %c0_27 = arith.constant 0 : index
      %35 = vector.load %arg9[%c0_25, %c0_26, %c0_27] : memref<1x1x1024xf32, #tpu.memory_space<vmem>>, vector<1x1x1024xf32>
      %36 = vector.shape_cast %35 : vector<1x1x1024xf32> to vector<1x1024xf32>
      %37 = vector.shape_cast %34 : vector<1x1024xf32> to vector<1x1x1024xf32>
      tpu.vector_store %arg9[%c0_25, %c0_26, %c0_27], %37 {strides = array<i32>} : memref<1x1x1024xf32, #tpu.memory_space<vmem>>, vector<1x1x1024xf32>,
    } else {
    }
    return
  }
  func.func @transform_0(%arg0: i32, %arg1: i32) -> (i32, i32, i32) {
    %c0_i32 = arith.constant 0 : i32
    %c0_i32_0 = arith.constant 0 : i32
    return %arg0, %arg1, %c0_i32 : i32, i32, i32
  }
  func.func @transform_1(%arg0: i32, %arg1: i32) -> (i32, i32) {
    %c0_i32 = arith.constant 0 : i32
    %c0_i32_0 = arith.constant 0 : i32
    %c0_i32_1 = arith.constant 0 : i32
    return %c0_i32, %c0_i32_0 : i32, i32
  }
  func.func @transform_2(%arg0: i32, %arg1: i32) -> (i32, i32) {
    %c0_i32 = arith.constant 0 : i32
    %c0_i32_0 = arith.constant 0 : i32
    %c0_i32_1 = arith.constant 0 : i32
    return %c0_i32, %c0_i32_0 : i32, i32
  }
  func.func @transform_3(%arg0: i32, %arg1: i32) -> (i32, i32) {
    %c0_i32 = arith.constant 0 : i32
    %c0_i32_0 = arith.constant 0 : i32
    %c0_i32_1 = arith.constant 0 : i32
    return %c0_i32, %c0_i32_0 : i32, i32
  }
  func.func @transform_4(%arg0: i32, %arg1: i32) -> (i32, i32) {
    %c0_i32 = arith.constant 0 : i32
    %c0_i32_0 = arith.constant 0 : i32
    %c0_i32_1 = arith.constant 0 : i32
    return %c0_i32, %c0_i32_0 : i32, i32
  }
  func.func @transform_5(%arg0: i32, %arg1: i32) -> (i32, i32) {
    %c0_i32 = arith.constant 0 : i32
    %c0_i32_0 = arith.constant 0 : i32
    %c0_i32_1 = arith.constant 0 : i32
    return %c0_i32, %c0_i32_0 : i32, i32
  }
  func.func @transform_6(%arg0: i32, %arg1: i32) -> (i32, i32) {
    %c0_i32 = arith.constant 0 : i32
    %c0_i32_0 = arith.constant 0 : i32
    %c0_i32_1 = arith.constant 0 : i32
    return %c0_i32, %c0_i32_0 : i32, i32
  }
  func.func @transform_7(%arg0: i32, %arg1: i32) -> (i32, i32, i32) {
    %c0_i32 = arith.constant 0 : i32
    %c0_i32_0 = arith.constant 0 : i32
    %c0_i32_1 = arith.constant 0 : i32
    return %arg0, %c0_i32, %c0_i32_0 : i32, i32, i32
  }
}

module attributes {stable_mosaic.version = 11 : i64} {
  func.func @_seg_head_kernel(%arg0: i32, %arg1: i32, %arg2: memref<1x256x8xf32, #tpu.memory_space<vmem>>, %arg3: memref<8x64xbf16, #tpu.memory_space<vmem>>, %arg4: memref<1x64xf32, #tpu.memory_space<vmem>>, %arg5: memref<64x512xbf16, #tpu.memory_space<vmem>>, %arg6: memref<1x1x512xf32, #tpu.memory_space<vmem>>, %arg7: memref<512x256xbf16, #tpu.memory_space<vmem>>, %arg8: memref<1x256xf32, #tpu.memory_space<vmem>>, %arg9: memref<256x128xbf16, #tpu.memory_space<vmem>>, %arg10: memref<1x128xf32, #tpu.memory_space<vmem>>, %arg11: memref<128x128xbf16, #tpu.memory_space<vmem>>, %arg12: memref<1x128xf32, #tpu.memory_space<vmem>>, %arg13: memref<1x256x128xf32, #tpu.memory_space<vmem>>) attributes {dimension_semantics = [#tpu.dimension_semantics<parallel>, #tpu.dimension_semantics<parallel>], iteration_bounds = array<i64: 2, 1>, scalar_prefetch = 0 : i64, scratch_operands = 0 : i64, tpu.core_type = #tpu.core_type<tc>, window_params = [{transform_indices = @transform_0, window_bounds = array<i64: 1, 256, 8>}, {pipeline_mode = #tpu.pipeline_mode<synchronous>, transform_indices = @transform_1, window_bounds = array<i64: 8, 64>}, {pipeline_mode = #tpu.pipeline_mode<synchronous>, transform_indices = @transform_2, window_bounds = array<i64: 1, 64>}, {pipeline_mode = #tpu.pipeline_mode<synchronous>, transform_indices = @transform_3, window_bounds = array<i64: 64, 512>}, {transform_indices = @transform_4, window_bounds = array<i64: 1, 1, 512>}, {pipeline_mode = #tpu.pipeline_mode<synchronous>, transform_indices = @transform_5, window_bounds = array<i64: 512, 256>}, {pipeline_mode = #tpu.pipeline_mode<synchronous>, transform_indices = @transform_6, window_bounds = array<i64: 1, 256>}, {pipeline_mode = #tpu.pipeline_mode<synchronous>, transform_indices = @transform_7, window_bounds = array<i64: 256, 128>}, {pipeline_mode = #tpu.pipeline_mode<synchronous>, transform_indices = @transform_8, window_bounds = array<i64: 1, 128>}, {pipeline_mode = #tpu.pipeline_mode<synchronous>, transform_indices = @transform_9, window_bounds = array<i64: 128, 128>}, {pipeline_mode = #tpu.pipeline_mode<synchronous>, transform_indices = @transform_10, window_bounds = array<i64: 1, 128>}, {transform_indices = @transform_11, window_bounds = array<i64: 1, 256, 128>}]} {
    %c0 = arith.constant 0 : index
    %c0_0 = arith.constant 0 : index
    %c0_1 = arith.constant 0 : index
    %0 = vector.load %arg2[%c0, %c0_0, %c0_1] : memref<1x256x8xf32, #tpu.memory_space<vmem>>, vector<1x256x8xf32>
    %1 = vector.shape_cast %0 : vector<1x256x8xf32> to vector<256x8xf32>
    %2 = arith.truncf %1 : vector<256x8xf32> to vector<256x8xbf16>
    %c0_2 = arith.constant 0 : index
    %c0_3 = arith.constant 0 : index
    %3 = vector.load %arg3[%c0_2, %c0_3] : memref<8x64xbf16, #tpu.memory_space<vmem>>, vector<8x64xbf16>
    %cst = arith.constant dense<0.000000e+00> : vector<256x64xf32>
    %4 = tpu.matmul %2, %3, %cst {dimension_numbers = #tpu.dot_dimension_numbers<[1], [0], [0], [1], [0, 0, 1, 1], [], []>} : vector<256x8xbf16>, vector<8x64xbf16>, vector<256x64xf32> -> vector<256x64xf32>
    %c0_4 = arith.constant 0 : index
    %c0_5 = arith.constant 0 : index
    %5 = vector.load %arg4[%c0_4, %c0_5] : memref<1x64xf32, #tpu.memory_space<vmem>>, vector<1x64xf32>
    %6 = vector.broadcast %5 : vector<1x64xf32> to vector<256x64xf32>
    %7 = arith.addf %4, %6 : vector<256x64xf32>
    %cst_6 = arith.constant 0.000000e+00 : f32
    %8 = vector.broadcast %cst_6 : f32 to vector<256x64xf32>
    %9 = arith.maximumf %7, %8 : vector<256x64xf32>
    %c0_7 = arith.constant 0 : index
    %c0_8 = arith.constant 0 : index
    %c0_9 = arith.constant 0 : index
    %10 = vector.load %arg6[%c0_7, %c0_8, %c0_9] : memref<1x1x512xf32, #tpu.memory_space<vmem>>, vector<1x1x512xf32>
    %11 = vector.shape_cast %10 : vector<1x1x512xf32> to vector<1x512xf32>
    %12 = arith.truncf %9 : vector<256x64xf32> to vector<256x64xbf16>
    %c0_10 = arith.constant 0 : index
    %c0_11 = arith.constant 0 : index
    %13 = vector.load %arg5[%c0_10, %c0_11] : memref<64x512xbf16, #tpu.memory_space<vmem>>, vector<64x512xbf16>
    %cst_12 = arith.constant dense<0.000000e+00> : vector<256x512xf32>
    %14 = tpu.matmul %12, %13, %cst_12 {dimension_numbers = #tpu.dot_dimension_numbers<[1], [0], [0], [1], [0, 0, 1, 1], [], []>} : vector<256x64xbf16>, vector<64x512xbf16>, vector<256x512xf32> -> vector<256x512xf32>
    %15 = vector.broadcast %11 : vector<1x512xf32> to vector<256x512xf32>
    %16 = arith.addf %14, %15 : vector<256x512xf32>
    %cst_13 = arith.constant 0.000000e+00 : f32
    %17 = vector.broadcast %cst_13 : f32 to vector<256x512xf32>
    %18 = arith.maximumf %16, %17 : vector<256x512xf32>
    %19 = arith.truncf %18 : vector<256x512xf32> to vector<256x512xbf16>
    %c0_14 = arith.constant 0 : index
    %c0_15 = arith.constant 0 : index
    %20 = vector.load %arg7[%c0_14, %c0_15] : memref<512x256xbf16, #tpu.memory_space<vmem>>, vector<512x256xbf16>
    %cst_16 = arith.constant dense<0.000000e+00> : vector<256x256xf32>
    %21 = tpu.matmul %19, %20, %cst_16 {dimension_numbers = #tpu.dot_dimension_numbers<[1], [0], [0], [1], [0, 0, 1, 1], [], []>} : vector<256x512xbf16>, vector<512x256xbf16>, vector<256x256xf32> -> vector<256x256xf32>
    %c0_17 = arith.constant 0 : index
    %c0_18 = arith.constant 0 : index
    %22 = vector.load %arg8[%c0_17, %c0_18] : memref<1x256xf32, #tpu.memory_space<vmem>>, vector<1x256xf32>
    %23 = vector.broadcast %22 : vector<1x256xf32> to vector<256x256xf32>
    %24 = arith.addf %21, %23 : vector<256x256xf32>
    %cst_19 = arith.constant 0.000000e+00 : f32
    %25 = vector.broadcast %cst_19 : f32 to vector<256x256xf32>
    %26 = arith.maximumf %24, %25 : vector<256x256xf32>
    %27 = arith.truncf %26 : vector<256x256xf32> to vector<256x256xbf16>
    %c0_20 = arith.constant 0 : index
    %c0_21 = arith.constant 0 : index
    %28 = vector.load %arg9[%c0_20, %c0_21] : memref<256x128xbf16, #tpu.memory_space<vmem>>, vector<256x128xbf16>
    %cst_22 = arith.constant dense<0.000000e+00> : vector<256x128xf32>
    %29 = tpu.matmul %27, %28, %cst_22 {dimension_numbers = #tpu.dot_dimension_numbers<[1], [0], [0], [1], [0, 0, 1, 1], [], []>} : vector<256x256xbf16>, vector<256x128xbf16>, vector<256x128xf32> -> vector<256x128xf32>
    %c0_23 = arith.constant 0 : index
    %c0_24 = arith.constant 0 : index
    %30 = vector.load %arg10[%c0_23, %c0_24] : memref<1x128xf32, #tpu.memory_space<vmem>>, vector<1x128xf32>
    %31 = vector.broadcast %30 : vector<1x128xf32> to vector<256x128xf32>
    %32 = arith.addf %29, %31 : vector<256x128xf32>
    %cst_25 = arith.constant 0.000000e+00 : f32
    %33 = vector.broadcast %cst_25 : f32 to vector<256x128xf32>
    %34 = arith.maximumf %32, %33 : vector<256x128xf32>
    %35 = arith.truncf %34 : vector<256x128xf32> to vector<256x128xbf16>
    %c0_26 = arith.constant 0 : index
    %c0_27 = arith.constant 0 : index
    %36 = vector.load %arg11[%c0_26, %c0_27] : memref<128x128xbf16, #tpu.memory_space<vmem>>, vector<128x128xbf16>
    %cst_28 = arith.constant dense<0.000000e+00> : vector<256x128xf32>
    %37 = tpu.matmul %35, %36, %cst_28 {dimension_numbers = #tpu.dot_dimension_numbers<[1], [0], [0], [1], [0, 0, 1, 1], [], []>} : vector<256x128xbf16>, vector<128x128xbf16>, vector<256x128xf32> -> vector<256x128xf32>
    %c0_29 = arith.constant 0 : index
    %c0_30 = arith.constant 0 : index
    %38 = vector.load %arg12[%c0_29, %c0_30] : memref<1x128xf32, #tpu.memory_space<vmem>>, vector<1x128xf32>
    %39 = vector.broadcast %38 : vector<1x128xf32> to vector<256x128xf32>
    %40 = arith.addf %37, %39 : vector<256x128xf32>
    %cst_31 = arith.constant dense<0xFF800000> : vector<256xf32>
    %41 = vector.multi_reduction <maximumf>, %40, %cst_31 [1] : vector<256x128xf32> to vector<256xf32>
    %42 = vector.shape_cast %41 : vector<256xf32> to vector<256x1xf32>
    %43 = vector.broadcast %42 : vector<256x1xf32> to vector<256x128xf32>
    %44 = arith.subf %40, %43 : vector<256x128xf32>
    %45 = math.exp %44 : vector<256x128xf32>
    %cst_32 = arith.constant dense<0.000000e+00> : vector<256xf32>
    %46 = vector.multi_reduction <add>, %45, %cst_32 [1] : vector<256x128xf32> to vector<256xf32>
    %47 = vector.shape_cast %46 : vector<256xf32> to vector<256x1xf32>
    %48 = math.log %47 : vector<256x1xf32>
    %49 = vector.broadcast %48 : vector<256x1xf32> to vector<256x128xf32>
    %50 = arith.subf %44, %49 : vector<256x128xf32>
    %c0_33 = arith.constant 0 : index
    %c0_34 = arith.constant 0 : index
    %c0_35 = arith.constant 0 : index
    %51 = vector.load %arg13[%c0_33, %c0_34, %c0_35] : memref<1x256x128xf32, #tpu.memory_space<vmem>>, vector<1x256x128xf32>
    %52 = vector.shape_cast %51 : vector<1x256x128xf32> to vector<256x128xf32>
    %53 = vector.shape_cast %50 : vector<256x128xf32> to vector<1x256x128xf32>
    tpu.vector_store %arg13[%c0_33, %c0_34, %c0_35], %53 {strides = array<i32>} : memref<1x256x128xf32, #tpu.memory_space<vmem>>, vector<1x256x128xf32>,
    return
  }
  func.func @transform_0(%arg0: i32, %arg1: i32) -> (i32, i32, i32) {
    %c0_i32 = arith.constant 0 : i32
    %c0_i32_0 = arith.constant 0 : i32
    return %arg0, %arg1, %c0_i32 : i32, i32, i32
  }
  func.func @transform_1(%arg0: i32, %arg1: i32) -> (i32, i32) {
    %c0_i32 = arith.constant 0 : i32
    %c0_i32_0 = arith.constant 0 : i32
    %c0_i32_1 = arith.constant 0 : i32
    return %c0_i32, %c0_i32_0 : i32, i32
  }
  func.func @transform_2(%arg0: i32, %arg1: i32) -> (i32, i32) {
    %c0_i32 = arith.constant 0 : i32
    %c0_i32_0 = arith.constant 0 : i32
    %c0_i32_1 = arith.constant 0 : i32
    return %c0_i32, %c0_i32_0 : i32, i32
  }
  func.func @transform_3(%arg0: i32, %arg1: i32) -> (i32, i32) {
    %c0_i32 = arith.constant 0 : i32
    %c0_i32_0 = arith.constant 0 : i32
    %c0_i32_1 = arith.constant 0 : i32
    return %c0_i32, %c0_i32_0 : i32, i32
  }
  func.func @transform_4(%arg0: i32, %arg1: i32) -> (i32, i32, i32) {
    %c0_i32 = arith.constant 0 : i32
    %c0_i32_0 = arith.constant 0 : i32
    %c0_i32_1 = arith.constant 0 : i32
    return %arg0, %c0_i32, %c0_i32_0 : i32, i32, i32
  }
  func.func @transform_5(%arg0: i32, %arg1: i32) -> (i32, i32) {
    %c0_i32 = arith.constant 0 : i32
    %c0_i32_0 = arith.constant 0 : i32
    %c0_i32_1 = arith.constant 0 : i32
    return %c0_i32, %c0_i32_0 : i32, i32
  }
  func.func @transform_6(%arg0: i32, %arg1: i32) -> (i32, i32) {
    %c0_i32 = arith.constant 0 : i32
    %c0_i32_0 = arith.constant 0 : i32
    %c0_i32_1 = arith.constant 0 : i32
    return %c0_i32, %c0_i32_0 : i32, i32
  }
  func.func @transform_7(%arg0: i32, %arg1: i32) -> (i32, i32) {
    %c0_i32 = arith.constant 0 : i32
    %c0_i32_0 = arith.constant 0 : i32
    %c0_i32_1 = arith.constant 0 : i32
    return %c0_i32, %c0_i32_0 : i32, i32
  }
  func.func @transform_8(%arg0: i32, %arg1: i32) -> (i32, i32) {
    %c0_i32 = arith.constant 0 : i32
    %c0_i32_0 = arith.constant 0 : i32
    %c0_i32_1 = arith.constant 0 : i32
    return %c0_i32, %c0_i32_0 : i32, i32
  }
  func.func @transform_9(%arg0: i32, %arg1: i32) -> (i32, i32) {
    %c0_i32 = arith.constant 0 : i32
    %c0_i32_0 = arith.constant 0 : i32
    %c0_i32_1 = arith.constant 0 : i32
    return %c0_i32, %c0_i32_0 : i32, i32
  }
  func.func @transform_10(%arg0: i32, %arg1: i32) -> (i32, i32) {
    %c0_i32 = arith.constant 0 : i32
    %c0_i32_0 = arith.constant 0 : i32
    %c0_i32_1 = arith.constant 0 : i32
    return %c0_i32, %c0_i32_0 : i32, i32
  }
  func.func @transform_11(%arg0: i32, %arg1: i32) -> (i32, i32, i32) {
    %c0_i32 = arith.constant 0 : i32
    %c0_i32_0 = arith.constant 0 : i32
    return %arg0, %arg1, %c0_i32 : i32, i32, i32
  }
}

</mosaic_0001>

<llo_original>
// kernel: pointnet_seg_forward.2
$region0: #{pointnet_seg_forward.2}
  #allocation0 [shape = 'u32[]', space=smem, size = 0x4, offset = 0x4, fixed_abs, tag = 'smem constant byte address 0x4 - core index']
  #allocation1 [shape = 'u32[144,128]{1,0:T(1,128)}', space=vmem, size = 0x12000, scoped, tag = 'internal scratch']
  %s0 = inlined_call_operand.vmem [shape: f32[2,256,8], index: 0, kind: input, shape index: {}]
  %s1 = inlined_call_operand.vmem [shape: bf16[8,64], index: 1, kind: input, shape index: {}]
  %s2 = inlined_call_operand.vmem [shape: f32[1,64], index: 2, kind: input, shape index: {}]
  %s3 = inlined_call_operand.vmem [shape: bf16[64,128], index: 3, kind: input, shape index: {}]
  %s4 = inlined_call_operand.vmem [shape: f32[1,128], index: 4, kind: input, shape index: {}]
  %s5 = inlined_call_operand.vmem [shape: bf16[128,1024], index: 5, kind: input, shape index: {}]
  %s6 = inlined_call_operand.vmem [shape: f32[1,1024], index: 6, kind: input, shape index: {}]
  %s7 = inlined_call_operand.vmem [shape: f32[2,1,1024], index: 7, kind: output, shape index: {}]
  %s8 = sld [smem:[#allocation0]]
  $region69: #{pointnet_seg_forward.2} parent=0
    _
  %s10 = ssub.s32 1, %s8
  %s11 = scalar_select 0, %s10, %s8
  loop: start=0, step=1, limit=4
  $region2: #{pointnet_seg_forward.2} parent=0 // loop_pre_header
    _
  $region3: #{pointnet_seg_forward.2} parent=0 // loop_header
    %s13 = sphi 0, %s17
    %p14 = scmp.ge.s32.totalorder %s13, 4
    %s20 = sphi 0, %s32
    %s21 = sphi 0, %s28
    %s22 = sphi 0, %s20
    %s23 = sphi 0, %s21
    %s24 = sphi 0, %s22
    %s25 = sphi 0, %s23
    %s37 = sphi 0, %s39
    %s40 = sphi 0, %s37
    %s41 = sphi 0, %s40
    %s57 = sphi 0, %s41
    %s61 = sphi 0, %s61
    %s63 = sphi 0, %s61
    %s64 = sphi 0, %s63
    %s78 = sphi 0, %s64
    %s82 = sphi 0, %s82
    %s84 = sphi 0, %s82
    %s85 = sphi 0, %s84
    %s99 = sphi 0, %s85
    %s103 = sphi 0, %s103
    %s105 = sphi 0, %s103
    %s106 = sphi 0, %s105
    %s120 = sphi 0, %s106
    %s124 = sphi 0, %s124
    %s126 = sphi 0, %s124
    %s127 = sphi 0, %s126
    %s141 = sphi 0, %s127
    %s145 = sphi 0, %s145
    %s147 = sphi 0, %s145
    %s148 = sphi 0, %s147
    %s162 = sphi 0, %s148
    %s166 = sphi 0, %s166
    %s168 = sphi 0, %s166
    %s169 = sphi 0, %s168
    %s183 = sphi 0, %s169
    %s189 = sphi 0, %s191
    %s192 = sphi 0, %s189
    %s193 = sphi 0, %s192
    %s209 = sphi 0, %s193
  $region4: #{pointnet_seg_forward.2} parent=0 // loop_header_branch
    %16 = sbr.rel (%p14) target = $region8
  $region5: #{pointnet_seg_forward.2} parent=0 // loop_body
    %s18 = ssub.s32 %s13, 1
    %s19 = ssub.s32 %s13, 2
    %s26 = sadd.s32 1, %s21
    %p27 = scmp.ge.s32.totalorder %s26, 1
    %s28 = scalar_select %p27, 0, %s26
    %s29 = sadd.s32 1, %s20
    %s30 = scalar_select %p27, %s29, %s20
    %p31 = scmp.ge.s32.totalorder %s30, 2
    %s32 = scalar_select %p31, 0, %s30
    %s33 = ssub.s32 %s20, %s32
    %s34 = ssub.s32 %s21, %s28
    %s35 = sor.u32 %s33, %s34
    %p36 = scmp.eq.s32.totalorder %s35, 0
    %s38 = sadd.s32 %s37, 1
    %s39 = scalar_select %p36, %s37, %s38
    %p42 = pneg %p36
    %p43 = scmp.eq.s32.totalorder %s13, 1
    %p44 = por %p42, %p43
    %p45 = scmp.ne.s32.totalorder %s37, %s40
    %p46 = scmp.eq.s32.totalorder %s13, 0
    %p47 = por %p45, %p46
    %p48 = scmp.ne.s32.totalorder %s37, %s40
    %p49 = scmp.eq.s32.totalorder %s18, 1
    %p50 = por %p48, %p49
    %p51 = scmp.ne.s32.totalorder %s40, %s41
    %p52 = scmp.eq.s32.totalorder %s18, 0
    %p53 = por %p51, %p52
    %p54 = scmp.ne.s32.totalorder %s40, %s41
    %p55 = scmp.eq.s32.totalorder %s19, 1
    %p56 = por %p54, %p55
    %p58 = scmp.ne.s32.totalorder %s41, %s57
    %p59 = scmp.eq.s32.totalorder %s19, 0
    %p60 = por %p58, %p59
    %s62 = sadd.s32 %s61, 1
    %p65 = scmp.eq.s32.totalorder %s13, 1
    %p66 = scmp.ne.s32.totalorder %s61, %s63
    %p67 = scmp.eq.s32.totalorder %s13, 0
    %p68 = por %p66, %p67
    %p69 = scmp.ne.s32.totalorder %s61, %s63
    %p70 = scmp.eq.s32.totalorder %s18, 1
    %p71 = por %p69, %p70
    %p72 = scmp.ne.s32.totalorder %s63, %s64
    %p73 = scmp.eq.s32.totalorder %s18, 0
    %p74 = por %p72, %p73
    %p75 = scmp.ne.s32.totalorder %s63, %s64
    %p76 = scmp.eq.s32.totalorder %s19, 1
    %p77 = por %p75, %p76
    %p79 = scmp.ne.s32.totalorder %s64, %s78
    %p80 = scmp.eq.s32.totalorder %s19, 0
    %p81 = por %p79, %p80
    %s83 = sadd.s32 %s82, 1
    %p86 = scmp.eq.s32.totalorder %s13, 1
    %p87 = scmp.ne.s32.totalorder %s82, %s84
    %p88 = scmp.eq.s32.totalorder %s13, 0
    %p89 = por %p87, %p88
    %p90 = scmp.ne.s32.totalorder %s82, %s84
    %p91 = scmp.eq.s32.totalorder %s18, 1
    %p92 = por %p90, %p91
    %p93 = scmp.ne.s32.totalorder %s84, %s85
    %p94 = scmp.eq.s32.totalorder %s18, 0
    %p95 = por %p93, %p94
    %p96 = scmp.ne.s32.totalorder %s84, %s85
    %p97 = scmp.eq.s32.totalorder %s19, 1
    %p98 = por %p96, %p97
    %p100 = scmp.ne.s32.totalorder %s85, %s99
    %p101 = scmp.eq.s32.totalorder %s19, 0
    %p102 = por %p100, %p101
    %s104 = sadd.s32 %s103, 1
    %p107 = scmp.eq.s32.totalorder %s13, 1
    %p108 = scmp.ne.s32.totalorder %s103, %s105
    %p109 = scmp.eq.s32.totalorder %s13, 0
    %p110 = por %p108, %p109
    %p111 = scmp.ne.s32.totalorder %s103, %s105
    %p112 = scmp.eq.s32.totalorder %s18, 1
    %p113 = por %p111, %p112
    %p114 = scmp.ne.s32.totalorder %s105, %s106
    %p115 = scmp.eq.s32.totalorder %s18, 0
    %p116 = por %p114, %p115
    %p117 = scmp.ne.s32.totalorder %s105, %s106
    %p118 = scmp.eq.s32.totalorder %s19, 1
    %p119 = por %p117, %p118
    %p121 = scmp.ne.s32.totalorder %s106, %s120
    %p122 = scmp.eq.s32.totalorder %s19, 0
    %p123 = por %p121, %p122
    %s125 = sadd.s32 %s124, 1
    %p128 = scmp.eq.s32.totalorder %s13, 1
    %p129 = scmp.ne.s32.totalorder %s124, %s126
    %p130 = scmp.eq.s32.totalorder %s13, 0
    %p131 = por %p129, %p130
    %p132 = scmp.ne.s32.totalorder %s124, %s126
    %p133 = scmp.eq.s32.totalorder %s18, 1
    %p134 = por %p132, %p133
    %p135 = scmp.ne.s32.totalorder %s126, %s127
    %p136 = scmp.eq.s32.totalorder %s18, 0
    %p137 = por %p135, %p136
    %p138 = scmp.ne.s32.totalorder %s126, %s127
    %p139 = scmp.eq.s32.totalorder %s19, 1
    %p140 = por %p138, %p139
    %p142 = scmp.ne.s32.totalorder %s127, %s141
    %p143 = scmp.eq.s32.totalorder %s19, 0
    %p144 = por %p142, %p143
    %s146 = sadd.s32 %s145, 1
    %p149 = scmp.eq.s32.totalorder %s13, 1
    %p150 = scmp.ne.s32.totalorder %s145, %s147
    %p151 = scmp.eq.s32.totalorder %s13, 0
    %p152 = por %p150, %p151
    %p153 = scmp.ne.s32.totalorder %s145, %s147
    %p154 = scmp.eq.s32.totalorder %s18, 1
    %p155 = por %p153, %p154
    %p156 = scmp.ne.s32.totalorder %s147, %s148
    %p157 = scmp.eq.s32.totalorder %s18, 0
    %p158 = por %p156, %p157
    %p159 = scmp.ne.s32.totalorder %s147, %s148
    %p160 = scmp.eq.s32.totalorder %s19, 1
    %p161 = por %p159, %p160
    %p163 = scmp.ne.s32.totalorder %s148, %s162
    %p164 = scmp.eq.s32.totalorder %s19, 0
    %p165 = por %p163, %p164
    %s167 = sadd.s32 %s166, 1
    %p170 = scmp.eq.s32.totalorder %s13, 1
    %p171 = scmp.ne.s32.totalorder %s166, %s168
    %p172 = scmp.eq.s32.totalorder %s13, 0
    %p173 = por %p171, %p172
    %p174 = scmp.ne.s32.totalorder %s166, %s168
    %p175 = scmp.eq.s32.totalorder %s18, 1
    %p176 = por %p174, %p175
    %p177 = scmp.ne.s32.totalorder %s168, %s169
    %p178 = scmp.eq.s32.totalorder %s18, 0
    %p179 = por %p177, %p178
    %p180 = scmp.ne.s32.totalorder %s168, %s169
    %p181 = scmp.eq.s32.totalorder %s19, 1
    %p182 = por %p180, %p181
    %p184 = scmp.ne.s32.totalorder %s169, %s183
    %p185 = scmp.eq.s32.totalorder %s19, 0
    %p186 = por %p184, %p185
    %s187 = ssub.s32 %s20, %s32
    %p188 = scmp.eq.s32.totalorder %s187, 0
    %s190 = sadd.s32 %s189, 1
    %s191 = scalar_select %p188, %s189, %s190
    %p194 = pneg %p188
    %p195 = scmp.eq.s32.totalorder %s13, 1
    %p196 = por %p194, %p195
    %p197 = scmp.ne.s32.totalorder %s189, %s192
    %p198 = scmp.eq.s32.totalorder %s13, 0
    %p199 = por %p197, %p198
    %p200 = scmp.ne.s32.totalorder %s189, %s192
    %p201 = scmp.eq.s32.totalorder %s18, 1
    %p202 = por %p200, %p201
    %p203 = scmp.ne.s32.totalorder %s192, %s193
    %p204 = scmp.eq.s32.totalorder %s18, 0
    %p205 = por %p203, %p204
    %p206 = scmp.ne.s32.totalorder %s192, %s193
    %p207 = scmp.eq.s32.totalorder %s19, 1
    %p208 = por %p206, %p207
    %p210 = scmp.ne.s32.totalorder %s193, %s209
    %p211 = scmp.eq.s32.totalorder %s19, 0
    %p212 = por %p210, %p211
    %p213 = scmp.le.s32.totalorder 1, %s13
    %p214 = scmp.lt.s32.totalorder %s13, 3
    %p215 = pnand %p213, %p214
    %p216 = pneg %p215
    // Predicated region
    $region9: #{pointnet_seg_forward.2} parent=5 // pred_check
      _
    $region10: #{pointnet_seg_forward.2} parent=5 // pred_check_branch
      %218 = sbr.rel (%p215) target = $region12
    $region11: #{pointnet_seg_forward.2} parent=5 // pred_region
      %s219 = ssub.s32 %s13, 1
      // Predicated region
      $region13: #{pointnet_seg_forward.2} parent=11 // pred_check
        %p220 = pneg %p74
      $region14: #{pointnet_seg_forward.2} parent=11 // pred_check_branch
        %222 = sbr.rel (%p220) target = $region16
      $region15: #{pointnet_seg_forward.2} parent=11 // pred_region
        _
      $region16: #{pointnet_seg_forward.2} parent=11 // pred_fallthru
        _
      // Predicated region
      $region17: #{pointnet_seg_forward.2} parent=11 // pred_check
        %p223 = pneg %p95
      $region18: #{pointnet_seg_forward.2} parent=11 // pred_check_branch
        %225 = sbr.rel (%p223) target = $region20
      $region19: #{pointnet_seg_forward.2} parent=11 // pred_region
        _
      $region20: #{pointnet_seg_forward.2} parent=11 // pred_fallthru
        _
      // Predicated region
      $region21: #{pointnet_seg_forward.2} parent=11 // pred_check
        %p226 = pneg %p116
      $region22: #{pointnet_seg_forward.2} parent=11 // pred_check_branch
        %228 = sbr.rel (%p226) target = $region24
      $region23: #{pointnet_seg_forward.2} parent=11 // pred_region
        _
      $region24: #{pointnet_seg_forward.2} parent=11 // pred_fallthru
        _
      // Predicated region
      $region25: #{pointnet_seg_forward.2} parent=11 // pred_check
        %p229 = pneg %p137
      $region26: #{pointnet_seg_forward.2} parent=11 // pred_check_branch
        %231 = sbr.rel (%p229) target = $region28
      $region27: #{pointnet_seg_forward.2} parent=11 // pred_region
        _
      $region28: #{pointnet_seg_forward.2} parent=11 // pred_fallthru
        _
      // Predicated region
      $region29: #{pointnet_seg_forward.2} parent=11 // pred_check
        %p232 = pneg %p158
      $region30: #{pointnet_seg_forward.2} parent=11 // pred_check_branch
        %234 = sbr.rel (%p232) target = $region32
      $region31: #{pointnet_seg_forward.2} parent=11 // pred_region
        _
      $region32: #{pointnet_seg_forward.2} parent=11 // pred_fallthru
        _
      // Predicated region
      $region33: #{pointnet_seg_forward.2} parent=11 // pred_check
        %p235 = pneg %p179
      $region34: #{pointnet_seg_forward.2} parent=11 // pred_check_branch
        %237 = sbr.rel (%p235) target = $region36
      $region35: #{pointnet_seg_forward.2} parent=11 // pred_region
        _
      $region36: #{pointnet_seg_forward.2} parent=11 // pred_fallthru
        _
    $region12: #{pointnet_seg_forward.2} parent=5 // pred_fallthru
      _
    %p238 = scmp.lt.s32.totalorder %s13, 2
    // Predicated region
    $region37: #{pointnet_seg_forward.2} parent=5 // pred_check
      %p239 = pneg %p238
    $region38: #{pointnet_seg_forward.2} parent=5 // pred_check_branch
      %241 = sbr.rel (%p239) target = $region40
    $region39: #{pointnet_seg_forward.2} parent=5 // pred_region
      // Predicated region
      $region41: #{pointnet_seg_forward.2} parent=39 // pred_check
        %p242 = pneg %p47
      $region42: #{pointnet_seg_forward.2} parent=39 // pred_check_branch
        %244 = sbr.rel (%p242) target = $region44
      $region43: #{pointnet_seg_forward.2} parent=39 // pred_region
        %s245 = smul.u32 32, %s21
        %p246 = scmp.lt.s32.totalorder %s20, 1
        %s247 = scalar_select %p246, %s20, 1
        %p248 = scmp.lt.s32.totalorder %s245, 31
        %s249 = scalar_select %p248, %s245, 31
        %s250 = smul.addr %s247, 32
        %s251 = sadd.s32 %s249, %s250
        %s252 = smul.addr %s251, 8
        %s253 = scalar_lea.vmem %s0, %s252
        %s254 = smul.u32 32, %s21
      $region44: #{pointnet_seg_forward.2} parent=39 // pred_fallthru
        _
    $region40: #{pointnet_seg_forward.2} parent=5 // pred_fallthru
      _
    %p255 = scmp.le.s32.totalorder 1, %s13
    %p256 = scmp.lt.s32.totalorder %s13, 3
    %p257 = pnand %p255, %p256
    %p258 = pneg %p257
    // Predicated region
    $region45: #{pointnet_seg_forward.2} parent=5 // pred_check
      _
    $region46: #{pointnet_seg_forward.2} parent=5 // pred_check_branch
      %260 = sbr.rel (%p257) target = $region48
    $region47: #{pointnet_seg_forward.2} parent=5 // pred_region
      %s261 = ssub.s32 %s13, 1
      %s262 = smul.u32 32, %s23
      %p263 = scmp.lt.s32.totalorder %s22, 1
      %s264 = scalar_select %p263, %s22, 1
      %p265 = scmp.lt.s32.totalorder %s262, 31
      %s266 = scalar_select %p265, %s262, 31
      %s267 = smul.addr %s264, 32
      %s268 = sadd.s32 %s266, %s267
      %s269 = smul.addr %s268, 8
      %s270 = scalar_lea.vmem %s0, %s269
      %p271 = pneg %p53
      %p272 = pneg %p50
      %p273 = pneg %p74
      %p274 = pneg %p71
      %p275 = pneg %p95
      %p276 = pneg %p92
      %p277 = pneg %p116
      %p278 = pneg %p113
      %p279 = pneg %p137
      %p280 = pneg %p134
      %p281 = pneg %p158
      %p282 = pneg %p155
      %p283 = pneg %p179
      %p284 = pneg %p176
      %p285 = pneg %p205
      %p286 = pneg %p202
      %p287 = scmp.lt.s32.totalorder %s22, 1
      %s288 = scalar_select %p287, %s22, 1
      %s289 = smul.addr %s288, 8
      %s290 = scalar_lea.vmem %s7, %s289
      %s291 = smul.u32 32, %s23
      %p292 = scmp.lt.s32.totalorder %s22, 1
      %s293 = scalar_select %p292, %s22, 1
      %p294 = scmp.lt.s32.totalorder %s291, 31
      %s295 = scalar_select %p294, %s291, 31
      %s296 = smul.addr %s293, 32
      %s297 = sadd.s32 %s295, %s296
      %s298 = smul.addr %s297, 8
      %s299 = scalar_lea.vmem %s0, %s298
      %s300 = smul.u32 32, %s23
      %p301 = scmp.lt.s32.totalorder %s22, 1
      %s302 = scalar_select %p301, %s22, 1
      %s303 = smul.addr %s302, 8
      %s304 = scalar_lea.vmem %s7, %s303
      %v306 = vld [vmem:[%s299] sm:$0xff]
      %v307 = vld [vmem:[%s299 + $0x8] sm:$0xff]
      %v308 = vld [vmem:[%s299 + $0x10] sm:$0xff]
      %v309 = vld [vmem:[%s299 + $0x18] sm:$0xff]
      %v310 = vld [vmem:[%s299 + $0x20] sm:$0xff]
      %v311 = vld [vmem:[%s299 + $0x28] sm:$0xff]
      %v312 = vld [vmem:[%s299 + $0x30] sm:$0xff]
      %v313 = vld [vmem:[%s299 + $0x38] sm:$0xff]
      %v314 = vld [vmem:[%s299 + $0x40] sm:$0xff]
      %v315 = vld [vmem:[%s299 + $0x48] sm:$0xff]
      %v316 = vld [vmem:[%s299 + $0x50] sm:$0xff]
      %v317 = vld [vmem:[%s299 + $0x58] sm:$0xff]
      %v318 = vld [vmem:[%s299 + $0x60] sm:$0xff]
      %v319 = vld [vmem:[%s299 + $0x68] sm:$0xff]
      %v320 = vld [vmem:[%s299 + $0x70] sm:$0xff]
      %v321 = vld [vmem:[%s299 + $0x78] sm:$0xff]
      %v322 = vld [vmem:[%s299 + $0x80] sm:$0xff]
      %v323 = vld [vmem:[%s299 + $0x88] sm:$0xff]
      %v324 = vld [vmem:[%s299 + $0x90] sm:$0xff]
      %v325 = vld [vmem:[%s299 + $0x98] sm:$0xff]
      %v326 = vld [vmem:[%s299 + $0xa0] sm:$0xff]
      %v327 = vld [vmem:[%s299 + $0xa8] sm:$0xff]
      %v328 = vld [vmem:[%s299 + $0xb0] sm:$0xff]
      %v329 = vld [vmem:[%s299 + $0xb8] sm:$0xff]
      %v330 = vld [vmem:[%s299 + $0xc0] sm:$0xff]
      %v331 = vld [vmem:[%s299 + $0xc8] sm:$0xff]
      %v332 = vld [vmem:[%s299 + $0xd0] sm:$0xff]
      %v333 = vld [vmem:[%s299 + $0xd8] sm:$0xff]
      %v334 = vld [vmem:[%s299 + $0xe0] sm:$0xff]
      %v335 = vld [vmem:[%s299 + $0xe8] sm:$0xff]
      %v336 = vld [vmem:[%s299 + $0xf0] sm:$0xff]
      %v337 = vld [vmem:[%s299 + $0xf8] sm:$0xff]
      %v338 = vpack.c.bf16 %v307, %v306
      %v339 = vpack.c.bf16 %v309, %v308
      %v340 = vpack.c.bf16 %v311, %v310
      %v341 = vpack.c.bf16 %v313, %v312
      %v342 = vpack.c.bf16 %v315, %v314
      %v343 = vpack.c.bf16 %v317, %v316
      %v344 = vpack.c.bf16 %v319, %v318
      %v345 = vpack.c.bf16 %v321, %v320
      %v346 = vpack.c.bf16 %v323, %v322
      %v347 = vpack.c.bf16 %v325, %v324
      %v348 = vpack.c.bf16 %v327, %v326
      %v349 = vpack.c.bf16 %v329, %v328
      %v350 = vpack.c.bf16 %v331, %v330
      %v351 = vpack.c.bf16 %v333, %v332
      %v352 = vpack.c.bf16 %v335, %v334
      %v353 = vpack.c.bf16 %v337, %v336
      %v354 = vld [vmem:[%s1] sm:$0xf]
      %v355 = vld [vmem:[%s2] sm:$0x1]
      %v357 = vlaneseq
      %v358 = vshrl.u32 %v357, 7
      %v359 = vsub.s32 0, %v358
      %v360 = vrot.slane %v355, %v359
      %vm362 = vcmask 64512
      %v364 = vsel %vm362, %v338, 0
      %v367 = vsel %vm362, %v339, 0
      %v370 = vsel %vm362, %v340, 0
      %v373 = vsel %vm362, %v341, 0
      %v376 = vsel %vm362, %v342, 0
      %v379 = vsel %vm362, %v343, 0
      %v382 = vsel %vm362, %v344, 0
      %v385 = vsel %vm362, %v345, 0
      %v388 = vsel %vm362, %v346, 0
      %v391 = vsel %vm362, %v347, 0
      %v394 = vsel %vm362, %v348, 0
      %v397 = vsel %vm362, %v349, 0
      %v400 = vsel %vm362, %v350, 0
      %v403 = vsel %vm362, %v351, 0
      %v406 = vsel %vm362, %v352, 0
      %v409 = vsel %vm362, %v353, 0
      %vm411 = vcmask 1043456
      %v413 = vsel %vm411, %v354, 0
      %415 = vmatprep.subr.bf16.mxu0 0
      %416 = vmatpush1.bf16.msra.mxu0 0
      %417 = vmatprep.subr.bf16.mxu0 0
      %418 = vmatpush1.bf16.msra.mxu0 0
      %419 = vmatprep.subr.bf16.mxu0 0
      %420 = vmatpush1.bf16.msra.mxu0 0
      %421 = vmatprep.subr.bf16.mxu0 0
      %422 = vmatpush1.bf16.msra.mxu0 0
      %423 = vmatprep.subr.bf16.mxu0 0
      %424 = vmatpush1.bf16.msra.mxu0 0
      %425 = vmatprep.subr.bf16.mxu0 0
      %426 = vmatpush1.bf16.msra.mxu0 0
      %427 = vmatprep.subr.bf16.mxu0 0
      %428 = vmatpush1.bf16.msra.mxu0 0
      %429 = vmatprep.subr.bf16.mxu0 0
      %430 = vmatpush1.bf16.msra.mxu0 %v413
      %431 = vmatprep.subr.bf16.mxu0 0
      %432 = vmatpush2.bf16.msra.mxu0 0
      %433 = vmatprep.subr.bf16.mxu0 0
      %434 = vmatpush2.bf16.msra.mxu0 0
      %435 = vmatprep.subr.bf16.mxu0 0
      %436 = vmatpush2.bf16.msra.mxu0 0
      %437 = vmatprep.subr.bf16.mxu0 0
      %438 = vmatpush2.bf16.msra.mxu0 0
      %439 = vmatprep.subr.bf16.mxu0 0
      %440 = vmatpush2.bf16.msra.mxu0 0
      %441 = vmatprep.subr.bf16.mxu0 0
      %442 = vmatpush2.bf16.msra.mxu0 0
      %443 = vmatprep.subr.bf16.mxu0 0
      %444 = vmatpush2.bf16.msra.mxu0 0
      %445 = vmatprep.subr.bf16.mxu0 0
      %446 = vmatpush2.bf16.msra.mxu0 0
      %447 = vmatprep.mubr.bf16.mxu0 0
      %448 = vmatmul.mubr.bf16.gmra.mxu0 %v364
      %v449 = vpop.f32.mrf.mxu0
      %v450 = vadd.f32 %v360, %v449
      %v451 = vpop.f32.mrf.mxu0
      %v452 = vpop.f32.mrf.mxu0
      %v453 = vadd.f32 %v360, %v452
      %v454 = vpop.f32.mrf.mxu0
      %455 = vmatprep.mubr.bf16.mxu0 0
      %456 = vmatmul.mubr.bf16.gmra.mxu0 %v367
      %v457 = vpop.f32.mrf.mxu0
      %v458 = vadd.f32 %v360, %v457
      %v459 = vpop.f32.mrf.mxu0
      %v460 = vpop.f32.mrf.mxu0
      %v461 = vadd.f32 %v360, %v460
      %v462 = vpop.f32.mrf.mxu0
      %463 = vmatprep.mubr.bf16.mxu0 0
      %464 = vmatmul.mubr.bf16.gmra.mxu0 %v370
      %v465 = vpop.f32.mrf.mxu0
      %v466 = vadd.f32 %v360, %v465
      %v467 = vpop.f32.mrf.mxu0
      %v468 = vpop.f32.mrf.mxu0
      %v469 = vadd.f32 %v360, %v468
      %v470 = vpop.f32.mrf.mxu0
      %471 = vmatprep.mubr.bf16.mxu0 0
      %472 = vmatmul.mubr.bf16.gmra.mxu0 %v373
      %v473 = vpop.f32.mrf.mxu0
      %v474 = vadd.f32 %v360, %v473
      %v475 = vpop.f32.mrf.mxu0
      %v476 = vpop.f32.mrf.mxu0
      %v477 = vadd.f32 %v360, %v476
      %v478 = vpop.f32.mrf.mxu0
      %479 = vmatprep.mubr.bf16.mxu0 0
      %480 = vmatmul.mubr.bf16.gmra.mxu0 %v376
      %v481 = vpop.f32.mrf.mxu0
      %v482 = vadd.f32 %v360, %v481
      %v483 = vpop.f32.mrf.mxu0
      %v484 = vpop.f32.mrf.mxu0
      %v485 = vadd.f32 %v360, %v484
      %v486 = vpop.f32.mrf.mxu0
      %487 = vmatprep.mubr.bf16.mxu0 0
      %488 = vmatmul.mubr.bf16.gmra.mxu0 %v379
      %v489 = vpop.f32.mrf.mxu0
      %v490 = vadd.f32 %v360, %v489
      %v491 = vpop.f32.mrf.mxu0
      %v492 = vpop.f32.mrf.mxu0
      %v493 = vadd.f32 %v360, %v492
      %v494 = vpop.f32.mrf.mxu0
      %495 = vmatprep.mubr.bf16.mxu0 0
      %496 = vmatmul.mubr.bf16.gmra.mxu0 %v382
      %v497 = vpop.f32.mrf.mxu0
      %v498 = vadd.f32 %v360, %v497
      %v499 = vpop.f32.mrf.mxu0
      %v500 = vpop.f32.mrf.mxu0
      %v501 = vadd.f32 %v360, %v500
      %v502 = vpop.f32.mrf.mxu0
      %503 = vmatprep.mubr.bf16.mxu0 0
      %504 = vmatmul.mubr.bf16.gmra.mxu0 %v385
      %v505 = vpop.f32.mrf.mxu0
      %v506 = vadd.f32 %v360, %v505
      %v507 = vpop.f32.mrf.mxu0
      %v508 = vpop.f32.mrf.mxu0
      %v509 = vadd.f32 %v360, %v508
      %v510 = vpop.f32.mrf.mxu0
      %511 = vmatprep.mubr.bf16.mxu0 0
      %512 = vmatmul.mubr.bf16.gmra.mxu0 %v388
      %v513 = vpop.f32.mrf.mxu0
      %v514 = vadd.f32 %v360, %v513
      %v515 = vpop.f32.mrf.mxu0
      %v516 = vpop.f32.mrf.mxu0
      %v517 = vadd.f32 %v360, %v516
      %v518 = vpop.f32.mrf.mxu0
      %519 = vmatprep.mubr.bf16.mxu0 0
      %520 = vmatmul.mubr.bf16.gmra.mxu0 %v391
      %v521 = vpop.f32.mrf.mxu0
      %v522 = vadd.f32 %v360, %v521
      %v523 = vpop.f32.mrf.mxu0
      %v524 = vpop.f32.mrf.mxu0
      %v525 = vadd.f32 %v360, %v524
      %v526 = vpop.f32.mrf.mxu0
      %527 = vmatprep.mubr.bf16.mxu0 0
      %528 = vmatmul.mubr.bf16.gmra.mxu0 %v394
      %v529 = vpop.f32.mrf.mxu0
      %v530 = vadd.f32 %v360, %v529
      %v531 = vpop.f32.mrf.mxu0
      %v532 = vpop.f32.mrf.mxu0
      %v533 = vadd.f32 %v360, %v532
      %v534 = vpop.f32.mrf.mxu0
      %535 = vmatprep.mubr.bf16.mxu0 0
      %536 = vmatmul.mubr.bf16.gmra.mxu0 %v397
      %v537 = vpop.f32.mrf.mxu0
      %v538 = vadd.f32 %v360, %v537
      %v539 = vpop.f32.mrf.mxu0
      %v540 = vpop.f32.mrf.mxu0
      %v541 = vadd.f32 %v360, %v540
      %v542 = vpop.f32.mrf.mxu0
      %543 = vmatprep.mubr.bf16.mxu0 0
      %544 = vmatmul.mubr.bf16.gmra.mxu0 %v400
      %v545 = vpop.f32.mrf.mxu0
      %v546 = vadd.f32 %v360, %v545
      %v547 = vpop.f32.mrf.mxu0
      %v548 = vpop.f32.mrf.mxu0
      %v549 = vadd.f32 %v360, %v548
      %v550 = vpop.f32.mrf.mxu0
      %551 = vmatprep.mubr.bf16.mxu0 0
      %552 = vmatmul.mubr.bf16.gmra.mxu0 %v403
      %v553 = vpop.f32.mrf.mxu0
      %v554 = vadd.f32 %v360, %v553
      %v555 = vpop.f32.mrf.mxu0
      %v556 = vpop.f32.mrf.mxu0
      %v557 = vadd.f32 %v360, %v556
      %v558 = vpop.f32.mrf.mxu0
      %559 = vmatprep.mubr.bf16.mxu0 0
      %560 = vmatmul.mubr.bf16.gmra.mxu0 %v406
      %v561 = vpop.f32.mrf.mxu0
      %v562 = vadd.f32 %v360, %v561
      %v563 = vpop.f32.mrf.mxu0
      %v564 = vpop.f32.mrf.mxu0
      %v565 = vadd.f32 %v360, %v564
      %v566 = vpop.f32.mrf.mxu0
      %567 = vmatprep.mubr.bf16.mxu0 0
      %568 = vmatmul.mubr.bf16.gmra.mxu0 %v409
      %v569 = vpop.f32.mrf.mxu0
      %v570 = vadd.f32 %v360, %v569
      %v571 = vpop.f32.mrf.mxu0
      %v572 = vpop.f32.mrf.mxu0
      %v573 = vadd.f32 %v360, %v572
      %v574 = vpop.f32.mrf.mxu0
      %575 = vdwg.mxu0
      %v576 = vmax.f32 %v450, 0.0
      %v577 = vmax.f32 %v453, 0.0
      %v578 = vmax.f32 %v458, 0.0
      %v579 = vmax.f32 %v461, 0.0
      %v580 = vmax.f32 %v466, 0.0
      %v581 = vmax.f32 %v469, 0.0
      %v582 = vmax.f32 %v474, 0.0
      %v583 = vmax.f32 %v477, 0.0
      %v584 = vmax.f32 %v482, 0.0
      %v585 = vmax.f32 %v485, 0.0
      %v586 = vmax.f32 %v490, 0.0
      %v587 = vmax.f32 %v493, 0.0
      %v588 = vmax.f32 %v498, 0.0
      %v589 = vmax.f32 %v501, 0.0
      %v590 = vmax.f32 %v506, 0.0
      %v591 = vmax.f32 %v509, 0.0
      %v592 = vmax.f32 %v514, 0.0
      %v593 = vmax.f32 %v517, 0.0
      %v594 = vmax.f32 %v522, 0.0
      %v595 = vmax.f32 %v525, 0.0
      %v596 = vmax.f32 %v530, 0.0
      %v597 = vmax.f32 %v533, 0.0
      %v598 = vmax.f32 %v538, 0.0
      %v599 = vmax.f32 %v541, 0.0
      %v600 = vmax.f32 %v546, 0.0
      %v601 = vmax.f32 %v549, 0.0
      %v602 = vmax.f32 %v554, 0.0
      %v603 = vmax.f32 %v557, 0.0
      %v604 = vmax.f32 %v562, 0.0
      %v605 = vmax.f32 %v565, 0.0
      %v606 = vmax.f32 %v570, 0.0
      %v607 = vmax.f32 %v573, 0.0
      %v608 = vpack.c.bf16 %v577, %v576
      %v609 = vpack.c.bf16 %v579, %v578
      %v610 = vpack.c.bf16 %v581, %v580
      %v611 = vpack.c.bf16 %v583, %v582
      %v612 = vpack.c.bf16 %v585, %v584
      %v613 = vpack.c.bf16 %v587, %v586
      %v614 = vpack.c.bf16 %v589, %v588
      %v615 = vpack.c.bf16 %v591, %v590
      %v616 = vpack.c.bf16 %v593, %v592
      %v617 = vpack.c.bf16 %v595, %v594
      %v618 = vpack.c.bf16 %v597, %v596
      %v619 = vpack.c.bf16 %v599, %v598
      %v620 = vpack.c.bf16 %v601, %v600
      %v621 = vpack.c.bf16 %v603, %v602
      %v622 = vpack.c.bf16 %v605, %v604
      %v623 = vpack.c.bf16 %v607, %v606
      %v624 = vld [vmem:[%s3] sm:$0xf]
      %v625 = vld [vmem:[%s3 + $0x4] sm:$0xf]
      %v626 = vld [vmem:[%s3 + $0x8] sm:$0xf]
      %v627 = vld [vmem:[%s3 + $0xc] sm:$0xf]
      %v628 = vld [vmem:[%s3 + $0x10] sm:$0xf]
      %v629 = vld [vmem:[%s3 + $0x14] sm:$0xf]
      %v630 = vld [vmem:[%s3 + $0x18] sm:$0xf]
      %v631 = vld [vmem:[%s3 + $0x1c] sm:$0xf]
      %v632 = vld [vmem:[%s4] sm:$0x1]
      %v634 = vlaneseq
      %v635 = vshrl.u32 %v634, 7
      %v636 = vsub.s32 0, %v635
      %v637 = vrot.slane %v632, %v636
      %v647 = vunpack.c.l.b16 %v624
      %v648 = vunpack.c.l.b16 %v625
      %v649 = vunpack.c.l.b16 %v626
      %v650 = vunpack.c.l.b16 %v627
      %v651 = vunpack.c.l.b16 %v628
      %v652 = vunpack.c.l.b16 %v629
      %v653 = vunpack.c.l.b16 %v630
      %v654 = vunpack.c.l.b16 %v631
      %v655 = vpack.c.b16 %v648, %v647
      %v656 = vpack.c.b16 %v650, %v649
      %v657 = vpack.c.b16 %v652, %v651
      %v658 = vpack.c.b16 %v654, %v653
      %vm663 = vcmask 523264
      %v665 = vsel %vm663, %v608, 0
      %v668 = vsel %vm663, %v609, 0
      %v671 = vsel %vm663, %v610, 0
      %v674 = vsel %vm663, %v611, 0
      %v677 = vsel %vm663, %v612, 0
      %v680 = vsel %vm663, %v613, 0
      %v683 = vsel %vm663, %v614, 0
      %v686 = vsel %vm663, %v615, 0
      %v689 = vsel %vm663, %v616, 0
      %v692 = vsel %vm663, %v617, 0
      %v695 = vsel %vm663, %v618, 0
      %v698 = vsel %vm663, %v619, 0
      %v701 = vsel %vm663, %v620, 0
      %v704 = vsel %vm663, %v621, 0
      %v707 = vsel %vm663, %v622, 0
      %v710 = vsel %vm663, %v623, 0
      %712 = vmatprep.subr.bf16.mxu0 0
      %713 = vmatpush1.bf16.msra.mxu0 0
      %714 = vmatprep.subr.bf16.mxu0 0
      %715 = vmatpush1.bf16.msra.mxu0 0
      %716 = vmatprep.subr.bf16.mxu0 0
      %717 = vmatpush1.bf16.msra.mxu0 0
      %718 = vmatprep.subr.bf16.mxu0 0
      %719 = vmatpush1.bf16.msra.mxu0 0
      %720 = vmatprep.subr.bf16.mxu0 0
      %721 = vmatpush1.bf16.msra.mxu0 %v658
      %722 = vmatprep.subr.bf16.mxu0 0
      %723 = vmatpush1.bf16.msra.mxu0 %v657
      %724 = vmatprep.subr.bf16.mxu0 0
      %725 = vmatpush1.bf16.msra.mxu0 %v656
      %726 = vmatprep.subr.bf16.mxu0 0
      %727 = vmatpush1.bf16.msra.mxu0 %v655
      %728 = vmatprep.subr.bf16.mxu0 0
      %729 = vmatpush2.bf16.msra.mxu0 0
      %730 = vmatprep.subr.bf16.mxu0 0
      %731 = vmatpush2.bf16.msra.mxu0 0
      %732 = vmatprep.subr.bf16.mxu0 0
      %733 = vmatpush2.bf16.msra.mxu0 0
      %734 = vmatprep.subr.bf16.mxu0 0
      %735 = vmatpush2.bf16.msra.mxu0 0
      %736 = vmatprep.subr.bf16.mxu0 0
      %737 = vmatpush2.bf16.msra.mxu0 0
      %738 = vmatprep.subr.bf16.mxu0 0
      %739 = vmatpush2.bf16.msra.mxu0 0
      %740 = vmatprep.subr.bf16.mxu0 0
      %741 = vmatpush2.bf16.msra.mxu0 0
      %742 = vmatprep.subr.bf16.mxu0 0
      %743 = vmatpush2.bf16.msra.mxu0 0
      %744 = vmatprep.mubr.bf16.mxu0 0
      %745 = vmatmul.mubr.bf16.gmra.mxu0 %v665
      %v746 = vpop.f32.mrf.mxu0
      %v747 = vadd.f32 %v637, %v746
      %v748 = vpop.f32.mrf.mxu0
      %v749 = vpop.f32.mrf.mxu0
      %v750 = vadd.f32 %v637, %v749
      %v751 = vpop.f32.mrf.mxu0
      %752 = vmatprep.mubr.bf16.mxu0 0
      %753 = vmatmul.mubr.bf16.gmra.mxu0 %v668
      %v754 = vpop.f32.mrf.mxu0
      %v755 = vadd.f32 %v637, %v754
      %v756 = vpop.f32.mrf.mxu0
      %v757 = vpop.f32.mrf.mxu0
      %v758 = vadd.f32 %v637, %v757
      %v759 = vpop.f32.mrf.mxu0
      %760 = vmatprep.mubr.bf16.mxu0 0
      %761 = vmatmul.mubr.bf16.gmra.mxu0 %v671
      %v762 = vpop.f32.mrf.mxu0
      %v763 = vadd.f32 %v637, %v762
      %v764 = vpop.f32.mrf.mxu0
      %v765 = vpop.f32.mrf.mxu0
      %v766 = vadd.f32 %v637, %v765
      %v767 = vpop.f32.mrf.mxu0
      %768 = vmatprep.mubr.bf16.mxu0 0
      %769 = vmatmul.mubr.bf16.gmra.mxu0 %v674
      %v770 = vpop.f32.mrf.mxu0
      %v771 = vadd.f32 %v637, %v770
      %v772 = vpop.f32.mrf.mxu0
      %v773 = vpop.f32.mrf.mxu0
      %v774 = vadd.f32 %v637, %v773
      %v775 = vpop.f32.mrf.mxu0
      %776 = vmatprep.mubr.bf16.mxu0 0
      %777 = vmatmul.mubr.bf16.gmra.mxu0 %v677
      %v778 = vpop.f32.mrf.mxu0
      %v779 = vadd.f32 %v637, %v778
      %v780 = vpop.f32.mrf.mxu0
      %v781 = vpop.f32.mrf.mxu0
      %v782 = vadd.f32 %v637, %v781
      %v783 = vpop.f32.mrf.mxu0
      %784 = vmatprep.mubr.bf16.mxu0 0
      %785 = vmatmul.mubr.bf16.gmra.mxu0 %v680
      %v786 = vpop.f32.mrf.mxu0
      %v787 = vadd.f32 %v637, %v786
      %v788 = vpop.f32.mrf.mxu0
      %v789 = vpop.f32.mrf.mxu0
      %v790 = vadd.f32 %v637, %v789
      %v791 = vpop.f32.mrf.mxu0
      %792 = vmatprep.mubr.bf16.mxu0 0
      %793 = vmatmul.mubr.bf16.gmra.mxu0 %v683
      %v794 = vpop.f32.mrf.mxu0
      %v795 = vadd.f32 %v637, %v794
      %v796 = vpop.f32.mrf.mxu0
      %v797 = vpop.f32.mrf.mxu0
      %v798 = vadd.f32 %v637, %v797
      %v799 = vpop.f32.mrf.mxu0
      %800 = vmatprep.mubr.bf16.mxu0 0
      %801 = vmatmul.mubr.bf16.gmra.mxu0 %v686
      %v802 = vpop.f32.mrf.mxu0
      %v803 = vadd.f32 %v637, %v802
      %v804 = vpop.f32.mrf.mxu0
      %v805 = vpop.f32.mrf.mxu0
      %v806 = vadd.f32 %v637, %v805
      %v807 = vpop.f32.mrf.mxu0
      %808 = vmatprep.mubr.bf16.mxu0 0
      %809 = vmatmul.mubr.bf16.gmra.mxu0 %v689
      %v810 = vpop.f32.mrf.mxu0
      %v811 = vadd.f32 %v637, %v810
      %v812 = vpop.f32.mrf.mxu0
      %v813 = vpop.f32.mrf.mxu0
      %v814 = vadd.f32 %v637, %v813
      %v815 = vpop.f32.mrf.mxu0
      %816 = vmatprep.mubr.bf16.mxu0 0
      %817 = vmatmul.mubr.bf16.gmra.mxu0 %v692
      %v818 = vpop.f32.mrf.mxu0
      %v819 = vadd.f32 %v637, %v818
      %v820 = vpop.f32.mrf.mxu0
      %v821 = vpop.f32.mrf.mxu0
      %v822 = vadd.f32 %v637, %v821
      %v823 = vpop.f32.mrf.mxu0
      %824 = vmatprep.mubr.bf16.mxu0 0
      %825 = vmatmul.mubr.bf16.gmra.mxu0 %v695
      %v826 = vpop.f32.mrf.mxu0
      %v827 = vadd.f32 %v637, %v826
      %v828 = vpop.f32.mrf.mxu0
      %v829 = vpop.f32.mrf.mxu0
      %v830 = vadd.f32 %v637, %v829
      %v831 = vpop.f32.mrf.mxu0
      %832 = vmatprep.mubr.bf16.mxu0 0
      %833 = vmatmul.mubr.bf16.gmra.mxu0 %v698
      %v834 = vpop.f32.mrf.mxu0
      %v835 = vadd.f32 %v637, %v834
      %v836 = vpop.f32.mrf.mxu0
      %v837 = vpop.f32.mrf.mxu0
      %v838 = vadd.f32 %v637, %v837
      %v839 = vpop.f32.mrf.mxu0
      %840 = vmatprep.mubr.bf16.mxu0 0
      %841 = vmatmul.mubr.bf16.gmra.mxu0 %v701
      %v842 = vpop.f32.mrf.mxu0
      %v843 = vadd.f32 %v637, %v842
      %v844 = vpop.f32.mrf.mxu0
      %v845 = vpop.f32.mrf.mxu0
      %v846 = vadd.f32 %v637, %v845
      %v847 = vpop.f32.mrf.mxu0
      %848 = vmatprep.mubr.bf16.mxu0 0
      %849 = vmatmul.mubr.bf16.gmra.mxu0 %v704
      %v850 = vpop.f32.mrf.mxu0
      %v851 = vadd.f32 %v637, %v850
      %v852 = vpop.f32.mrf.mxu0
      %v853 = vpop.f32.mrf.mxu0
      %v854 = vadd.f32 %v637, %v853
      %v855 = vpop.f32.mrf.mxu0
      %856 = vmatprep.mubr.bf16.mxu0 0
      %857 = vmatmul.mubr.bf16.gmra.mxu0 %v707
      %v858 = vpop.f32.mrf.mxu0
      %v859 = vadd.f32 %v637, %v858
      %v860 = vpop.f32.mrf.mxu0
      %v861 = vpop.f32.mrf.mxu0
      %v862 = vadd.f32 %v637, %v861
      %v863 = vpop.f32.mrf.mxu0
      %864 = vmatprep.mubr.bf16.mxu0 0
      %865 = vmatmul.mubr.bf16.gmra.mxu0 %v710
      %v866 = vpop.f32.mrf.mxu0
      %v867 = vadd.f32 %v637, %v866
      %v868 = vpop.f32.mrf.mxu0
      %v869 = vpop.f32.mrf.mxu0
      %v870 = vadd.f32 %v637, %v869
      %v871 = vpop.f32.mrf.mxu0
      %872 = vdwg.mxu0
      %v873 = vmax.f32 %v747, 0.0
      %v874 = vmax.f32 %v750, 0.0
      %v875 = vmax.f32 %v755, 0.0
      %v876 = vmax.f32 %v758, 0.0
      %v877 = vmax.f32 %v763, 0.0
      %v878 = vmax.f32 %v766, 0.0
      %v879 = vmax.f32 %v771, 0.0
      %v880 = vmax.f32 %v774, 0.0
      %v881 = vmax.f32 %v779, 0.0
      %v882 = vmax.f32 %v782, 0.0
      %v883 = vmax.f32 %v787, 0.0
      %v884 = vmax.f32 %v790, 0.0
      %v885 = vmax.f32 %v795, 0.0
      %v886 = vmax.f32 %v798, 0.0
      %v887 = vmax.f32 %v803, 0.0
      %v888 = vmax.f32 %v806, 0.0
      %v889 = vmax.f32 %v811, 0.0
      %v890 = vmax.f32 %v814, 0.0
      %v891 = vmax.f32 %v819, 0.0
      %v892 = vmax.f32 %v822, 0.0
      %v893 = vmax.f32 %v827, 0.0
      %v894 = vmax.f32 %v830, 0.0
      %v895 = vmax.f32 %v835, 0.0
      %v896 = vmax.f32 %v838, 0.0
      %v897 = vmax.f32 %v843, 0.0
      %v898 = vmax.f32 %v846, 0.0
      %v899 = vmax.f32 %v851, 0.0
      %v900 = vmax.f32 %v854, 0.0
      %v901 = vmax.f32 %v859, 0.0
      %v902 = vmax.f32 %v862, 0.0
      %v903 = vmax.f32 %v867, 0.0
      %v904 = vmax.f32 %v870, 0.0
      %v905 = vpack.c.bf16 %v874, %v873
      %v906 = vpack.c.bf16 %v876, %v875
      %v907 = vpack.c.bf16 %v878, %v877
      %v908 = vpack.c.bf16 %v880, %v879
      %v909 = vpack.c.bf16 %v882, %v881
      %v910 = vpack.c.bf16 %v884, %v883
      %v911 = vpack.c.bf16 %v886, %v885
      %v912 = vpack.c.bf16 %v888, %v887
      %v913 = vpack.c.bf16 %v890, %v889
      %v914 = vpack.c.bf16 %v892, %v891
      %v915 = vpack.c.bf16 %v894, %v893
      %v916 = vpack.c.bf16 %v896, %v895
      %v917 = vpack.c.bf16 %v898, %v897
      %v918 = vpack.c.bf16 %v900, %v899
      %v919 = vpack.c.bf16 %v902, %v901
      %v920 = vpack.c.bf16 %v904, %v903
      %v921 = vld [vmem:[%s5] sm:$0xff]
      %v922 = vld [vmem:[%s5 + $0x8] sm:$0xff]
      %v923 = vld [vmem:[%s5 + $0x10] sm:$0xff]
      %v924 = vld [vmem:[%s5 + $0x18] sm:$0xff]
      %v925 = vld [vmem:[%s5 + $0x20] sm:$0xff]
      %v926 = vld [vmem:[%s5 + $0x28] sm:$0xff]
      %v927 = vld [vmem:[%s5 + $0x30] sm:$0xff]
      %v928 = vld [vmem:[%s5 + $0x38] sm:$0xff]
      %v929 = vld [vmem:[%s5 + $0x40] sm:$0xff]
      %v930 = vld [vmem:[%s5 + $0x48] sm:$0xff]
      %v931 = vld [vmem:[%s5 + $0x50] sm:$0xff]
      %v932 = vld [vmem:[%s5 + $0x58] sm:$0xff]
      %v933 = vld [vmem:[%s5 + $0x60] sm:$0xff]
      %v934 = vld [vmem:[%s5 + $0x68] sm:$0xff]
      %v935 = vld [vmem:[%s5 + $0x70] sm:$0xff]
      %v936 = vld [vmem:[%s5 + $0x78] sm:$0xff]
      %v937 = vld [vmem:[%s5 + $0x80] sm:$0xff]
      %v938 = vld [vmem:[%s5 + $0x88] sm:$0xff]
      %v939 = vld [vmem:[%s5 + $0x90] sm:$0xff]
      %v940 = vld [vmem:[%s5 + $0x98] sm:$0xff]
      %v941 = vld [vmem:[%s5 + $0xa0] sm:$0xff]
      %v942 = vld [vmem:[%s5 + $0xa8] sm:$0xff]
      %v943 = vld [vmem:[%s5 + $0xb0] sm:$0xff]
      %v944 = vld [vmem:[%s5 + $0xb8] sm:$0xff]
      %v945 = vld [vmem:[%s5 + $0xc0] sm:$0xff]
      %v946 = vld [vmem:[%s5 + $0xc8] sm:$0xff]
      %v947 = vld [vmem:[%s5 + $0xd0] sm:$0xff]
      %v948 = vld [vmem:[%s5 + $0xd8] sm:$0xff]
      %v949 = vld [vmem:[%s5 + $0xe0] sm:$0xff]
      %v950 = vld [vmem:[%s5 + $0xe8] sm:$0xff]
      %v951 = vld [vmem:[%s5 + $0xf0] sm:$0xff]
      %v952 = vld [vmem:[%s5 + $0xf8] sm:$0xff]
      %v953 = vld [vmem:[%s5 + $0x100] sm:$0xff]
      %v954 = vld [vmem:[%s5 + $0x108] sm:$0xff]
      %v955 = vld [vmem:[%s5 + $0x110] sm:$0xff]
      %v956 = vld [vmem:[%s5 + $0x118] sm:$0xff]
      %v957 = vld [vmem:[%s5 + $0x120] sm:$0xff]
      %v958 = vld [vmem:[%s5 + $0x128] sm:$0xff]
      %v959 = vld [vmem:[%s5 + $0x130] sm:$0xff]
      %v960 = vld [vmem:[%s5 + $0x138] sm:$0xff]
      %v961 = vld [vmem:[%s5 + $0x140] sm:$0xff]
      %v962 = vld [vmem:[%s5 + $0x148] sm:$0xff]
      %v963 = vld [vmem:[%s5 + $0x150] sm:$0xff]
      %v964 = vld [vmem:[%s5 + $0x158] sm:$0xff]
      %v965 = vld [vmem:[%s5 + $0x160] sm:$0xff]
      %v966 = vld [vmem:[%s5 + $0x168] sm:$0xff]
      %v967 = vld [vmem:[%s5 + $0x170] sm:$0xff]
      %v968 = vld [vmem:[%s5 + $0x178] sm:$0xff]
      %v969 = vld [vmem:[%s5 + $0x180] sm:$0xff]
      %v970 = vld [vmem:[%s5 + $0x188] sm:$0xff]
      %v971 = vld [vmem:[%s5 + $0x190] sm:$0xff]
      %v972 = vld [vmem:[%s5 + $0x198] sm:$0xff]
      %v973 = vld [vmem:[%s5 + $0x1a0] sm:$0xff]
      %v974 = vld [vmem:[%s5 + $0x1a8] sm:$0xff]
      %v975 = vld [vmem:[%s5 + $0x1b0] sm:$0xff]
      %v976 = vld [vmem:[%s5 + $0x1b8] sm:$0xff]
      %v977 = vld [vmem:[%s5 + $0x1c0] sm:$0xff]
      %v978 = vld [vmem:[%s5 + $0x1c8] sm:$0xff]
      %v979 = vld [vmem:[%s5 + $0x1d0] sm:$0xff]
      %v980 = vld [vmem:[%s5 + $0x1d8] sm:$0xff]
      %v981 = vld [vmem:[%s5 + $0x1e0] sm:$0xff]
      %v982 = vld [vmem:[%s5 + $0x1e8] sm:$0xff]
      %v983 = vld [vmem:[%s5 + $0x1f0] sm:$0xff]
      %v984 = vld [vmem:[%s5 + $0x1f8] sm:$0xff]
      %v985 = vld [vmem:[%s6] sm:$0xff]
      %v987 = vlaneseq
      %v988 = vshrl.u32 %v987, 7
      %v989 = vsub.s32 0, %v988
      %v990 = vrot.slane %v985, %v989
      %v991 = vlaneseq
      %v992 = vshrl.u32 %v991, 7
      %v993 = vsub.s32 1, %v992
      %v994 = vrot.slane %v985, %v993
      %v995 = vlaneseq
      %v996 = vshrl.u32 %v995, 7
      %v997 = vsub.s32 2, %v996
      %v998 = vrot.slane %v985, %v997
      %v999 = vlaneseq
      %v1000 = vshrl.u32 %v999, 7
      %v1001 = vsub.s32 3, %v1000
      %v1002 = vrot.slane %v985, %v1001
      %v1003 = vlaneseq
      %v1004 = vshrl.u32 %v1003, 7
      %v1005 = vsub.s32 4, %v1004
      %v1006 = vrot.slane %v985, %v1005
      %v1007 = vlaneseq
      %v1008 = vshrl.u32 %v1007, 7
      %v1009 = vsub.s32 5, %v1008
      %v1010 = vrot.slane %v985, %v1009
      %v1011 = vlaneseq
      %v1012 = vshrl.u32 %v1011, 7
      %v1013 = vsub.s32 6, %v1012
      %v1014 = vrot.slane %v985, %v1013
      %v1015 = vlaneseq
      %v1016 = vshrl.u32 %v1015, 7
      %v1017 = vsub.s32 7, %v1016
      %v1018 = vrot.slane %v985, %v1017
      %v1091 = vunpack.c.l.b16 %v921
      %v1092 = vunpack.c.h.b16 %v921
      %v1093 = vunpack.c.l.b16 %v922
      %v1094 = vunpack.c.h.b16 %v922
      %v1095 = vunpack.c.l.b16 %v923
      %v1096 = vunpack.c.h.b16 %v923
      %v1097 = vunpack.c.l.b16 %v924
      %v1098 = vunpack.c.h.b16 %v924
      %v1099 = vunpack.c.l.b16 %v925
      %v1100 = vunpack.c.h.b16 %v925
      %v1101 = vunpack.c.l.b16 %v926
      %v1102 = vunpack.c.h.b16 %v926
      %v1103 = vunpack.c.l.b16 %v927
      %v1104 = vunpack.c.h.b16 %v927
      %v1105 = vunpack.c.l.b16 %v928
      %v1106 = vunpack.c.h.b16 %v928
      %v1107 = vunpack.c.l.b16 %v929
      %v1108 = vunpack.c.h.b16 %v929
      %v1109 = vunpack.c.l.b16 %v930
      %v1110 = vunpack.c.h.b16 %v930
      %v1111 = vunpack.c.l.b16 %v931
      %v1112 = vunpack.c.h.b16 %v931
      %v1113 = vunpack.c.l.b16 %v932
      %v1114 = vunpack.c.h.b16 %v932
      %v1115 = vunpack.c.l.b16 %v933
      %v1116 = vunpack.c.h.b16 %v933
      %v1117 = vunpack.c.l.b16 %v934
      %v1118 = vunpack.c.h.b16 %v934
      %v1119 = vunpack.c.l.b16 %v935
      %v1120 = vunpack.c.h.b16 %v935
      %v1121 = vunpack.c.l.b16 %v936
      %v1122 = vunpack.c.h.b16 %v936
      %v1123 = vunpack.c.l.b16 %v937
      %v1124 = vunpack.c.h.b16 %v937
      %v1125 = vunpack.c.l.b16 %v938
      %v1126 = vunpack.c.h.b16 %v938
      %v1127 = vunpack.c.l.b16 %v939
      %v1128 = vunpack.c.h.b16 %v939
      %v1129 = vunpack.c.l.b16 %v940
      %v1130 = vunpack.c.h.b16 %v940
      %v1131 = vunpack.c.l.b16 %v941
      %v1132 = vunpack.c.h.b16 %v941
      %v1133 = vunpack.c.l.b16 %v942
      %v1134 = vunpack.c.h.b16 %v942
      %v1135 = vunpack.c.l.b16 %v943
      %v1136 = vunpack.c.h.b16 %v943
      %v1137 = vunpack.c.l.b16 %v944
      %v1138 = vunpack.c.h.b16 %v944
      %v1139 = vunpack.c.l.b16 %v945
      %v1140 = vunpack.c.h.b16 %v945
      %v1141 = vunpack.c.l.b16 %v946
      %v1142 = vunpack.c.h.b16 %v946
      %v1143 = vunpack.c.l.b16 %v947
      %v1144 = vunpack.c.h.b16 %v947
      %v1145 = vunpack.c.l.b16 %v948
      %v1146 = vunpack.c.h.b16 %v948
      %v1147 = vunpack.c.l.b16 %v949
      %v1148 = vunpack.c.h.b16 %v949
      %v1149 = vunpack.c.l.b16 %v950
      %v1150 = vunpack.c.h.b16 %v950
      %v1151 = vunpack.c.l.b16 %v951
      %v1152 = vunpack.c.h.b16 %v951
      %v1153 = vunpack.c.l.b16 %v952
      %v1154 = vunpack.c.h.b16 %v952
      %v1155 = vunpack.c.l.b16 %v953
      %v1156 = vunpack.c.h.b16 %v953
      %v1157 = vunpack.c.l.b16 %v954
      %v1158 = vunpack.c.h.b16 %v954
      %v1159 = vunpack.c.l.b16 %v955
      %v1160 = vunpack.c.h.b16 %v955
      %v1161 = vunpack.c.l.b16 %v956
      %v1162 = vunpack.c.h.b16 %v956
      %v1163 = vunpack.c.l.b16 %v957
      %v1164 = vunpack.c.h.b16 %v957
      %v1165 = vunpack.c.l.b16 %v958
      %v1166 = vunpack.c.h.b16 %v958
      %v1167 = vunpack.c.l.b16 %v959
      %v1168 = vunpack.c.h.b16 %v959
      %v1169 = vunpack.c.l.b16 %v960
      %v1170 = vunpack.c.h.b16 %v960
      %v1171 = vunpack.c.l.b16 %v961
      %v1172 = vunpack.c.h.b16 %v961
      %v1173 = vunpack.c.l.b16 %v962
      %v1174 = vunpack.c.h.b16 %v962
      %v1175 = vunpack.c.l.b16 %v963
      %v1176 = vunpack.c.h.b16 %v963
      %v1177 = vunpack.c.l.b16 %v964
      %v1178 = vunpack.c.h.b16 %v964
      %v1179 = vunpack.c.l.b16 %v965
      %v1180 = vunpack.c.h.b16 %v965
      %v1181 = vunpack.c.l.b16 %v966
      %v1182 = vunpack.c.h.b16 %v966
      %v1183 = vunpack.c.l.b16 %v967
      %v1184 = vunpack.c.h.b16 %v967
      %v1185 = vunpack.c.l.b16 %v968
      %v1186 = vunpack.c.h.b16 %v968
      %v1187 = vunpack.c.l.b16 %v969
      %v1188 = vunpack.c.h.b16 %v969
      %v1189 = vunpack.c.l.b16 %v970
      %v1190 = vunpack.c.h.b16 %v970
      %v1191 = vunpack.c.l.b16 %v971
      %v1192 = vunpack.c.h.b16 %v971
      %v1193 = vunpack.c.l.b16 %v972
      %v1194 = vunpack.c.h.b16 %v972
      %v1195 = vunpack.c.l.b16 %v973
      %v1196 = vunpack.c.h.b16 %v973
      %v1197 = vunpack.c.l.b16 %v974
      %v1198 = vunpack.c.h.b16 %v974
      %v1199 = vunpack.c.l.b16 %v975
      %v1200 = vunpack.c.h.b16 %v975
      %v1201 = vunpack.c.l.b16 %v976
      %v1202 = vunpack.c.h.b16 %v976
      %v1203 = vunpack.c.l.b16 %v977
      %v1204 = vunpack.c.h.b16 %v977
      %v1205 = vunpack.c.l.b16 %v978
      %v1206 = vunpack.c.h.b16 %v978
      %v1207 = vunpack.c.l.b16 %v979
      %v1208 = vunpack.c.h.b16 %v979
      %v1209 = vunpack.c.l.b16 %v980
      %v1210 = vunpack.c.h.b16 %v980
      %v1211 = vunpack.c.l.b16 %v981
      %v1212 = vunpack.c.h.b16 %v981
      %v1213 = vunpack.c.l.b16 %v982
      %v1214 = vunpack.c.h.b16 %v982
      %v1215 = vunpack.c.l.b16 %v983
      %v1216 = vunpack.c.h.b16 %v983
      %v1217 = vunpack.c.l.b16 %v984
      %v1218 = vunpack.c.h.b16 %v984
      %v1219 = vpack.c.b16 %v1099, %v1091
      %v1220 = vpack.c.b16 %v1100, %v1092
      %v1221 = vpack.c.b16 %v1101, %v1093
      %v1222 = vpack.c.b16 %v1102, %v1094
      %v1223 = vpack.c.b16 %v1103, %v1095
      %v1224 = vpack.c.b16 %v1104, %v1096
      %v1225 = vpack.c.b16 %v1105, %v1097
      %v1226 = vpack.c.b16 %v1106, %v1098
      %v1227 = vpack.c.b16 %v1115, %v1107
      %v1228 = vpack.c.b16 %v1116, %v1108
      %v1229 = vpack.c.b16 %v1117, %v1109
      %v1230 = vpack.c.b16 %v1118, %v1110
      %v1231 = vpack.c.b16 %v1119, %v1111
      %v1232 = vpack.c.b16 %v1120, %v1112
      %v1233 = vpack.c.b16 %v1121, %v1113
      %v1234 = vpack.c.b16 %v1122, %v1114
      %v1235 = vpack.c.b16 %v1131, %v1123
      %v1236 = vpack.c.b16 %v1132, %v1124
      %v1237 = vpack.c.b16 %v1133, %v1125
      %v1238 = vpack.c.b16 %v1134, %v1126
      %v1239 = vpack.c.b16 %v1135, %v1127
      %v1240 = vpack.c.b16 %v1136, %v1128
      %v1241 = vpack.c.b16 %v1137, %v1129
      %v1242 = vpack.c.b16 %v1138, %v1130
      %v1243 = vpack.c.b16 %v1147, %v1139
      %v1244 = vpack.c.b16 %v1148, %v1140
      %v1245 = vpack.c.b16 %v1149, %v1141
      %v1246 = vpack.c.b16 %v1150, %v1142
      %v1247 = vpack.c.b16 %v1151, %v1143
      %v1248 = vpack.c.b16 %v1152, %v1144
      %v1249 = vpack.c.b16 %v1153, %v1145
      %v1250 = vpack.c.b16 %v1154, %v1146
      %v1251 = vpack.c.b16 %v1163, %v1155
      %v1252 = vpack.c.b16 %v1164, %v1156
      %v1253 = vpack.c.b16 %v1165, %v1157
      %v1254 = vpack.c.b16 %v1166, %v1158
      %v1255 = vpack.c.b16 %v1167, %v1159
      %v1256 = vpack.c.b16 %v1168, %v1160
      %v1257 = vpack.c.b16 %v1169, %v1161
      %v1258 = vpack.c.b16 %v1170, %v1162
      %v1259 = vpack.c.b16 %v1179, %v1171
      %v1260 = vpack.c.b16 %v1180, %v1172
      %v1261 = vpack.c.b16 %v1181, %v1173
      %v1262 = vpack.c.b16 %v1182, %v1174
      %v1263 = vpack.c.b16 %v1183, %v1175
      %v1264 = vpack.c.b16 %v1184, %v1176
      %v1265 = vpack.c.b16 %v1185, %v1177
      %v1266 = vpack.c.b16 %v1186, %v1178
      %v1267 = vpack.c.b16 %v1195, %v1187
      %v1268 = vpack.c.b16 %v1196, %v1188
      %v1269 = vpack.c.b16 %v1197, %v1189
      %v1270 = vpack.c.b16 %v1198, %v1190
      %v1271 = vpack.c.b16 %v1199, %v1191
      %v1272 = vpack.c.b16 %v1200, %v1192
      %v1273 = vpack.c.b16 %v1201, %v1193
      %v1274 = vpack.c.b16 %v1202, %v1194
      %v1275 = vpack.c.b16 %v1211, %v1203
      %v1276 = vpack.c.b16 %v1212, %v1204
      %v1277 = vpack.c.b16 %v1213, %v1205
      %v1278 = vpack.c.b16 %v1214, %v1206
      %v1279 = vpack.c.b16 %v1215, %v1207
      %v1280 = vpack.c.b16 %v1216, %v1208
      %v1281 = vpack.c.b16 %v1217, %v1209
      %v1282 = vpack.c.b16 %v1218, %v1210
      %1347 = vmatprep.subr.bf16.mxu0 %v1276
      %1348 = vmatpush1.bf16.msra.mxu0 %v1275
      %1349 = vmatprep.subr.bf16.mxu0 %v1268
      %1350 = vmatpush1.bf16.msra.mxu0 %v1267
      %1351 = vmatprep.subr.bf16.mxu0 %v1260
      %1352 = vmatpush1.bf16.msra.mxu0 %v1259
      %1353 = vmatprep.subr.bf16.mxu0 %v1252
      %1354 = vmatpush1.bf16.msra.mxu0 %v1251
      %1355 = vmatprep.subr.bf16.mxu0 %v1244
      %1356 = vmatpush1.bf16.msra.mxu0 %v1243
      %1357 = vmatprep.subr.bf16.mxu0 %v1236
      %1358 = vmatpush1.bf16.msra.mxu0 %v1235
      %1359 = vmatprep.subr.bf16.mxu0 %v1228
      %1360 = vmatpush1.bf16.msra.mxu0 %v1227
      %1361 = vmatprep.subr.bf16.mxu0 %v1220
      %1362 = vmatpush1.bf16.msra.mxu0 %v1219
      %1363 = vmatprep.subr.bf16.mxu0 0
      %1364 = vmatpush2.bf16.msra.mxu0 0
      %1365 = vmatprep.subr.bf16.mxu0 0
      %1366 = vmatpush2.bf16.msra.mxu0 0
      %1367 = vmatprep.subr.bf16.mxu0 0
      %1368 = vmatpush2.bf16.msra.mxu0 0
      %1369 = vmatprep.subr.bf16.mxu0 0
      %1370 = vmatpush2.bf16.msra.mxu0 0
      %1371 = vmatprep.subr.bf16.mxu0 0
      %1372 = vmatpush2.bf16.msra.mxu0 0
      %1373 = vmatprep.subr.bf16.mxu0 0
      %1374 = vmatpush2.bf16.msra.mxu0 0
      %1375 = vmatprep.subr.bf16.mxu0 0
      %1376 = vmatpush2.bf16.msra.mxu0 0
      %1377 = vmatprep.subr.bf16.mxu0 0
      %1378 = vmatpush2.bf16.msra.mxu0 0
      %1379 = vmatprep.mubr.bf16.mxu0 0
      %1380 = vmatmul.mubr.bf16.gmra.mxu0 %v905
      %v1381 = vpop.f32.mrf.mxu0
      %v1382 = vadd.f32 %v990, %v1381
      %v1383 = vpop.f32.mrf.mxu0
      %v1384 = vadd.f32 %v994, %v1383
      %v1385 = vpop.f32.mrf.mxu0
      %v1386 = vadd.f32 %v990, %v1385
      %v1387 = vpop.f32.mrf.mxu0
      %v1388 = vadd.f32 %v994, %v1387
      %1389 = vmatprep.mubr.bf16.mxu0 0
      %1390 = vmatmul.mubr.bf16.gmra.mxu0 %v906
      %v1391 = vpop.f32.mrf.mxu0
      %v1392 = vadd.f32 %v990, %v1391
      %v1393 = vpop.f32.mrf.mxu0
      %v1394 = vadd.f32 %v994, %v1393
      %v1395 = vpop.f32.mrf.mxu0
      %v1396 = vadd.f32 %v990, %v1395
      %v1397 = vpop.f32.mrf.mxu0
      %v1398 = vadd.f32 %v994, %v1397
      %1399 = vmatprep.mubr.bf16.mxu0 0
      %1400 = vmatmul.mubr.bf16.gmra.mxu0 %v907
      %v1401 = vpop.f32.mrf.mxu0
      %v1402 = vadd.f32 %v990, %v1401
      %v1403 = vpop.f32.mrf.mxu0
      %v1404 = vadd.f32 %v994, %v1403
      %v1405 = vpop.f32.mrf.mxu0
      %v1406 = vadd.f32 %v990, %v1405
      %v1407 = vpop.f32.mrf.mxu0
      %v1408 = vadd.f32 %v994, %v1407
      %1409 = vmatprep.mubr.bf16.mxu0 0
      %1410 = vmatmul.mubr.bf16.gmra.mxu0 %v908
      %v1411 = vpop.f32.mrf.mxu0
      %v1412 = vadd.f32 %v990, %v1411
      %v1413 = vpop.f32.mrf.mxu0
      %v1414 = vadd.f32 %v994, %v1413
      %v1415 = vpop.f32.mrf.mxu0
      %v1416 = vadd.f32 %v990, %v1415
      %v1417 = vpop.f32.mrf.mxu0
      %v1418 = vadd.f32 %v994, %v1417
      %1419 = vmatprep.mubr.bf16.mxu0 0
      %1420 = vmatmul.mubr.bf16.gmra.mxu0 %v909
      %v1421 = vpop.f32.mrf.mxu0
      %v1422 = vadd.f32 %v990, %v1421
      %v1423 = vpop.f32.mrf.mxu0
      %v1424 = vadd.f32 %v994, %v1423
      %v1425 = vpop.f32.mrf.mxu0
      %v1426 = vadd.f32 %v990, %v1425
      %v1427 = vpop.f32.mrf.mxu0
      %v1428 = vadd.f32 %v994, %v1427
      %1429 = vmatprep.mubr.bf16.mxu0 0
      %1430 = vmatmul.mubr.bf16.gmra.mxu0 %v910
      %v1431 = vpop.f32.mrf.mxu0
      %v1432 = vadd.f32 %v990, %v1431
      %v1433 = vpop.f32.mrf.mxu0
      %v1434 = vadd.f32 %v994, %v1433
      %v1435 = vpop.f32.mrf.mxu0
      %v1436 = vadd.f32 %v990, %v1435
      %v1437 = vpop.f32.mrf.mxu0
      %v1438 = vadd.f32 %v994, %v1437
      %1439 = vmatprep.mubr.bf16.mxu0 0
      %1440 = vmatmul.mubr.bf16.gmra.mxu0 %v911
      %v1441 = vpop.f32.mrf.mxu0
      %v1442 = vadd.f32 %v990, %v1441
      %v1443 = vpop.f32.mrf.mxu0
      %v1444 = vadd.f32 %v994, %v1443
      %v1445 = vpop.f32.mrf.mxu0
      %v1446 = vadd.f32 %v990, %v1445
      %v1447 = vpop.f32.mrf.mxu0
      %v1448 = vadd.f32 %v994, %v1447
      %1449 = vmatprep.mubr.bf16.mxu0 0
      %1450 = vmatmul.mubr.bf16.gmra.mxu0 %v912
      %v1451 = vpop.f32.mrf.mxu0
      %v1452 = vadd.f32 %v990, %v1451
      %v1453 = vpop.f32.mrf.mxu0
      %v1454 = vadd.f32 %v994, %v1453
      %v1455 = vpop.f32.mrf.mxu0
      %v1456 = vadd.f32 %v990, %v1455
      %v1457 = vpop.f32.mrf.mxu0
      %v1458 = vadd.f32 %v994, %v1457
      %1459 = vmatprep.mubr.bf16.mxu0 0
      %1460 = vmatmul.mubr.bf16.gmra.mxu0 %v913
      %v1461 = vpop.f32.mrf.mxu0
      %v1462 = vadd.f32 %v990, %v1461
      %v1463 = vpop.f32.mrf.mxu0
      %v1464 = vadd.f32 %v994, %v1463
      %v1465 = vpop.f32.mrf.mxu0
      %v1466 = vadd.f32 %v990, %v1465
      %v1467 = vpop.f32.mrf.mxu0
      %v1468 = vadd.f32 %v994, %v1467
      %1469 = vmatprep.mubr.bf16.mxu0 0
      %1470 = vmatmul.mubr.bf16.gmra.mxu0 %v914
      %v1471 = vpop.f32.mrf.mxu0
      %v1472 = vadd.f32 %v990, %v1471
      %v1473 = vpop.f32.mrf.mxu0
      %v1474 = vadd.f32 %v994, %v1473
      %v1475 = vpop.f32.mrf.mxu0
      %v1476 = vadd.f32 %v990, %v1475
      %v1477 = vpop.f32.mrf.mxu0
      %v1478 = vadd.f32 %v994, %v1477
      %1479 = vmatprep.mubr.bf16.mxu0 0
      %1480 = vmatmul.mubr.bf16.gmra.mxu0 %v915
      %v1481 = vpop.f32.mrf.mxu0
      %v1482 = vadd.f32 %v990, %v1481
      %v1483 = vpop.f32.mrf.mxu0
      %v1484 = vadd.f32 %v994, %v1483
      %v1485 = vpop.f32.mrf.mxu0
      %v1486 = vadd.f32 %v990, %v1485
      %v1487 = vpop.f32.mrf.mxu0
      %v1488 = vadd.f32 %v994, %v1487
      %1489 = vmatprep.mubr.bf16.mxu0 0
      %1490 = vmatmul.mubr.bf16.gmra.mxu0 %v916
      %v1491 = vpop.f32.mrf.mxu0
      %v1492 = vadd.f32 %v990, %v1491
      %v1493 = vpop.f32.mrf.mxu0
      %v1494 = vadd.f32 %v994, %v1493
      %v1495 = vpop.f32.mrf.mxu0
      %v1496 = vadd.f32 %v990, %v1495
      %v1497 = vpop.f32.mrf.mxu0
      %v1498 = vadd.f32 %v994, %v1497
      %1499 = vmatprep.mubr.bf16.mxu0 0
      %1500 = vmatmul.mubr.bf16.gmra.mxu0 %v917
      %v1501 = vpop.f32.mrf.mxu0
      %v1502 = vadd.f32 %v990, %v1501
      %v1503 = vpop.f32.mrf.mxu0
      %v1504 = vadd.f32 %v994, %v1503
      %v1505 = vpop.f32.mrf.mxu0
      %v1506 = vadd.f32 %v990, %v1505
      %v1507 = vpop.f32.mrf.mxu0
      %v1508 = vadd.f32 %v994, %v1507
      %1509 = vmatprep.mubr.bf16.mxu0 0
      %1510 = vmatmul.mubr.bf16.gmra.mxu0 %v918
      %v1511 = vpop.f32.mrf.mxu0
      %v1512 = vadd.f32 %v990, %v1511
      %v1513 = vpop.f32.mrf.mxu0
      %v1514 = vadd.f32 %v994, %v1513
      %v1515 = vpop.f32.mrf.mxu0
      %v1516 = vadd.f32 %v990, %v1515
      %v1517 = vpop.f32.mrf.mxu0
      %v1518 = vadd.f32 %v994, %v1517
      %1519 = vmatprep.mubr.bf16.mxu0 0
      %1520 = vmatmul.mubr.bf16.gmra.mxu0 %v919
      %v1521 = vpop.f32.mrf.mxu0
      %v1522 = vadd.f32 %v990, %v1521
      %v1523 = vpop.f32.mrf.mxu0
      %v1524 = vadd.f32 %v994, %v1523
      %v1525 = vpop.f32.mrf.mxu0
      %v1526 = vadd.f32 %v990, %v1525
      %v1527 = vpop.f32.mrf.mxu0
      %v1528 = vadd.f32 %v994, %v1527
      %1529 = vmatprep.mubr.bf16.mxu0 0
      %1530 = vmatmul.mubr.bf16.gmra.mxu0 %v920
      %v1531 = vpop.f32.mrf.mxu0
      %v1532 = vadd.f32 %v990, %v1531
      %v1533 = vpop.f32.mrf.mxu0
      %v1534 = vadd.f32 %v994, %v1533
      %v1535 = vpop.f32.mrf.mxu0
      %v1536 = vadd.f32 %v990, %v1535
      %v1537 = vpop.f32.mrf.mxu0
      %v1538 = vadd.f32 %v994, %v1537
      %1539 = vdwg.mxu0
      %1540 = vmatprep.subr.bf16.mxu0 %v1278
      %1541 = vmatpush1.bf16.msra.mxu0 %v1277
      %1542 = vmatprep.subr.bf16.mxu0 %v1270
      %1543 = vmatpush1.bf16.msra.mxu0 %v1269
      %1544 = vmatprep.subr.bf16.mxu0 %v1262
      %1545 = vmatpush1.bf16.msra.mxu0 %v1261
      %1546 = vmatprep.subr.bf16.mxu0 %v1254
      %1547 = vmatpush1.bf16.msra.mxu0 %v1253
      %1548 = vmatprep.subr.bf16.mxu0 %v1246
      %1549 = vmatpush1.bf16.msra.mxu0 %v1245
      %1550 = vmatprep.subr.bf16.mxu0 %v1238
      %1551 = vmatpush1.bf16.msra.mxu0 %v1237
      %1552 = vmatprep.subr.bf16.mxu0 %v1230
      %1553 = vmatpush1.bf16.msra.mxu0 %v1229
      %1554 = vmatprep.subr.bf16.mxu0 %v1222
      %1555 = vmatpush1.bf16.msra.mxu0 %v1221
      %1556 = vmatprep.subr.bf16.mxu0 0
      %1557 = vmatpush2.bf16.msra.mxu0 0
      %1558 = vmatprep.subr.bf16.mxu0 0
      %1559 = vmatpush2.bf16.msra.mxu0 0
      %1560 = vmatprep.subr.bf16.mxu0 0
      %1561 = vmatpush2.bf16.msra.mxu0 0
      %1562 = vmatprep.subr.bf16.mxu0 0
      %1563 = vmatpush2.bf16.msra.mxu0 0
      %1564 = vmatprep.subr.bf16.mxu0 0
      %1565 = vmatpush2.bf16.msra.mxu0 0
      %1566 = vmatprep.subr.bf16.mxu0 0
      %1567 = vmatpush2.bf16.msra.mxu0 0
      %1568 = vmatprep.subr.bf16.mxu0 0
      %1569 = vmatpush2.bf16.msra.mxu0 0
      %1570 = vmatprep.subr.bf16.mxu0 0
      %1571 = vmatpush2.bf16.msra.mxu0 0
      %1572 = vmatprep.mubr.bf16.mxu0 0
      %1573 = vmatmul.mubr.bf16.gmra.mxu0 %v905
      %v1574 = vpop.f32.mrf.mxu0
      %v1575 = vadd.f32 %v998, %v1574
      %v1576 = vpop.f32.mrf.mxu0
      %v1577 = vadd.f32 %v1002, %v1576
      %v1578 = vpop.f32.mrf.mxu0
      %v1579 = vadd.f32 %v998, %v1578
      %v1580 = vpop.f32.mrf.mxu0
      %v1581 = vadd.f32 %v1002, %v1580
      %1582 = vmatprep.mubr.bf16.mxu0 0
      %1583 = vmatmul.mubr.bf16.gmra.mxu0 %v906
      %v1584 = vpop.f32.mrf.mxu0
      %v1585 = vadd.f32 %v998, %v1584
      %v1586 = vpop.f32.mrf.mxu0
      %v1587 = vadd.f32 %v1002, %v1586
      %v1588 = vpop.f32.mrf.mxu0
      %v1589 = vadd.f32 %v998, %v1588
      %v1590 = vpop.f32.mrf.mxu0
      %v1591 = vadd.f32 %v1002, %v1590
      %1592 = vmatprep.mubr.bf16.mxu0 0
      %1593 = vmatmul.mubr.bf16.gmra.mxu0 %v907
      %v1594 = vpop.f32.mrf.mxu0
      %v1595 = vadd.f32 %v998, %v1594
      %v1596 = vpop.f32.mrf.mxu0
      %v1597 = vadd.f32 %v1002, %v1596
      %v1598 = vpop.f32.mrf.mxu0
      %v1599 = vadd.f32 %v998, %v1598
      %v1600 = vpop.f32.mrf.mxu0
      %v1601 = vadd.f32 %v1002, %v1600
      %1602 = vmatprep.mubr.bf16.mxu0 0
      %1603 = vmatmul.mubr.bf16.gmra.mxu0 %v908
      %v1604 = vpop.f32.mrf.mxu0
      %v1605 = vadd.f32 %v998, %v1604
      %v1606 = vpop.f32.mrf.mxu0
      %v1607 = vadd.f32 %v1002, %v1606
      %v1608 = vpop.f32.mrf.mxu0
      %v1609 = vadd.f32 %v998, %v1608
      %v1610 = vpop.f32.mrf.mxu0
      %v1611 = vadd.f32 %v1002, %v1610
      %1612 = vmatprep.mubr.bf16.mxu0 0
      %1613 = vmatmul.mubr.bf16.gmra.mxu0 %v909
      %v1614 = vpop.f32.mrf.mxu0
      %v1615 = vadd.f32 %v998, %v1614
      %v1616 = vpop.f32.mrf.mxu0
      %v1617 = vadd.f32 %v1002, %v1616
      %v1618 = vpop.f32.mrf.mxu0
      %v1619 = vadd.f32 %v998, %v1618
      %v1620 = vpop.f32.mrf.mxu0
      %v1621 = vadd.f32 %v1002, %v1620
      %1622 = vmatprep.mubr.bf16.mxu0 0
      %1623 = vmatmul.mubr.bf16.gmra.mxu0 %v910
      %v1624 = vpop.f32.mrf.mxu0
      %v1625 = vadd.f32 %v998, %v1624
      %v1626 = vpop.f32.mrf.mxu0
      %v1627 = vadd.f32 %v1002, %v1626
      %v1628 = vpop.f32.mrf.mxu0
      %v1629 = vadd.f32 %v998, %v1628
      %v1630 = vpop.f32.mrf.mxu0
      %v1631 = vadd.f32 %v1002, %v1630
      %1632 = vmatprep.mubr.bf16.mxu0 0
      %1633 = vmatmul.mubr.bf16.gmra.mxu0 %v911
      %v1634 = vpop.f32.mrf.mxu0
      %v1635 = vadd.f32 %v998, %v1634
      %v1636 = vpop.f32.mrf.mxu0
      %v1637 = vadd.f32 %v1002, %v1636
      %v1638 = vpop.f32.mrf.mxu0
      %v1639 = vadd.f32 %v998, %v1638
      %v1640 = vpop.f32.mrf.mxu0
      %v1641 = vadd.f32 %v1002, %v1640
      %1642 = vmatprep.mubr.bf16.mxu0 0
      %1643 = vmatmul.mubr.bf16.gmra.mxu0 %v912
      %v1644 = vpop.f32.mrf.mxu0
      %v1645 = vadd.f32 %v998, %v1644
      %v1646 = vpop.f32.mrf.mxu0
      %v1647 = vadd.f32 %v1002, %v1646
      %v1648 = vpop.f32.mrf.mxu0
      %v1649 = vadd.f32 %v998, %v1648
      %v1650 = vpop.f32.mrf.mxu0
      %v1651 = vadd.f32 %v1002, %v1650
      %1652 = vmatprep.mubr.bf16.mxu0 0
      %1653 = vmatmul.mubr.bf16.gmra.mxu0 %v913
      %v1654 = vpop.f32.mrf.mxu0
      %v1655 = vadd.f32 %v998, %v1654
      %v1656 = vpop.f32.mrf.mxu0
      %v1657 = vadd.f32 %v1002, %v1656
      %v1658 = vpop.f32.mrf.mxu0
      %v1659 = vadd.f32 %v998, %v1658
      %v1660 = vpop.f32.mrf.mxu0
      %v1661 = vadd.f32 %v1002, %v1660
      %1662 = vmatprep.mubr.bf16.mxu0 0
      %1663 = vmatmul.mubr.bf16.gmra.mxu0 %v914
      %v1664 = vpop.f32.mrf.mxu0
      %v1665 = vadd.f32 %v998, %v1664
      %v1666 = vpop.f32.mrf.mxu0
      %v1667 = vadd.f32 %v1002, %v1666
      %v1668 = vpop.f32.mrf.mxu0
      %v1669 = vadd.f32 %v998, %v1668
      %v1670 = vpop.f32.mrf.mxu0
      %v1671 = vadd.f32 %v1002, %v1670
      %1672 = vmatprep.mubr.bf16.mxu0 0
      %1673 = vmatmul.mubr.bf16.gmra.mxu0 %v915
      %v1674 = vpop.f32.mrf.mxu0
      %v1675 = vadd.f32 %v998, %v1674
      %v1676 = vpop.f32.mrf.mxu0
      %v1677 = vadd.f32 %v1002, %v1676
      %v1678 = vpop.f32.mrf.mxu0
      %v1679 = vadd.f32 %v998, %v1678
      %v1680 = vpop.f32.mrf.mxu0
      %v1681 = vadd.f32 %v1002, %v1680
      %1682 = vmatprep.mubr.bf16.mxu0 0
      %1683 = vmatmul.mubr.bf16.gmra.mxu0 %v916
      %v1684 = vpop.f32.mrf.mxu0
      %v1685 = vadd.f32 %v998, %v1684
      %v1686 = vpop.f32.mrf.mxu0
      %v1687 = vadd.f32 %v1002, %v1686
      %v1688 = vpop.f32.mrf.mxu0
      %v1689 = vadd.f32 %v998, %v1688
      %v1690 = vpop.f32.mrf.mxu0
      %v1691 = vadd.f32 %v1002, %v1690
      %1692 = vmatprep.mubr.bf16.mxu0 0
      %1693 = vmatmul.mubr.bf16.gmra.mxu0 %v917
      %v1694 = vpop.f32.mrf.mxu0
      %v1695 = vadd.f32 %v998, %v1694
      %v1696 = vpop.f32.mrf.mxu0
      %v1697 = vadd.f32 %v1002, %v1696
      %v1698 = vpop.f32.mrf.mxu0
      %v1699 = vadd.f32 %v998, %v1698
      %v1700 = vpop.f32.mrf.mxu0
      %v1701 = vadd.f32 %v1002, %v1700
      %1702 = vmatprep.mubr.bf16.mxu0 0
      %1703 = vmatmul.mubr.bf16.gmra.mxu0 %v918
      %v1704 = vpop.f32.mrf.mxu0
      %v1705 = vadd.f32 %v998, %v1704
      %v1706 = vpop.f32.mrf.mxu0
      %v1707 = vadd.f32 %v1002, %v1706
      %v1708 = vpop.f32.mrf.mxu0
      %v1709 = vadd.f32 %v998, %v1708
      %v1710 = vpop.f32.mrf.mxu0
      %v1711 = vadd.f32 %v1002, %v1710
      %1712 = vmatprep.mubr.bf16.mxu0 0
      %1713 = vmatmul.mubr.bf16.gmra.mxu0 %v919
      %v1714 = vpop.f32.mrf.mxu0
      %v1715 = vadd.f32 %v998, %v1714
      %v1716 = vpop.f32.mrf.mxu0
      %v1717 = vadd.f32 %v1002, %v1716
      %v1718 = vpop.f32.mrf.mxu0
      %v1719 = vadd.f32 %v998, %v1718
      %v1720 = vpop.f32.mrf.mxu0
      %v1721 = vadd.f32 %v1002, %v1720
      %1722 = vmatprep.mubr.bf16.mxu0 0
      %1723 = vmatmul.mubr.bf16.gmra.mxu0 %v920
      %v1724 = vpop.f32.mrf.mxu0
      %v1725 = vadd.f32 %v998, %v1724
      %v1726 = vpop.f32.mrf.mxu0
      %v1727 = vadd.f32 %v1002, %v1726
      %v1728 = vpop.f32.mrf.mxu0
      %v1729 = vadd.f32 %v998, %v1728
      %v1730 = vpop.f32.mrf.mxu0
      %v1731 = vadd.f32 %v1002, %v1730
      %1732 = vdwg.mxu0
      %1733 = vmatprep.subr.bf16.mxu0 %v1280
      %1734 = vmatpush1.bf16.msra.mxu0 %v1279
      %1735 = vmatprep.subr.bf16.mxu0 %v1272
      %1736 = vmatpush1.bf16.msra.mxu0 %v1271
      %1737 = vmatprep.subr.bf16.mxu0 %v1264
      %1738 = vmatpush1.bf16.msra.mxu0 %v1263
      %1739 = vmatprep.subr.bf16.mxu0 %v1256
      %1740 = vmatpush1.bf16.msra.mxu0 %v1255
      %1741 = vmatprep.subr.bf16.mxu0 %v1248
      %1742 = vmatpush1.bf16.msra.mxu0 %v1247
      %1743 = vmatprep.subr.bf16.mxu0 %v1240
      %1744 = vmatpush1.bf16.msra.mxu0 %v1239
      %1745 = vmatprep.subr.bf16.mxu0 %v1232
      %1746 = vmatpush1.bf16.msra.mxu0 %v1231
      %1747 = vmatprep.subr.bf16.mxu0 %v1224
      %1748 = vmatpush1.bf16.msra.mxu0 %v1223
      %1749 = vmatprep.subr.bf16.mxu0 0
      %1750 = vmatpush2.bf16.msra.mxu0 0
      %1751 = vmatprep.subr.bf16.mxu0 0
      %1752 = vmatpush2.bf16.msra.mxu0 0
      %1753 = vmatprep.subr.bf16.mxu0 0
      %1754 = vmatpush2.bf16.msra.mxu0 0
      %1755 = vmatprep.subr.bf16.mxu0 0
      %1756 = vmatpush2.bf16.msra.mxu0 0
      %1757 = vmatprep.subr.bf16.mxu0 0
      %1758 = vmatpush2.bf16.msra.mxu0 0
      %1759 = vmatprep.subr.bf16.mxu0 0
      %1760 = vmatpush2.bf16.msra.mxu0 0
      %1761 = vmatprep.subr.bf16.mxu0 0
      %1762 = vmatpush2.bf16.msra.mxu0 0
      %1763 = vmatprep.subr.bf16.mxu0 0
      %1764 = vmatpush2.bf16.msra.mxu0 0
      %1765 = vmatprep.mubr.bf16.mxu0 0
      %1766 = vmatmul.mubr.bf16.gmra.mxu0 %v905
      %v1767 = vpop.f32.mrf.mxu0
      %v1768 = vadd.f32 %v1006, %v1767
      %v1769 = vpop.f32.mrf.mxu0
      %v1770 = vadd.f32 %v1010, %v1769
      %v1771 = vpop.f32.mrf.mxu0
      %v1772 = vadd.f32 %v1006, %v1771
      %v1773 = vpop.f32.mrf.mxu0
      %v1774 = vadd.f32 %v1010, %v1773
      %1775 = vmatprep.mubr.bf16.mxu0 0
      %1776 = vmatmul.mubr.bf16.gmra.mxu0 %v906
      %v1777 = vpop.f32.mrf.mxu0
      %v1778 = vadd.f32 %v1006, %v1777
      %v1779 = vpop.f32.mrf.mxu0
      %v1780 = vadd.f32 %v1010, %v1779
      %v1781 = vpop.f32.mrf.mxu0
      %v1782 = vadd.f32 %v1006, %v1781
      %v1783 = vpop.f32.mrf.mxu0
      %v1784 = vadd.f32 %v1010, %v1783
      %1785 = vmatprep.mubr.bf16.mxu0 0
      %1786 = vmatmul.mubr.bf16.gmra.mxu0 %v907
      %v1787 = vpop.f32.mrf.mxu0
      %v1788 = vadd.f32 %v1006, %v1787
      %v1789 = vpop.f32.mrf.mxu0
      %v1790 = vadd.f32 %v1010, %v1789
      %v1791 = vpop.f32.mrf.mxu0
      %v1792 = vadd.f32 %v1006, %v1791
      %v1793 = vpop.f32.mrf.mxu0
      %v1794 = vadd.f32 %v1010, %v1793
      %1795 = vmatprep.mubr.bf16.mxu0 0
      %1796 = vmatmul.mubr.bf16.gmra.mxu0 %v908
      %v1797 = vpop.f32.mrf.mxu0
      %v1798 = vadd.f32 %v1006, %v1797
      %v1799 = vpop.f32.mrf.mxu0
      %v1800 = vadd.f32 %v1010, %v1799
      %v1801 = vpop.f32.mrf.mxu0
      %v1802 = vadd.f32 %v1006, %v1801
      %v1803 = vpop.f32.mrf.mxu0
      %v1804 = vadd.f32 %v1010, %v1803
      %1805 = vmatprep.mubr.bf16.mxu0 0
      %1806 = vmatmul.mubr.bf16.gmra.mxu0 %v909
      %v1807 = vpop.f32.mrf.mxu0
      %v1808 = vadd.f32 %v1006, %v1807
      %v1809 = vpop.f32.mrf.mxu0
      %v1810 = vadd.f32 %v1010, %v1809
      %v1811 = vpop.f32.mrf.mxu0
      %v1812 = vadd.f32 %v1006, %v1811
      %v1813 = vpop.f32.mrf.mxu0
      %v1814 = vadd.f32 %v1010, %v1813
      %1815 = vmatprep.mubr.bf16.mxu0 0
      %1816 = vmatmul.mubr.bf16.gmra.mxu0 %v910
      %v1817 = vpop.f32.mrf.mxu0
      %v1818 = vadd.f32 %v1006, %v1817
      %v1819 = vpop.f32.mrf.mxu0
      %v1820 = vadd.f32 %v1010, %v1819
      %v1821 = vpop.f32.mrf.mxu0
      %v1822 = vadd.f32 %v1006, %v1821
      %v1823 = vpop.f32.mrf.mxu0
      %v1824 = vadd.f32 %v1010, %v1823
      %1825 = vmatprep.mubr.bf16.mxu0 0
      %1826 = vmatmul.mubr.bf16.gmra.mxu0 %v911
      %v1827 = vpop.f32.mrf.mxu0
      %v1828 = vadd.f32 %v1006, %v1827
      %v1829 = vpop.f32.mrf.mxu0
      %v1830 = vadd.f32 %v1010, %v1829
      %v1831 = vpop.f32.mrf.mxu0
      %v1832 = vadd.f32 %v1006, %v1831
      %v1833 = vpop.f32.mrf.mxu0
      %v1834 = vadd.f32 %v1010, %v1833
      %1835 = vmatprep.mubr.bf16.mxu0 0
      %1836 = vmatmul.mubr.bf16.gmra.mxu0 %v912
      %v1837 = vpop.f32.mrf.mxu0
      %v1838 = vadd.f32 %v1006, %v1837
      %v1839 = vpop.f32.mrf.mxu0
      %v1840 = vadd.f32 %v1010, %v1839
      %v1841 = vpop.f32.mrf.mxu0
      %v1842 = vadd.f32 %v1006, %v1841
      %v1843 = vpop.f32.mrf.mxu0
      %v1844 = vadd.f32 %v1010, %v1843
      %1845 = vmatprep.mubr.bf16.mxu0 0
      %1846 = vmatmul.mubr.bf16.gmra.mxu0 %v913
      %v1847 = vpop.f32.mrf.mxu0
      %v1848 = vadd.f32 %v1006, %v1847
      %v1849 = vpop.f32.mrf.mxu0
      %v1850 = vadd.f32 %v1010, %v1849
      %v1851 = vpop.f32.mrf.mxu0
      %v1852 = vadd.f32 %v1006, %v1851
      %v1853 = vpop.f32.mrf.mxu0
      %v1854 = vadd.f32 %v1010, %v1853
      %1855 = vmatprep.mubr.bf16.mxu0 0
      %1856 = vmatmul.mubr.bf16.gmra.mxu0 %v914
      %v1857 = vpop.f32.mrf.mxu0
      %v1858 = vadd.f32 %v1006, %v1857
      %v1859 = vpop.f32.mrf.mxu0
      %v1860 = vadd.f32 %v1010, %v1859
      %v1861 = vpop.f32.mrf.mxu0
      %v1862 = vadd.f32 %v1006, %v1861
      %v1863 = vpop.f32.mrf.mxu0
      %v1864 = vadd.f32 %v1010, %v1863
      %1865 = vmatprep.mubr.bf16.mxu0 0
      %1866 = vmatmul.mubr.bf16.gmra.mxu0 %v915
      %v1867 = vpop.f32.mrf.mxu0
      %v1868 = vadd.f32 %v1006, %v1867
      %v1869 = vpop.f32.mrf.mxu0
      %v1870 = vadd.f32 %v1010, %v1869
      %v1871 = vpop.f32.mrf.mxu0
      %v1872 = vadd.f32 %v1006, %v1871
      %v1873 = vpop.f32.mrf.mxu0
      %v1874 = vadd.f32 %v1010, %v1873
      %1875 = vmatprep.mubr.bf16.mxu0 0
      %1876 = vmatmul.mubr.bf16.gmra.mxu0 %v916
      %v1877 = vpop.f32.mrf.mxu0
      %v1878 = vadd.f32 %v1006, %v1877
      %v1879 = vpop.f32.mrf.mxu0
      %v1880 = vadd.f32 %v1010, %v1879
      %v1881 = vpop.f32.mrf.mxu0
      %v1882 = vadd.f32 %v1006, %v1881
      %v1883 = vpop.f32.mrf.mxu0
      %v1884 = vadd.f32 %v1010, %v1883
      %1885 = vmatprep.mubr.bf16.mxu0 0
      %1886 = vmatmul.mubr.bf16.gmra.mxu0 %v917
      %v1887 = vpop.f32.mrf.mxu0
      %v1888 = vadd.f32 %v1006, %v1887
      %v1889 = vpop.f32.mrf.mxu0
      %v1890 = vadd.f32 %v1010, %v1889
      %v1891 = vpop.f32.mrf.mxu0
      %v1892 = vadd.f32 %v1006, %v1891
      %v1893 = vpop.f32.mrf.mxu0
      %v1894 = vadd.f32 %v1010, %v1893
      %1895 = vmatprep.mubr.bf16.mxu0 0
      %1896 = vmatmul.mubr.bf16.gmra.mxu0 %v918
      %v1897 = vpop.f32.mrf.mxu0
      %v1898 = vadd.f32 %v1006, %v1897
      %v1899 = vpop.f32.mrf.mxu0
      %v1900 = vadd.f32 %v1010, %v1899
      %v1901 = vpop.f32.mrf.mxu0
      %v1902 = vadd.f32 %v1006, %v1901
      %v1903 = vpop.f32.mrf.mxu0
      %v1904 = vadd.f32 %v1010, %v1903
      %1905 = vmatprep.mubr.bf16.mxu0 0
      %1906 = vmatmul.mubr.bf16.gmra.mxu0 %v919
      %v1907 = vpop.f32.mrf.mxu0
      %v1908 = vadd.f32 %v1006, %v1907
      %v1909 = vpop.f32.mrf.mxu0
      %v1910 = vadd.f32 %v1010, %v1909
      %v1911 = vpop.f32.mrf.mxu0
      %v1912 = vadd.f32 %v1006, %v1911
      %v1913 = vpop.f32.mrf.mxu0
      %v1914 = vadd.f32 %v1010, %v1913
      %1915 = vmatprep.mubr.bf16.mxu0 0
      %1916 = vmatmul.mubr.bf16.gmra.mxu0 %v920
      %v1917 = vpop.f32.mrf.mxu0
      %v1918 = vadd.f32 %v1006, %v1917
      %v1919 = vpop.f32.mrf.mxu0
      %v1920 = vadd.f32 %v1010, %v1919
      %v1921 = vpop.f32.mrf.mxu0
      %v1922 = vadd.f32 %v1006, %v1921
      %v1923 = vpop.f32.mrf.mxu0
      %v1924 = vadd.f32 %v1010, %v1923
      %1925 = vdwg.mxu0
      %1926 = vmatprep.subr.bf16.mxu0 %v1282
      %1927 = vmatpush1.bf16.msra.mxu0 %v1281
      %1928 = vmatprep.subr.bf16.mxu0 %v1274
      %1929 = vmatpush1.bf16.msra.mxu0 %v1273
      %1930 = vmatprep.subr.bf16.mxu0 %v1266
      %1931 = vmatpush1.bf16.msra.mxu0 %v1265
      %1932 = vmatprep.subr.bf16.mxu0 %v1258
      %1933 = vmatpush1.bf16.msra.mxu0 %v1257
      %1934 = vmatprep.subr.bf16.mxu0 %v1250
      %1935 = vmatpush1.bf16.msra.mxu0 %v1249
      %1936 = vmatprep.subr.bf16.mxu0 %v1242
      %1937 = vmatpush1.bf16.msra.mxu0 %v1241
      %1938 = vmatprep.subr.bf16.mxu0 %v1234
      %1939 = vmatpush1.bf16.msra.mxu0 %v1233
      %1940 = vmatprep.subr.bf16.mxu0 %v1226
      %1941 = vmatpush1.bf16.msra.mxu0 %v1225
      %1942 = vmatprep.subr.bf16.mxu0 0
      %1943 = vmatpush2.bf16.msra.mxu0 0
      %1944 = vmatprep.subr.bf16.mxu0 0
      %1945 = vmatpush2.bf16.msra.mxu0 0
      %1946 = vmatprep.subr.bf16.mxu0 0
      %1947 = vmatpush2.bf16.msra.mxu0 0
      %1948 = vmatprep.subr.bf16.mxu0 0
      %1949 = vmatpush2.bf16.msra.mxu0 0
      %1950 = vmatprep.subr.bf16.mxu0 0
      %1951 = vmatpush2.bf16.msra.mxu0 0
      %1952 = vmatprep.subr.bf16.mxu0 0
      %1953 = vmatpush2.bf16.msra.mxu0 0
      %1954 = vmatprep.subr.bf16.mxu0 0
      %1955 = vmatpush2.bf16.msra.mxu0 0
      %1956 = vmatprep.subr.bf16.mxu0 0
      %1957 = vmatpush2.bf16.msra.mxu0 0
      %1958 = vmatprep.mubr.bf16.mxu0 0
      %1959 = vmatmul.mubr.bf16.gmra.mxu0 %v905
      %v1960 = vpop.f32.mrf.mxu0
      %v1961 = vadd.f32 %v1014, %v1960
      %v1962 = vpop.f32.mrf.mxu0
      %v1963 = vadd.f32 %v1018, %v1962
      %v1964 = vpop.f32.mrf.mxu0
      %v1965 = vadd.f32 %v1014, %v1964
      %v1966 = vpop.f32.mrf.mxu0
      %v1967 = vadd.f32 %v1018, %v1966
      %1968 = vmatprep.mubr.bf16.mxu0 0
      %1969 = vmatmul.mubr.bf16.gmra.mxu0 %v906
      %v1970 = vpop.f32.mrf.mxu0
      %v1971 = vadd.f32 %v1014, %v1970
      %v1972 = vpop.f32.mrf.mxu0
      %v1973 = vadd.f32 %v1018, %v1972
      %v1974 = vpop.f32.mrf.mxu0
      %v1975 = vadd.f32 %v1014, %v1974
      %v1976 = vpop.f32.mrf.mxu0
      %v1977 = vadd.f32 %v1018, %v1976
      %1978 = vmatprep.mubr.bf16.mxu0 0
      %1979 = vmatmul.mubr.bf16.gmra.mxu0 %v907
      %v1980 = vpop.f32.mrf.mxu0
      %v1981 = vadd.f32 %v1014, %v1980
      %v1982 = vpop.f32.mrf.mxu0
      %v1983 = vadd.f32 %v1018, %v1982
      %v1984 = vpop.f32.mrf.mxu0
      %v1985 = vadd.f32 %v1014, %v1984
      %v1986 = vpop.f32.mrf.mxu0
      %v1987 = vadd.f32 %v1018, %v1986
      %1988 = vmatprep.mubr.bf16.mxu0 0
      %1989 = vmatmul.mubr.bf16.gmra.mxu0 %v908
      %v1990 = vpop.f32.mrf.mxu0
      %v1991 = vadd.f32 %v1014, %v1990
      %v1992 = vpop.f32.mrf.mxu0
      %v1993 = vadd.f32 %v1018, %v1992
      %v1994 = vpop.f32.mrf.mxu0
      %v1995 = vadd.f32 %v1014, %v1994
      %v1996 = vpop.f32.mrf.mxu0
      %v1997 = vadd.f32 %v1018, %v1996
      %1998 = vmatprep.mubr.bf16.mxu0 0
      %1999 = vmatmul.mubr.bf16.gmra.mxu0 %v909
      %v2000 = vpop.f32.mrf.mxu0
      %v2001 = vadd.f32 %v1014, %v2000
      %v2002 = vpop.f32.mrf.mxu0
      %v2003 = vadd.f32 %v1018, %v2002
      %v2004 = vpop.f32.mrf.mxu0
      %v2005 = vadd.f32 %v1014, %v2004
      %v2006 = vpop.f32.mrf.mxu0
      %v2007 = vadd.f32 %v1018, %v2006
      %2008 = vmatprep.mubr.bf16.mxu0 0
      %2009 = vmatmul.mubr.bf16.gmra.mxu0 %v910
      %v2010 = vpop.f32.mrf.mxu0
      %v2011 = vadd.f32 %v1014, %v2010
      %v2012 = vpop.f32.mrf.mxu0
      %v2013 = vadd.f32 %v1018, %v2012
      %v2014 = vpop.f32.mrf.mxu0
      %v2015 = vadd.f32 %v1014, %v2014
      %v2016 = vpop.f32.mrf.mxu0
      %v2017 = vadd.f32 %v1018, %v2016
      %2018 = vmatprep.mubr.bf16.mxu0 0
      %2019 = vmatmul.mubr.bf16.gmra.mxu0 %v911
      %v2020 = vpop.f32.mrf.mxu0
      %v2021 = vadd.f32 %v1014, %v2020
      %v2022 = vpop.f32.mrf.mxu0
      %v2023 = vadd.f32 %v1018, %v2022
      %v2024 = vpop.f32.mrf.mxu0
      %v2025 = vadd.f32 %v1014, %v2024
      %v2026 = vpop.f32.mrf.mxu0
      %v2027 = vadd.f32 %v1018, %v2026
      %2028 = vmatprep.mubr.bf16.mxu0 0
      %2029 = vmatmul.mubr.bf16.gmra.mxu0 %v912
      %v2030 = vpop.f32.mrf.mxu0
      %v2031 = vadd.f32 %v1014, %v2030
      %v2032 = vpop.f32.mrf.mxu0
      %v2033 = vadd.f32 %v1018, %v2032
      %v2034 = vpop.f32.mrf.mxu0
      %v2035 = vadd.f32 %v1014, %v2034
      %v2036 = vpop.f32.mrf.mxu0
      %v2037 = vadd.f32 %v1018, %v2036
      %2038 = vmatprep.mubr.bf16.mxu0 0
      %2039 = vmatmul.mubr.bf16.gmra.mxu0 %v913
      %v2040 = vpop.f32.mrf.mxu0
      %v2041 = vadd.f32 %v1014, %v2040
      %v2042 = vpop.f32.mrf.mxu0
      %v2043 = vadd.f32 %v1018, %v2042
      %v2044 = vpop.f32.mrf.mxu0
      %v2045 = vadd.f32 %v1014, %v2044
      %v2046 = vpop.f32.mrf.mxu0
      %v2047 = vadd.f32 %v1018, %v2046
      %2048 = vmatprep.mubr.bf16.mxu0 0
      %2049 = vmatmul.mubr.bf16.gmra.mxu0 %v914
      %v2050 = vpop.f32.mrf.mxu0
      %v2051 = vadd.f32 %v1014, %v2050
      %v2052 = vpop.f32.mrf.mxu0
      %v2053 = vadd.f32 %v1018, %v2052
      %v2054 = vpop.f32.mrf.mxu0
      %v2055 = vadd.f32 %v1014, %v2054
      %v2056 = vpop.f32.mrf.mxu0
      %v2057 = vadd.f32 %v1018, %v2056
      %2058 = vmatprep.mubr.bf16.mxu0 0
      %2059 = vmatmul.mubr.bf16.gmra.mxu0 %v915
      %v2060 = vpop.f32.mrf.mxu0
      %v2061 = vadd.f32 %v1014, %v2060
      %v2062 = vpop.f32.mrf.mxu0
      %v2063 = vadd.f32 %v1018, %v2062
      %v2064 = vpop.f32.mrf.mxu0
      %v2065 = vadd.f32 %v1014, %v2064
      %v2066 = vpop.f32.mrf.mxu0
      %v2067 = vadd.f32 %v1018, %v2066
      %2068 = vmatprep.mubr.bf16.mxu0 0
      %2069 = vmatmul.mubr.bf16.gmra.mxu0 %v916
      %v2070 = vpop.f32.mrf.mxu0
      %v2071 = vadd.f32 %v1014, %v2070
      %v2072 = vpop.f32.mrf.mxu0
      %v2073 = vadd.f32 %v1018, %v2072
      %v2074 = vpop.f32.mrf.mxu0
      %v2075 = vadd.f32 %v1014, %v2074
      %v2076 = vpop.f32.mrf.mxu0
      %v2077 = vadd.f32 %v1018, %v2076
      %2078 = vmatprep.mubr.bf16.mxu0 0
      %2079 = vmatmul.mubr.bf16.gmra.mxu0 %v917
      %v2080 = vpop.f32.mrf.mxu0
      %v2081 = vadd.f32 %v1014, %v2080
      %v2082 = vpop.f32.mrf.mxu0
      %v2083 = vadd.f32 %v1018, %v2082
      %v2084 = vpop.f32.mrf.mxu0
      %v2085 = vadd.f32 %v1014, %v2084
      %v2086 = vpop.f32.mrf.mxu0
      %v2087 = vadd.f32 %v1018, %v2086
      %2088 = vmatprep.mubr.bf16.mxu0 0
      %2089 = vmatmul.mubr.bf16.gmra.mxu0 %v918
      %v2090 = vpop.f32.mrf.mxu0
      %v2091 = vadd.f32 %v1014, %v2090
      %v2092 = vpop.f32.mrf.mxu0
      %v2093 = vadd.f32 %v1018, %v2092
      %v2094 = vpop.f32.mrf.mxu0
      %v2095 = vadd.f32 %v1014, %v2094
      %v2096 = vpop.f32.mrf.mxu0
      %v2097 = vadd.f32 %v1018, %v2096
      %2098 = vmatprep.mubr.bf16.mxu0 0
      %2099 = vmatmul.mubr.bf16.gmra.mxu0 %v919
      %v2100 = vpop.f32.mrf.mxu0
      %v2101 = vadd.f32 %v1014, %v2100
      %v2102 = vpop.f32.mrf.mxu0
      %v2103 = vadd.f32 %v1018, %v2102
      %v2104 = vpop.f32.mrf.mxu0
      %v2105 = vadd.f32 %v1014, %v2104
      %v2106 = vpop.f32.mrf.mxu0
      %v2107 = vadd.f32 %v1018, %v2106
      %2108 = vmatprep.mubr.bf16.mxu0 0
      %2109 = vmatmul.mubr.bf16.gmra.mxu0 %v920
      %v2110 = vpop.f32.mrf.mxu0
      %v2111 = vadd.f32 %v1014, %v2110
      %v2112 = vpop.f32.mrf.mxu0
      %v2113 = vadd.f32 %v1018, %v2112
      %v2114 = vpop.f32.mrf.mxu0
      %v2115 = vadd.f32 %v1014, %v2114
      %v2116 = vpop.f32.mrf.mxu0
      %v2117 = vadd.f32 %v1018, %v2116
      %2118 = vdwg.mxu0
      %v2119 = vmax.f32 %v1382, %v1386
      %v2120 = vmax.f32 %v2119, %v1392
      %v2121 = vmax.f32 %v2120, %v1396
      %v2122 = vmax.f32 %v2121, %v1402
      %v2123 = vmax.f32 %v2122, %v1406
      %v2124 = vmax.f32 %v2123, %v1412
      %v2125 = vmax.f32 %v2124, %v1416
      %v2126 = vmax.f32 %v2125, %v1422
      %v2127 = vmax.f32 %v2126, %v1426
      %v2128 = vmax.f32 %v2127, %v1432
      %v2129 = vmax.f32 %v2128, %v1436
      %v2130 = vmax.f32 %v2129, %v1442
      %v2131 = vmax.f32 %v2130, %v1446
      %v2132 = vmax.f32 %v2131, %v1452
      %v2133 = vmax.f32 %v2132, %v1456
      %v2134 = vmax.f32 %v2133, %v1462
      %v2135 = vmax.f32 %v2134, %v1466
      %v2136 = vmax.f32 %v2135, %v1472
      %v2137 = vmax.f32 %v2136, %v1476
      %v2138 = vmax.f32 %v2137, %v1482
      %v2139 = vmax.f32 %v2138, %v1486
      %v2140 = vmax.f32 %v2139, %v1492
      %v2141 = vmax.f32 %v2140, %v1496
      %v2142 = vmax.f32 %v2141, %v1502
      %v2143 = vmax.f32 %v2142, %v1506
      %v2144 = vmax.f32 %v2143, %v1512
      %v2145 = vmax.f32 %v2144, %v1516
      %v2146 = vmax.f32 %v2145, %v1522
      %v2147 = vmax.f32 %v2146, %v1526
      %v2148 = vmax.f32 %v2147, %v1532
      %v2149 = vmax.f32 %v2148, %v1536
      %v2150 = vrot.slane %v2149, 4
      %v2151 = vmax.f32 %v2149, %v2150
      %v2152 = vrot.slane %v2151, 2
      %v2153 = vmax.f32 %v2151, %v2152
      %v2154 = vrot.slane %v2153, 1
      %v2155 = vmax.f32 %v2153, %v2154
      %v2156 = vmax.f32 %v1384, %v1388
      %v2157 = vmax.f32 %v2156, %v1394
      %v2158 = vmax.f32 %v2157, %v1398
      %v2159 = vmax.f32 %v2158, %v1404
      %v2160 = vmax.f32 %v2159, %v1408
      %v2161 = vmax.f32 %v2160, %v1414
      %v2162 = vmax.f32 %v2161, %v1418
      %v2163 = vmax.f32 %v2162, %v1424
      %v2164 = vmax.f32 %v2163, %v1428
      %v2165 = vmax.f32 %v2164, %v1434
      %v2166 = vmax.f32 %v2165, %v1438
      %v2167 = vmax.f32 %v2166, %v1444
      %v2168 = vmax.f32 %v2167, %v1448
      %v2169 = vmax.f32 %v2168, %v1454
      %v2170 = vmax.f32 %v2169, %v1458
      %v2171 = vmax.f32 %v2170, %v1464
      %v2172 = vmax.f32 %v2171, %v1468
      %v2173 = vmax.f32 %v2172, %v1474
      %v2174 = vmax.f32 %v2173, %v1478
      %v2175 = vmax.f32 %v2174, %v1484
      %v2176 = vmax.f32 %v2175, %v1488
      %v2177 = vmax.f32 %v2176, %v1494
      %v2178 = vmax.f32 %v2177, %v1498
      %v2179 = vmax.f32 %v2178, %v1504
      %v2180 = vmax.f32 %v2179, %v1508
      %v2181 = vmax.f32 %v2180, %v1514
      %v2182 = vmax.f32 %v2181, %v1518
      %v2183 = vmax.f32 %v2182, %v1524
      %v2184 = vmax.f32 %v2183, %v1528
      %v2185 = vmax.f32 %v2184, %v1534
      %v2186 = vmax.f32 %v2185, %v1538
      %v2187 = vrot.slane %v2186, 4
      %v2188 = vmax.f32 %v2186, %v2187
      %v2189 = vrot.slane %v2188, 2
      %v2190 = vmax.f32 %v2188, %v2189
      %v2191 = vrot.slane %v2190, 1
      %v2192 = vmax.f32 %v2190, %v2191
      %v2193 = vmax.f32 %v1575, %v1579
      %v2194 = vmax.f32 %v2193, %v1585
      %v2195 = vmax.f32 %v2194, %v1589
      %v2196 = vmax.f32 %v2195, %v1595
      %v2197 = vmax.f32 %v2196, %v1599
      %v2198 = vmax.f32 %v2197, %v1605
      %v2199 = vmax.f32 %v2198, %v1609
      %v2200 = vmax.f32 %v2199, %v1615
      %v2201 = vmax.f32 %v2200, %v1619
      %v2202 = vmax.f32 %v2201, %v1625
      %v2203 = vmax.f32 %v2202, %v1629
      %v2204 = vmax.f32 %v2203, %v1635
      %v2205 = vmax.f32 %v2204, %v1639
      %v2206 = vmax.f32 %v2205, %v1645
      %v2207 = vmax.f32 %v2206, %v1649
      %v2208 = vmax.f32 %v2207, %v1655
      %v2209 = vmax.f32 %v2208, %v1659
      %v2210 = vmax.f32 %v2209, %v1665
      %v2211 = vmax.f32 %v2210, %v1669
      %v2212 = vmax.f32 %v2211, %v1675
      %v2213 = vmax.f32 %v2212, %v1679
      %v2214 = vmax.f32 %v2213, %v1685
      %v2215 = vmax.f32 %v2214, %v1689
      %v2216 = vmax.f32 %v2215, %v1695
      %v2217 = vmax.f32 %v2216, %v1699
      %v2218 = vmax.f32 %v2217, %v1705
      %v2219 = vmax.f32 %v2218, %v1709
      %v2220 = vmax.f32 %v2219, %v1715
      %v2221 = vmax.f32 %v2220, %v1719
      %v2222 = vmax.f32 %v2221, %v1725
      %v2223 = vmax.f32 %v2222, %v1729
      %v2224 = vrot.slane %v2223, 4
      %v2225 = vmax.f32 %v2223, %v2224
      %v2226 = vrot.slane %v2225, 2
      %v2227 = vmax.f32 %v2225, %v2226
      %v2228 = vrot.slane %v2227, 1
      %v2229 = vmax.f32 %v2227, %v2228
      %v2230 = vmax.f32 %v1577, %v1581
      %v2231 = vmax.f32 %v2230, %v1587
      %v2232 = vmax.f32 %v2231, %v1591
      %v2233 = vmax.f32 %v2232, %v1597
      %v2234 = vmax.f32 %v2233, %v1601
      %v2235 = vmax.f32 %v2234, %v1607
      %v2236 = vmax.f32 %v2235, %v1611
      %v2237 = vmax.f32 %v2236, %v1617
      %v2238 = vmax.f32 %v2237, %v1621
      %v2239 = vmax.f32 %v2238, %v1627
      %v2240 = vmax.f32 %v2239, %v1631
      %v2241 = vmax.f32 %v2240, %v1637
      %v2242 = vmax.f32 %v2241, %v1641
      %v2243 = vmax.f32 %v2242, %v1647
      %v2244 = vmax.f32 %v2243, %v1651
      %v2245 = vmax.f32 %v2244, %v1657
      %v2246 = vmax.f32 %v2245, %v1661
      %v2247 = vmax.f32 %v2246, %v1667
      %v2248 = vmax.f32 %v2247, %v1671
      %v2249 = vmax.f32 %v2248, %v1677
      %v2250 = vmax.f32 %v2249, %v1681
      %v2251 = vmax.f32 %v2250, %v1687
      %v2252 = vmax.f32 %v2251, %v1691
      %v2253 = vmax.f32 %v2252, %v1697
      %v2254 = vmax.f32 %v2253, %v1701
      %v2255 = vmax.f32 %v2254, %v1707
      %v2256 = vmax.f32 %v2255, %v1711
      %v2257 = vmax.f32 %v2256, %v1717
      %v2258 = vmax.f32 %v2257, %v1721
      %v2259 = vmax.f32 %v2258, %v1727
      %v2260 = vmax.f32 %v2259, %v1731
      %v2261 = vrot.slane %v2260, 4
      %v2262 = vmax.f32 %v2260, %v2261
      %v2263 = vrot.slane %v2262, 2
      %v2264 = vmax.f32 %v2262, %v2263
      %v2265 = vrot.slane %v2264, 1
      %v2266 = vmax.f32 %v2264, %v2265
      %v2267 = vmax.f32 %v1768, %v1772
      %v2268 = vmax.f32 %v2267, %v1778
      %v2269 = vmax.f32 %v2268, %v1782
      %v2270 = vmax.f32 %v2269, %v1788
      %v2271 = vmax.f32 %v2270, %v1792
      %v2272 = vmax.f32 %v2271, %v1798
      %v2273 = vmax.f32 %v2272, %v1802
      %v2274 = vmax.f32 %v2273, %v1808
      %v2275 = vmax.f32 %v2274, %v1812
      %v2276 = vmax.f32 %v2275, %v1818
      %v2277 = vmax.f32 %v2276, %v1822
      %v2278 = vmax.f32 %v2277, %v1828
      %v2279 = vmax.f32 %v2278, %v1832
      %v2280 = vmax.f32 %v2279, %v1838
      %v2281 = vmax.f32 %v2280, %v1842
      %v2282 = vmax.f32 %v2281, %v1848
      %v2283 = vmax.f32 %v2282, %v1852
      %v2284 = vmax.f32 %v2283, %v1858
      %v2285 = vmax.f32 %v2284, %v1862
      %v2286 = vmax.f32 %v2285, %v1868
      %v2287 = vmax.f32 %v2286, %v1872
      %v2288 = vmax.f32 %v2287, %v1878
      %v2289 = vmax.f32 %v2288, %v1882
      %v2290 = vmax.f32 %v2289, %v1888
      %v2291 = vmax.f32 %v2290, %v1892
      %v2292 = vmax.f32 %v2291, %v1898
      %v2293 = vmax.f32 %v2292, %v1902
      %v2294 = vmax.f32 %v2293, %v1908
      %v2295 = vmax.f32 %v2294, %v1912
      %v2296 = vmax.f32 %v2295, %v1918
      %v2297 = vmax.f32 %v2296, %v1922
      %v2298 = vrot.slane %v2297, 4
      %v2299 = vmax.f32 %v2297, %v2298
      %v2300 = vrot.slane %v2299, 2
      %v2301 = vmax.f32 %v2299, %v2300
      %v2302 = vrot.slane %v2301, 1
      %v2303 = vmax.f32 %v2301, %v2302
      %v2304 = vmax.f32 %v1770, %v1774
      %v2305 = vmax.f32 %v2304, %v1780
      %v2306 = vmax.f32 %v2305, %v1784
      %v2307 = vmax.f32 %v2306, %v1790
      %v2308 = vmax.f32 %v2307, %v1794
      %v2309 = vmax.f32 %v2308, %v1800
      %v2310 = vmax.f32 %v2309, %v1804
      %v2311 = vmax.f32 %v2310, %v1810
      %v2312 = vmax.f32 %v2311, %v1814
      %v2313 = vmax.f32 %v2312, %v1820
      %v2314 = vmax.f32 %v2313, %v1824
      %v2315 = vmax.f32 %v2314, %v1830
      %v2316 = vmax.f32 %v2315, %v1834
      %v2317 = vmax.f32 %v2316, %v1840
      %v2318 = vmax.f32 %v2317, %v1844
      %v2319 = vmax.f32 %v2318, %v1850
      %v2320 = vmax.f32 %v2319, %v1854
      %v2321 = vmax.f32 %v2320, %v1860
      %v2322 = vmax.f32 %v2321, %v1864
      %v2323 = vmax.f32 %v2322, %v1870
      %v2324 = vmax.f32 %v2323, %v1874
      %v2325 = vmax.f32 %v2324, %v1880
      %v2326 = vmax.f32 %v2325, %v1884
      %v2327 = vmax.f32 %v2326, %v1890
      %v2328 = vmax.f32 %v2327, %v1894
      %v2329 = vmax.f32 %v2328, %v1900
      %v2330 = vmax.f32 %v2329, %v1904
      %v2331 = vmax.f32 %v2330, %v1910
      %v2332 = vmax.f32 %v2331, %v1914
      %v2333 = vmax.f32 %v2332, %v1920
      %v2334 = vmax.f32 %v2333, %v1924
      %v2335 = vrot.slane %v2334, 4
      %v2336 = vmax.f32 %v2334, %v2335
      %v2337 = vrot.slane %v2336, 2
      %v2338 = vmax.f32 %v2336, %v2337
      %v2339 = vrot.slane %v2338, 1
      %v2340 = vmax.f32 %v2338, %v2339
      %v2341 = vmax.f32 %v1961, %v1965
      %v2342 = vmax.f32 %v2341, %v1971
      %v2343 = vmax.f32 %v2342, %v1975
      %v2344 = vmax.f32 %v2343, %v1981
      %v2345 = vmax.f32 %v2344, %v1985
      %v2346 = vmax.f32 %v2345, %v1991
      %v2347 = vmax.f32 %v2346, %v1995
      %v2348 = vmax.f32 %v2347, %v2001
      %v2349 = vmax.f32 %v2348, %v2005
      %v2350 = vmax.f32 %v2349, %v2011
      %v2351 = vmax.f32 %v2350, %v2015
      %v2352 = vmax.f32 %v2351, %v2021
      %v2353 = vmax.f32 %v2352, %v2025
      %v2354 = vmax.f32 %v2353, %v2031
      %v2355 = vmax.f32 %v2354, %v2035
      %v2356 = vmax.f32 %v2355, %v2041
      %v2357 = vmax.f32 %v2356, %v2045
      %v2358 = vmax.f32 %v2357, %v2051
      %v2359 = vmax.f32 %v2358, %v2055
      %v2360 = vmax.f32 %v2359, %v2061
      %v2361 = vmax.f32 %v2360, %v2065
      %v2362 = vmax.f32 %v2361, %v2071
      %v2363 = vmax.f32 %v2362, %v2075
      %v2364 = vmax.f32 %v2363, %v2081
      %v2365 = vmax.f32 %v2364, %v2085
      %v2366 = vmax.f32 %v2365, %v2091
      %v2367 = vmax.f32 %v2366, %v2095
      %v2368 = vmax.f32 %v2367, %v2101
      %v2369 = vmax.f32 %v2368, %v2105
      %v2370 = vmax.f32 %v2369, %v2111
      %v2371 = vmax.f32 %v2370, %v2115
      %v2372 = vrot.slane %v2371, 4
      %v2373 = vmax.f32 %v2371, %v2372
      %v2374 = vrot.slane %v2373, 2
      %v2375 = vmax.f32 %v2373, %v2374
      %v2376 = vrot.slane %v2375, 1
      %v2377 = vmax.f32 %v2375, %v2376
      %v2378 = vmax.f32 %v1963, %v1967
      %v2379 = vmax.f32 %v2378, %v1973
      %v2380 = vmax.f32 %v2379, %v1977
      %v2381 = vmax.f32 %v2380, %v1983
      %v2382 = vmax.f32 %v2381, %v1987
      %v2383 = vmax.f32 %v2382, %v1993
      %v2384 = vmax.f32 %v2383, %v1997
      %v2385 = vmax.f32 %v2384, %v2003
      %v2386 = vmax.f32 %v2385, %v2007
      %v2387 = vmax.f32 %v2386, %v2013
      %v2388 = vmax.f32 %v2387, %v2017
      %v2389 = vmax.f32 %v2388, %v2023
      %v2390 = vmax.f32 %v2389, %v2027
      %v2391 = vmax.f32 %v2390, %v2033
      %v2392 = vmax.f32 %v2391, %v2037
      %v2393 = vmax.f32 %v2392, %v2043
      %v2394 = vmax.f32 %v2393, %v2047
      %v2395 = vmax.f32 %v2394, %v2053
      %v2396 = vmax.f32 %v2395, %v2057
      %v2397 = vmax.f32 %v2396, %v2063
      %v2398 = vmax.f32 %v2397, %v2067
      %v2399 = vmax.f32 %v2398, %v2073
      %v2400 = vmax.f32 %v2399, %v2077
      %v2401 = vmax.f32 %v2400, %v2083
      %v2402 = vmax.f32 %v2401, %v2087
      %v2403 = vmax.f32 %v2402, %v2093
      %v2404 = vmax.f32 %v2403, %v2097
      %v2405 = vmax.f32 %v2404, %v2103
      %v2406 = vmax.f32 %v2405, %v2107
      %v2407 = vmax.f32 %v2406, %v2113
      %v2408 = vmax.f32 %v2407, %v2117
      %v2409 = vrot.slane %v2408, 4
      %v2410 = vmax.f32 %v2408, %v2409
      %v2411 = vrot.slane %v2410, 2
      %v2412 = vmax.f32 %v2410, %v2411
      %v2413 = vrot.slane %v2412, 1
      %v2414 = vmax.f32 %v2412, %v2413
      %p2415 = scmp.eq.s32.totalorder %s23, 0
      // Predicated region
      $region49: #{pointnet_seg_forward.2} parent=47 // pred_check
        %p2416 = pneg %p2415
      $region50: #{pointnet_seg_forward.2} parent=47 // pred_check_branch
        %2418 = sbr.rel (%p2416) target = $region52
      $region51: #{pointnet_seg_forward.2} parent=47 // pred_region
        %v2427 = vcombine.low %v2155, %v2192
        %v2428 = vcombine.low %v2229, %v2266
        %v2429 = vcombine.low %v2303, %v2340
        %v2430 = vcombine.low %v2377, %v2414
        %v2432 = vunpack.c.l.s4 1966171168
        %v2433 = vunpack.c.0.s8 %v2432
        %v2434 = vlaneseq
        %v2435 = vshrl.u32 %v2434, 7
        %v2436 = vsub.s32 %v2433, %v2435
        %v2437 = vrot.slane %v2427, %v2436
        %v2439 = vunpack.c.l.s4 1966171168
        %v2440 = vunpack.c.0.s8 %v2439
        %v2441 = vlaneseq
        %v2442 = vshrl.u32 %v2441, 7
        %v2443 = vsub.s32 %v2440, %v2442
        %v2444 = vrot.slane %v2428, %v2443
        %v2446 = vunpack.c.l.s4 1966171168
        %v2447 = vunpack.c.0.s8 %v2446
        %v2448 = vlaneseq
        %v2449 = vshrl.u32 %v2448, 7
        %v2450 = vsub.s32 %v2447, %v2449
        %v2451 = vrot.slane %v2429, %v2450
        %v2453 = vunpack.c.l.s4 1966171168
        %v2454 = vunpack.c.0.s8 %v2453
        %v2455 = vlaneseq
        %v2456 = vshrl.u32 %v2455, 7
        %v2457 = vsub.s32 %v2454, %v2456
        %v2458 = vrot.slane %v2430, %v2457
        %v2459 = vcombine.low %v2437, %v2444
        %v2460 = vcombine.low %v2451, %v2458
        %v2462 = vunpack.c.l.s4 1966171168
        %v2463 = vunpack.c.0.s8 %v2462
        %v2464 = vlaneseq
        %v2465 = vshrl.u32 %v2464, 7
        %v2466 = vsub.s32 %v2463, %v2465
        %v2467 = vrot.slane %v2459, %v2466
        %v2469 = vunpack.c.l.s4 1966171168
        %v2470 = vunpack.c.0.s8 %v2469
        %v2471 = vlaneseq
        %v2472 = vshrl.u32 %v2471, 7
        %v2473 = vsub.s32 %v2470, %v2472
        %v2474 = vrot.slane %v2460, %v2473
        %v2475 = vcombine.low %v2467, %v2474
        %2477 = vst [vmem:[%s304] sm:$0xff] %v2475
      $region52: #{pointnet_seg_forward.2} parent=47 // pred_fallthru
        _
      %p2478 = scmp.ne.s32.totalorder %s23, 0
      // Predicated region
      $region53: #{pointnet_seg_forward.2} parent=47 // pred_check
        %p2479 = pneg %p2478
      $region54: #{pointnet_seg_forward.2} parent=47 // pred_check_branch
        %2481 = sbr.rel (%p2479) target = $region56
      $region55: #{pointnet_seg_forward.2} parent=47 // pred_region
        %v2482 = vld [vmem:[%s304] sm:$0xff]
        %v2491 = vcombine.low %v2155, %v2192
        %v2492 = vcombine.low %v2229, %v2266
        %v2493 = vcombine.low %v2303, %v2340
        %v2494 = vcombine.low %v2377, %v2414
        %v2496 = vunpack.c.l.s4 1966171168
        %v2497 = vunpack.c.0.s8 %v2496
        %v2498 = vlaneseq
        %v2499 = vshrl.u32 %v2498, 7
        %v2500 = vsub.s32 %v2497, %v2499
        %v2501 = vrot.slane %v2491, %v2500
        %v2503 = vunpack.c.l.s4 1966171168
        %v2504 = vunpack.c.0.s8 %v2503
        %v2505 = vlaneseq
        %v2506 = vshrl.u32 %v2505, 7
        %v2507 = vsub.s32 %v2504, %v2506
        %v2508 = vrot.slane %v2492, %v2507
        %v2510 = vunpack.c.l.s4 1966171168
        %v2511 = vunpack.c.0.s8 %v2510
        %v2512 = vlaneseq
        %v2513 = vshrl.u32 %v2512, 7
        %v2514 = vsub.s32 %v2511, %v2513
        %v2515 = vrot.slane %v2493, %v2514
        %v2517 = vunpack.c.l.s4 1966171168
        %v2518 = vunpack.c.0.s8 %v2517
        %v2519 = vlaneseq
        %v2520 = vshrl.u32 %v2519, 7
        %v2521 = vsub.s32 %v2518, %v2520
        %v2522 = vrot.slane %v2494, %v2521
        %v2523 = vcombine.low %v2501, %v2508
        %v2524 = vcombine.low %v2515, %v2522
        %v2526 = vunpack.c.l.s4 1966171168
        %v2527 = vunpack.c.0.s8 %v2526
        %v2528 = vlaneseq
        %v2529 = vshrl.u32 %v2528, 7
        %v2530 = vsub.s32 %v2527, %v2529
        %v2531 = vrot.slane %v2523, %v2530
        %v2533 = vunpack.c.l.s4 1966171168
        %v2534 = vunpack.c.0.s8 %v2533
        %v2535 = vlaneseq
        %v2536 = vshrl.u32 %v2535, 7
        %v2537 = vsub.s32 %v2534, %v2536
        %v2538 = vrot.slane %v2524, %v2537
        %v2539 = vcombine.low %v2531, %v2538
        %v2541 = vmax.f32 %v2482, %v2539
        %2542 = vst [vmem:[%s304] sm:$0xff] %v2541
      $region56: #{pointnet_seg_forward.2} parent=47 // pred_fallthru
        _
      %p2543 = scmp.lt.s32.totalorder %s22, 1
      %s2544 = scalar_select %p2543, %s22, 1
      %s2545 = smul.addr %s2544, 8
      %s2546 = scalar_lea.vmem %s7, %s2545
      // Predicated region
      $region57: #{pointnet_seg_forward.2} parent=47 // pred_check
        %p2547 = pneg %p202
      $region58: #{pointnet_seg_forward.2} parent=47 // pred_check_branch
        %2549 = sbr.rel (%p2547) target = $region60
      $region59: #{pointnet_seg_forward.2} parent=47 // pred_region
        _
      $region60: #{pointnet_seg_forward.2} parent=47 // pred_fallthru
        _
    $region48: #{pointnet_seg_forward.2} parent=5 // pred_fallthru
      _
    %p2550 = scmp.le.s32.totalorder 2, %s13
    // Predicated region
    $region61: #{pointnet_seg_forward.2} parent=5 // pred_check
      %p2551 = pneg %p2550
    $region62: #{pointnet_seg_forward.2} parent=5 // pred_check_branch
      %2553 = sbr.rel (%p2551) target = $region64
    $region63: #{pointnet_seg_forward.2} parent=5 // pred_region
      %s2554 = ssub.s32 %s13, 2
      // Predicated region
      $region65: #{pointnet_seg_forward.2} parent=63 // pred_check
        %p2555 = pneg %p208
      $region66: #{pointnet_seg_forward.2} parent=63 // pred_check_branch
        %2557 = sbr.rel (%p2555) target = $region68
      $region67: #{pointnet_seg_forward.2} parent=63 // pred_region
        %p2558 = scmp.lt.s32.totalorder %s24, 1
        %s2559 = scalar_select %p2558, %s24, 1
        %s2560 = smul.addr %s2559, 8
        %s2561 = scalar_lea.vmem %s7, %s2560
      $region68: #{pointnet_seg_forward.2} parent=63 // pred_fallthru
        _
    $region64: #{pointnet_seg_forward.2} parent=5 // pred_fallthru
      _
  $region6: #{pointnet_seg_forward.2} parent=0 // loop_footer
    %s17 = sadd.s32 1, %s13
  $region7: #{pointnet_seg_forward.2} parent=0 // loop_footer_branch
    %12 = sbr.rel target = $region3
  $region8: #{pointnet_seg_forward.2} parent=0 // loop_exit
    _

// kernel: pointnet_seg_forward.3
$region0: #{pointnet_seg_forward.3}
  #allocation0 [shape = 'u32[]', space=smem, size = 0x4, offset = 0x4, fixed_abs, tag = 'smem constant byte address 0x4 - core index']
  #allocation1 [shape = 'u32[144,128]{1,0:T(1,128)}', space=vmem, size = 0x12000, scoped, tag = 'internal scratch']
  %s0 = inlined_call_operand.vmem [shape: f32[2,256,8], index: 0, kind: input, shape index: {}]
  %s1 = inlined_call_operand.vmem [shape: bf16[8,64], index: 1, kind: input, shape index: {}]
  %s2 = inlined_call_operand.vmem [shape: f32[1,64], index: 2, kind: input, shape index: {}]
  %s3 = inlined_call_operand.vmem [shape: bf16[64,512], index: 3, kind: input, shape index: {}]
  %s4 = inlined_call_operand.vmem [shape: f32[2,1,512], index: 4, kind: input, shape index: {}]
  %s5 = inlined_call_operand.vmem [shape: bf16[512,256], index: 5, kind: input, shape index: {}]
  %s6 = inlined_call_operand.vmem [shape: f32[1,256], index: 6, kind: input, shape index: {}]
  %s7 = inlined_call_operand.vmem [shape: bf16[256,128], index: 7, kind: input, shape index: {}]
  %s8 = inlined_call_operand.vmem [shape: f32[1,128], index: 8, kind: input, shape index: {}]
  %s9 = inlined_call_operand.vmem [shape: bf16[128,128], index: 9, kind: input, shape index: {}]
  %s10 = inlined_call_operand.vmem [shape: f32[1,128], index: 10, kind: input, shape index: {}]
  %s11 = inlined_call_operand.vmem [shape: f32[2,256,128], index: 11, kind: output, shape index: {}]
  %s12 = sld [smem:[#allocation0]]
  $region77: #{pointnet_seg_forward.3} parent=0
    _
  %s14 = ssub.s32 1, %s12
  %s15 = scalar_select 0, %s14, %s12
  loop: start=0, step=1, limit=4
  $region2: #{pointnet_seg_forward.3} parent=0 // loop_pre_header
    _
  $region3: #{pointnet_seg_forward.3} parent=0 // loop_header
    %s17 = sphi 0, %s21
    %p18 = scmp.ge.s32.totalorder %s17, 4
    %s24 = sphi 0, %s36
    %s25 = sphi 0, %s32
    %s26 = sphi 0, %s24
    %s27 = sphi 0, %s25
    %s28 = sphi 0, %s26
    %s29 = sphi 0, %s27
    %s41 = sphi 0, %s43
    %s44 = sphi 0, %s41
    %s45 = sphi 0, %s44
    %s61 = sphi 0, %s45
    %s65 = sphi 0, %s65
    %s67 = sphi 0, %s65
    %s68 = sphi 0, %s67
    %s82 = sphi 0, %s68
    %s86 = sphi 0, %s86
    %s88 = sphi 0, %s86
    %s89 = sphi 0, %s88
    %s103 = sphi 0, %s89
    %s107 = sphi 0, %s107
    %s109 = sphi 0, %s107
    %s110 = sphi 0, %s109
    %s124 = sphi 0, %s110
    %s130 = sphi 0, %s132
    %s133 = sphi 0, %s130
    %s134 = sphi 0, %s133
    %s150 = sphi 0, %s134
    %s154 = sphi 0, %s154
    %s156 = sphi 0, %s154
    %s157 = sphi 0, %s156
    %s171 = sphi 0, %s157
    %s175 = sphi 0, %s175
    %s177 = sphi 0, %s175
    %s178 = sphi 0, %s177
    %s192 = sphi 0, %s178
    %s196 = sphi 0, %s196
    %s198 = sphi 0, %s196
    %s199 = sphi 0, %s198
    %s213 = sphi 0, %s199
    %s217 = sphi 0, %s217
    %s219 = sphi 0, %s217
    %s220 = sphi 0, %s219
    %s234 = sphi 0, %s220
    %s238 = sphi 0, %s238
    %s240 = sphi 0, %s238
    %s241 = sphi 0, %s240
    %s255 = sphi 0, %s241
    %s259 = sphi 0, %s259
    %s261 = sphi 0, %s259
    %s262 = sphi 0, %s261
    %s276 = sphi 0, %s262
    %s284 = sphi 0, %s286
    %s287 = sphi 0, %s284
    %s288 = sphi 0, %s287
    %s304 = sphi 0, %s288
  $region4: #{pointnet_seg_forward.3} parent=0 // loop_header_branch
    %20 = sbr.rel (%p18) target = $region8
  $region5: #{pointnet_seg_forward.3} parent=0 // loop_body
    %s22 = ssub.s32 %s17, 1
    %s23 = ssub.s32 %s17, 2
    %s30 = sadd.s32 1, %s25
    %p31 = scmp.ge.s32.totalorder %s30, 1
    %s32 = scalar_select %p31, 0, %s30
    %s33 = sadd.s32 1, %s24
    %s34 = scalar_select %p31, %s33, %s24
    %p35 = scmp.ge.s32.totalorder %s34, 2
    %s36 = scalar_select %p35, 0, %s34
    %s37 = ssub.s32 %s24, %s36
    %s38 = ssub.s32 %s25, %s32
    %s39 = sor.u32 %s37, %s38
    %p40 = scmp.eq.s32.totalorder %s39, 0
    %s42 = sadd.s32 %s41, 1
    %s43 = scalar_select %p40, %s41, %s42
    %p46 = pneg %p40
    %p47 = scmp.eq.s32.totalorder %s17, 1
    %p48 = por %p46, %p47
    %p49 = scmp.ne.s32.totalorder %s41, %s44
    %p50 = scmp.eq.s32.totalorder %s17, 0
    %p51 = por %p49, %p50
    %p52 = scmp.ne.s32.totalorder %s41, %s44
    %p53 = scmp.eq.s32.totalorder %s22, 1
    %p54 = por %p52, %p53
    %p55 = scmp.ne.s32.totalorder %s44, %s45
    %p56 = scmp.eq.s32.totalorder %s22, 0
    %p57 = por %p55, %p56
    %p58 = scmp.ne.s32.totalorder %s44, %s45
    %p59 = scmp.eq.s32.totalorder %s23, 1
    %p60 = por %p58, %p59
    %p62 = scmp.ne.s32.totalorder %s45, %s61
    %p63 = scmp.eq.s32.totalorder %s23, 0
    %p64 = por %p62, %p63
    %s66 = sadd.s32 %s65, 1
    %p69 = scmp.eq.s32.totalorder %s17, 1
    %p70 = scmp.ne.s32.totalorder %s65, %s67
    %p71 = scmp.eq.s32.totalorder %s17, 0
    %p72 = por %p70, %p71
    %p73 = scmp.ne.s32.totalorder %s65, %s67
    %p74 = scmp.eq.s32.totalorder %s22, 1
    %p75 = por %p73, %p74
    %p76 = scmp.ne.s32.totalorder %s67, %s68
    %p77 = scmp.eq.s32.totalorder %s22, 0
    %p78 = por %p76, %p77
    %p79 = scmp.ne.s32.totalorder %s67, %s68
    %p80 = scmp.eq.s32.totalorder %s23, 1
    %p81 = por %p79, %p80
    %p83 = scmp.ne.s32.totalorder %s68, %s82
    %p84 = scmp.eq.s32.totalorder %s23, 0
    %p85 = por %p83, %p84
    %s87 = sadd.s32 %s86, 1
    %p90 = scmp.eq.s32.totalorder %s17, 1
    %p91 = scmp.ne.s32.totalorder %s86, %s88
    %p92 = scmp.eq.s32.totalorder %s17, 0
    %p93 = por %p91, %p92
    %p94 = scmp.ne.s32.totalorder %s86, %s88
    %p95 = scmp.eq.s32.totalorder %s22, 1
    %p96 = por %p94, %p95
    %p97 = scmp.ne.s32.totalorder %s88, %s89
    %p98 = scmp.eq.s32.totalorder %s22, 0
    %p99 = por %p97, %p98
    %p100 = scmp.ne.s32.totalorder %s88, %s89
    %p101 = scmp.eq.s32.totalorder %s23, 1
    %p102 = por %p100, %p101
    %p104 = scmp.ne.s32.totalorder %s89, %s103
    %p105 = scmp.eq.s32.totalorder %s23, 0
    %p106 = por %p104, %p105
    %s108 = sadd.s32 %s107, 1
    %p111 = scmp.eq.s32.totalorder %s17, 1
    %p112 = scmp.ne.s32.totalorder %s107, %s109
    %p113 = scmp.eq.s32.totalorder %s17, 0
    %p114 = por %p112, %p113
    %p115 = scmp.ne.s32.totalorder %s107, %s109
    %p116 = scmp.eq.s32.totalorder %s22, 1
    %p117 = por %p115, %p116
    %p118 = scmp.ne.s32.totalorder %s109, %s110
    %p119 = scmp.eq.s32.totalorder %s22, 0
    %p120 = por %p118, %p119
    %p121 = scmp.ne.s32.totalorder %s109, %s110
    %p122 = scmp.eq.s32.totalorder %s23, 1
    %p123 = por %p121, %p122
    %p125 = scmp.ne.s32.totalorder %s110, %s124
    %p126 = scmp.eq.s32.totalorder %s23, 0
    %p127 = por %p125, %p126
    %s128 = ssub.s32 %s24, %s36
    %p129 = scmp.eq.s32.totalorder %s128, 0
    %s131 = sadd.s32 %s130, 1
    %s132 = scalar_select %p129, %s130, %s131
    %p135 = pneg %p129
    %p136 = scmp.eq.s32.totalorder %s17, 1
    %p137 = por %p135, %p136
    %p138 = scmp.ne.s32.totalorder %s130, %s133
    %p139 = scmp.eq.s32.totalorder %s17, 0
    %p140 = por %p138, %p139
    %p141 = scmp.ne.s32.totalorder %s130, %s133
    %p142 = scmp.eq.s32.totalorder %s22, 1
    %p143 = por %p141, %p142
    %p144 = scmp.ne.s32.totalorder %s133, %s134
    %p145 = scmp.eq.s32.totalorder %s22, 0
    %p146 = por %p144, %p145
    %p147 = scmp.ne.s32.totalorder %s133, %s134
    %p148 = scmp.eq.s32.totalorder %s23, 1
    %p149 = por %p147, %p148
    %p151 = scmp.ne.s32.totalorder %s134, %s150
    %p152 = scmp.eq.s32.totalorder %s23, 0
    %p153 = por %p151, %p152
    %s155 = sadd.s32 %s154, 1
    %p158 = scmp.eq.s32.totalorder %s17, 1
    %p159 = scmp.ne.s32.totalorder %s154, %s156
    %p160 = scmp.eq.s32.totalorder %s17, 0
    %p161 = por %p159, %p160
    %p162 = scmp.ne.s32.totalorder %s154, %s156
    %p163 = scmp.eq.s32.totalorder %s22, 1
    %p164 = por %p162, %p163
    %p165 = scmp.ne.s32.totalorder %s156, %s157
    %p166 = scmp.eq.s32.totalorder %s22, 0
    %p167 = por %p165, %p166
    %p168 = scmp.ne.s32.totalorder %s156, %s157
    %p169 = scmp.eq.s32.totalorder %s23, 1
    %p170 = por %p168, %p169
    %p172 = scmp.ne.s32.totalorder %s157, %s171
    %p173 = scmp.eq.s32.totalorder %s23, 0
    %p174 = por %p172, %p173
    %s176 = sadd.s32 %s175, 1
    %p179 = scmp.eq.s32.totalorder %s17, 1
    %p180 = scmp.ne.s32.totalorder %s175, %s177
    %p181 = scmp.eq.s32.totalorder %s17, 0
    %p182 = por %p180, %p181
    %p183 = scmp.ne.s32.totalorder %s175, %s177
    %p184 = scmp.eq.s32.totalorder %s22, 1
    %p185 = por %p183, %p184
    %p186 = scmp.ne.s32.totalorder %s177, %s178
    %p187 = scmp.eq.s32.totalorder %s22, 0
    %p188 = por %p186, %p187
    %p189 = scmp.ne.s32.totalorder %s177, %s178
    %p190 = scmp.eq.s32.totalorder %s23, 1
    %p191 = por %p189, %p190
    %p193 = scmp.ne.s32.totalorder %s178, %s192
    %p194 = scmp.eq.s32.totalorder %s23, 0
    %p195 = por %p193, %p194
    %s197 = sadd.s32 %s196, 1
    %p200 = scmp.eq.s32.totalorder %s17, 1
    %p201 = scmp.ne.s32.totalorder %s196, %s198
    %p202 = scmp.eq.s32.totalorder %s17, 0
    %p203 = por %p201, %p202
    %p204 = scmp.ne.s32.totalorder %s196, %s198
    %p205 = scmp.eq.s32.totalorder %s22, 1
    %p206 = por %p204, %p205
    %p207 = scmp.ne.s32.totalorder %s198, %s199
    %p208 = scmp.eq.s32.totalorder %s22, 0
    %p209 = por %p207, %p208
    %p210 = scmp.ne.s32.totalorder %s198, %s199
    %p211 = scmp.eq.s32.totalorder %s23, 1
    %p212 = por %p210, %p211
    %p214 = scmp.ne.s32.totalorder %s199, %s213
    %p215 = scmp.eq.s32.totalorder %s23, 0
    %p216 = por %p214, %p215
    %s218 = sadd.s32 %s217, 1
    %p221 = scmp.eq.s32.totalorder %s17, 1
    %p222 = scmp.ne.s32.totalorder %s217, %s219
    %p223 = scmp.eq.s32.totalorder %s17, 0
    %p224 = por %p222, %p223
    %p225 = scmp.ne.s32.totalorder %s217, %s219
    %p226 = scmp.eq.s32.totalorder %s22, 1
    %p227 = por %p225, %p226
    %p228 = scmp.ne.s32.totalorder %s219, %s220
    %p229 = scmp.eq.s32.totalorder %s22, 0
    %p230 = por %p228, %p229
    %p231 = scmp.ne.s32.totalorder %s219, %s220
    %p232 = scmp.eq.s32.totalorder %s23, 1
    %p233 = por %p231, %p232
    %p235 = scmp.ne.s32.totalorder %s220, %s234
    %p236 = scmp.eq.s32.totalorder %s23, 0
    %p237 = por %p235, %p236
    %s239 = sadd.s32 %s238, 1
    %p242 = scmp.eq.s32.totalorder %s17, 1
    %p243 = scmp.ne.s32.totalorder %s238, %s240
    %p244 = scmp.eq.s32.totalorder %s17, 0
    %p245 = por %p243, %p244
    %p246 = scmp.ne.s32.totalorder %s238, %s240
    %p247 = scmp.eq.s32.totalorder %s22, 1
    %p248 = por %p246, %p247
    %p249 = scmp.ne.s32.totalorder %s240, %s241
    %p250 = scmp.eq.s32.totalorder %s22, 0
    %p251 = por %p249, %p250
    %p252 = scmp.ne.s32.totalorder %s240, %s241
    %p253 = scmp.eq.s32.totalorder %s23, 1
    %p254 = por %p252, %p253
    %p256 = scmp.ne.s32.totalorder %s241, %s255
    %p257 = scmp.eq.s32.totalorder %s23, 0
    %p258 = por %p256, %p257
    %s260 = sadd.s32 %s259, 1
    %p263 = scmp.eq.s32.totalorder %s17, 1
    %p264 = scmp.ne.s32.totalorder %s259, %s261
    %p265 = scmp.eq.s32.totalorder %s17, 0
    %p266 = por %p264, %p265
    %p267 = scmp.ne.s32.totalorder %s259, %s261
    %p268 = scmp.eq.s32.totalorder %s22, 1
    %p269 = por %p267, %p268
    %p270 = scmp.ne.s32.totalorder %s261, %s262
    %p271 = scmp.eq.s32.totalorder %s22, 0
    %p272 = por %p270, %p271
    %p273 = scmp.ne.s32.totalorder %s261, %s262
    %p274 = scmp.eq.s32.totalorder %s23, 1
    %p275 = por %p273, %p274
    %p277 = scmp.ne.s32.totalorder %s262, %s276
    %p278 = scmp.eq.s32.totalorder %s23, 0
    %p279 = por %p277, %p278
    %s280 = ssub.s32 %s24, %s36
    %s281 = ssub.s32 %s25, %s32
    %s282 = sor.u32 %s280, %s281
    %p283 = scmp.eq.s32.totalorder %s282, 0
    %s285 = sadd.s32 %s284, 1
    %s286 = scalar_select %p283, %s284, %s285
    %p289 = pneg %p283
    %p290 = scmp.eq.s32.totalorder %s17, 1
    %p291 = por %p289, %p290
    %p292 = scmp.ne.s32.totalorder %s284, %s287
    %p293 = scmp.eq.s32.totalorder %s17, 0
    %p294 = por %p292, %p293
    %p295 = scmp.ne.s32.totalorder %s284, %s287
    %p296 = scmp.eq.s32.totalorder %s22, 1
    %p297 = por %p295, %p296
    %p298 = scmp.ne.s32.totalorder %s287, %s288
    %p299 = scmp.eq.s32.totalorder %s22, 0
    %p300 = por %p298, %p299
    %p301 = scmp.ne.s32.totalorder %s287, %s288
    %p302 = scmp.eq.s32.totalorder %s23, 1
    %p303 = por %p301, %p302
    %p305 = scmp.ne.s32.totalorder %s288, %s304
    %p306 = scmp.eq.s32.totalorder %s23, 0
    %p307 = por %p305, %p306
    %p308 = scmp.le.s32.totalorder 1, %s17
    %p309 = scmp.lt.s32.totalorder %s17, 3
    %p310 = pnand %p308, %p309
    %p311 = pneg %p310
    // Predicated region
    $region9: #{pointnet_seg_forward.3} parent=5 // pred_check
      _
    $region10: #{pointnet_seg_forward.3} parent=5 // pred_check_branch
      %313 = sbr.rel (%p310) target = $region12
    $region11: #{pointnet_seg_forward.3} parent=5 // pred_region
      %s314 = ssub.s32 %s17, 1
      // Predicated region
      $region13: #{pointnet_seg_forward.3} parent=11 // pred_check
        %p315 = pneg %p78
      $region14: #{pointnet_seg_forward.3} parent=11 // pred_check_branch
        %317 = sbr.rel (%p315) target = $region16
      $region15: #{pointnet_seg_forward.3} parent=11 // pred_region
        _
      $region16: #{pointnet_seg_forward.3} parent=11 // pred_fallthru
        _
      // Predicated region
      $region17: #{pointnet_seg_forward.3} parent=11 // pred_check
        %p318 = pneg %p99
      $region18: #{pointnet_seg_forward.3} parent=11 // pred_check_branch
        %320 = sbr.rel (%p318) target = $region20
      $region19: #{pointnet_seg_forward.3} parent=11 // pred_region
        _
      $region20: #{pointnet_seg_forward.3} parent=11 // pred_fallthru
        _
      // Predicated region
      $region21: #{pointnet_seg_forward.3} parent=11 // pred_check
        %p321 = pneg %p120
      $region22: #{pointnet_seg_forward.3} parent=11 // pred_check_branch
        %323 = sbr.rel (%p321) target = $region24
      $region23: #{pointnet_seg_forward.3} parent=11 // pred_region
        _
      $region24: #{pointnet_seg_forward.3} parent=11 // pred_fallthru
        _
      // Predicated region
      $region25: #{pointnet_seg_forward.3} parent=11 // pred_check
        %p324 = pneg %p167
      $region26: #{pointnet_seg_forward.3} parent=11 // pred_check_branch
        %326 = sbr.rel (%p324) target = $region28
      $region27: #{pointnet_seg_forward.3} parent=11 // pred_region
        _
      $region28: #{pointnet_seg_forward.3} parent=11 // pred_fallthru
        _
      // Predicated region
      $region29: #{pointnet_seg_forward.3} parent=11 // pred_check
        %p327 = pneg %p188
      $region30: #{pointnet_seg_forward.3} parent=11 // pred_check_branch
        %329 = sbr.rel (%p327) target = $region32
      $region31: #{pointnet_seg_forward.3} parent=11 // pred_region
        _
      $region32: #{pointnet_seg_forward.3} parent=11 // pred_fallthru
        _
      // Predicated region
      $region33: #{pointnet_seg_forward.3} parent=11 // pred_check
        %p330 = pneg %p209
      $region34: #{pointnet_seg_forward.3} parent=11 // pred_check_branch
        %332 = sbr.rel (%p330) target = $region36
      $region35: #{pointnet_seg_forward.3} parent=11 // pred_region
        _
      $region36: #{pointnet_seg_forward.3} parent=11 // pred_fallthru
        _
      // Predicated region
      $region37: #{pointnet_seg_forward.3} parent=11 // pred_check
        %p333 = pneg %p230
      $region38: #{pointnet_seg_forward.3} parent=11 // pred_check_branch
        %335 = sbr.rel (%p333) target = $region40
      $region39: #{pointnet_seg_forward.3} parent=11 // pred_region
        _
      $region40: #{pointnet_seg_forward.3} parent=11 // pred_fallthru
        _
      // Predicated region
      $region41: #{pointnet_seg_forward.3} parent=11 // pred_check
        %p336 = pneg %p251
      $region42: #{pointnet_seg_forward.3} parent=11 // pred_check_branch
        %338 = sbr.rel (%p336) target = $region44
      $region43: #{pointnet_seg_forward.3} parent=11 // pred_region
        _
      $region44: #{pointnet_seg_forward.3} parent=11 // pred_fallthru
        _
      // Predicated region
      $region45: #{pointnet_seg_forward.3} parent=11 // pred_check
        %p339 = pneg %p272
      $region46: #{pointnet_seg_forward.3} parent=11 // pred_check_branch
        %341 = sbr.rel (%p339) target = $region48
      $region47: #{pointnet_seg_forward.3} parent=11 // pred_region
        _
      $region48: #{pointnet_seg_forward.3} parent=11 // pred_fallthru
        _
    $region12: #{pointnet_seg_forward.3} parent=5 // pred_fallthru
      _
    %p342 = scmp.lt.s32.totalorder %s17, 2
    // Predicated region
    $region49: #{pointnet_seg_forward.3} parent=5 // pred_check
      %p343 = pneg %p342
    $region50: #{pointnet_seg_forward.3} parent=5 // pred_check_branch
      %345 = sbr.rel (%p343) target = $region52
    $region51: #{pointnet_seg_forward.3} parent=5 // pred_region
      // Predicated region
      $region53: #{pointnet_seg_forward.3} parent=51 // pred_check
        %p346 = pneg %p51
      $region54: #{pointnet_seg_forward.3} parent=51 // pred_check_branch
        %348 = sbr.rel (%p346) target = $region56
      $region55: #{pointnet_seg_forward.3} parent=51 // pred_region
        %s349 = smul.u32 32, %s25
        %p350 = scmp.lt.s32.totalorder %s24, 1
        %s351 = scalar_select %p350, %s24, 1
        %p352 = scmp.lt.s32.totalorder %s349, 31
        %s353 = scalar_select %p352, %s349, 31
        %s354 = smul.addr %s351, 32
        %s355 = sadd.s32 %s353, %s354
        %s356 = smul.addr %s355, 8
        %s357 = scalar_lea.vmem %s0, %s356
        %s358 = smul.u32 32, %s25
      $region56: #{pointnet_seg_forward.3} parent=51 // pred_fallthru
        _
      // Predicated region
      $region57: #{pointnet_seg_forward.3} parent=51 // pred_check
        %p359 = pneg %p140
      $region58: #{pointnet_seg_forward.3} parent=51 // pred_check_branch
        %361 = sbr.rel (%p359) target = $region60
      $region59: #{pointnet_seg_forward.3} parent=51 // pred_region
        %p362 = scmp.lt.s32.totalorder %s24, 1
        %s363 = scalar_select %p362, %s24, 1
        %s364 = smul.addr %s363, 4
        %s365 = scalar_lea.vmem %s4, %s364
      $region60: #{pointnet_seg_forward.3} parent=51 // pred_fallthru
        _
    $region52: #{pointnet_seg_forward.3} parent=5 // pred_fallthru
      _
    %p366 = scmp.le.s32.totalorder 1, %s17
    %p367 = scmp.lt.s32.totalorder %s17, 3
    %p368 = pnand %p366, %p367
    %p369 = pneg %p368
    // Predicated region
    $region61: #{pointnet_seg_forward.3} parent=5 // pred_check
      _
    $region62: #{pointnet_seg_forward.3} parent=5 // pred_check_branch
      %371 = sbr.rel (%p368) target = $region64
    $region63: #{pointnet_seg_forward.3} parent=5 // pred_region
      %s372 = ssub.s32 %s17, 1
      %s373 = smul.u32 32, %s27
      %p374 = scmp.lt.s32.totalorder %s26, 1
      %s375 = scalar_select %p374, %s26, 1
      %p376 = scmp.lt.s32.totalorder %s373, 31
      %s377 = scalar_select %p376, %s373, 31
      %s378 = smul.addr %s375, 32
      %s379 = sadd.s32 %s377, %s378
      %s380 = smul.addr %s379, 8
      %s381 = scalar_lea.vmem %s0, %s380
      %p382 = pneg %p57
      %p383 = pneg %p54
      %p384 = pneg %p78
      %p385 = pneg %p75
      %p386 = pneg %p99
      %p387 = pneg %p96
      %p388 = pneg %p120
      %p389 = pneg %p117
      %p390 = scmp.lt.s32.totalorder %s26, 1
      %s391 = scalar_select %p390, %s26, 1
      %s392 = smul.addr %s391, 4
      %s393 = scalar_lea.vmem %s4, %s392
      %p394 = pneg %p146
      %p395 = pneg %p143
      %p396 = pneg %p167
      %p397 = pneg %p164
      %p398 = pneg %p188
      %p399 = pneg %p185
      %p400 = pneg %p209
      %p401 = pneg %p206
      %p402 = pneg %p230
      %p403 = pneg %p227
      %p404 = pneg %p251
      %p405 = pneg %p248
      %p406 = pneg %p272
      %p407 = pneg %p269
      %p408 = pneg %p300
      %p409 = pneg %p297
      %s410 = smul.u32 32, %s27
      %p411 = scmp.lt.s32.totalorder %s26, 1
      %s412 = scalar_select %p411, %s26, 1
      %p413 = scmp.lt.s32.totalorder %s410, 31
      %s414 = scalar_select %p413, %s410, 31
      %s415 = smul.addr %s412, 32
      %s416 = sadd.s32 %s414, %s415
      %s417 = smul.addr %s416, 8
      %s418 = scalar_lea.vmem %s11, %s417
      %s419 = smul.u32 32, %s27
      %p420 = scmp.lt.s32.totalorder %s26, 1
      %s421 = scalar_select %p420, %s26, 1
      %p422 = scmp.lt.s32.totalorder %s419, 31
      %s423 = scalar_select %p422, %s419, 31
      %s424 = smul.addr %s421, 32
      %s425 = sadd.s32 %s423, %s424
      %s426 = smul.addr %s425, 8
      %s427 = scalar_lea.vmem %s0, %s426
      %s428 = smul.u32 32, %s27
      %p429 = scmp.lt.s32.totalorder %s26, 1
      %s430 = scalar_select %p429, %s26, 1
      %s431 = smul.addr %s430, 4
      %s432 = scalar_lea.vmem %s4, %s431
      %s433 = smul.u32 32, %s27
      %p434 = scmp.lt.s32.totalorder %s26, 1
      %s435 = scalar_select %p434, %s26, 1
      %p436 = scmp.lt.s32.totalorder %s433, 31
      %s437 = scalar_select %p436, %s433, 31
      %s438 = smul.addr %s435, 32
      %s439 = sadd.s32 %s437, %s438
      %s440 = smul.addr %s439, 8
      %s441 = scalar_lea.vmem %s11, %s440
      %s442 = smul.u32 32, %s27
      %v444 = vld [vmem:[%s427] sm:$0xff]
      %v445 = vld [vmem:[%s427 + $0x8] sm:$0xff]
      %v446 = vld [vmem:[%s427 + $0x10] sm:$0xff]
      %v447 = vld [vmem:[%s427 + $0x18] sm:$0xff]
      %v448 = vld [vmem:[%s427 + $0x20] sm:$0xff]
      %v449 = vld [vmem:[%s427 + $0x28] sm:$0xff]
      %v450 = vld [vmem:[%s427 + $0x30] sm:$0xff]
      %v451 = vld [vmem:[%s427 + $0x38] sm:$0xff]
      %v452 = vld [vmem:[%s427 + $0x40] sm:$0xff]
      %v453 = vld [vmem:[%s427 + $0x48] sm:$0xff]
      %v454 = vld [vmem:[%s427 + $0x50] sm:$0xff]
      %v455 = vld [vmem:[%s427 + $0x58] sm:$0xff]
      %v456 = vld [vmem:[%s427 + $0x60] sm:$0xff]
      %v457 = vld [vmem:[%s427 + $0x68] sm:$0xff]
      %v458 = vld [vmem:[%s427 + $0x70] sm:$0xff]
      %v459 = vld [vmem:[%s427 + $0x78] sm:$0xff]
      %v460 = vld [vmem:[%s427 + $0x80] sm:$0xff]
      %v461 = vld [vmem:[%s427 + $0x88] sm:$0xff]
      %v462 = vld [vmem:[%s427 + $0x90] sm:$0xff]
      %v463 = vld [vmem:[%s427 + $0x98] sm:$0xff]
      %v464 = vld [vmem:[%s427 + $0xa0] sm:$0xff]
      %v465 = vld [vmem:[%s427 + $0xa8] sm:$0xff]
      %v466 = vld [vmem:[%s427 + $0xb0] sm:$0xff]
      %v467 = vld [vmem:[%s427 + $0xb8] sm:$0xff]
      %v468 = vld [vmem:[%s427 + $0xc0] sm:$0xff]
      %v469 = vld [vmem:[%s427 + $0xc8] sm:$0xff]
      %v470 = vld [vmem:[%s427 + $0xd0] sm:$0xff]
      %v471 = vld [vmem:[%s427 + $0xd8] sm:$0xff]
      %v472 = vld [vmem:[%s427 + $0xe0] sm:$0xff]
      %v473 = vld [vmem:[%s427 + $0xe8] sm:$0xff]
      %v474 = vld [vmem:[%s427 + $0xf0] sm:$0xff]
      %v475 = vld [vmem:[%s427 + $0xf8] sm:$0xff]
      %v476 = vpack.c.bf16 %v445, %v444
      %v477 = vpack.c.bf16 %v447, %v446
      %v478 = vpack.c.bf16 %v449, %v448
      %v479 = vpack.c.bf16 %v451, %v450
      %v480 = vpack.c.bf16 %v453, %v452
      %v481 = vpack.c.bf16 %v455, %v454
      %v482 = vpack.c.bf16 %v457, %v456
      %v483 = vpack.c.bf16 %v459, %v458
      %v484 = vpack.c.bf16 %v461, %v460
      %v485 = vpack.c.bf16 %v463, %v462
      %v486 = vpack.c.bf16 %v465, %v464
      %v487 = vpack.c.bf16 %v467, %v466
      %v488 = vpack.c.bf16 %v469, %v468
      %v489 = vpack.c.bf16 %v471, %v470
      %v490 = vpack.c.bf16 %v473, %v472
      %v491 = vpack.c.bf16 %v475, %v474
      %v492 = vld [vmem:[%s1] sm:$0xf]
      %v493 = vld [vmem:[%s2] sm:$0x1]
      %v495 = vlaneseq
      %v496 = vshrl.u32 %v495, 7
      %v497 = vsub.s32 0, %v496
      %v498 = vrot.slane %v493, %v497
      %vm500 = vcmask 64512
      %v502 = vsel %vm500, %v476, 0
      %v505 = vsel %vm500, %v477, 0
      %v508 = vsel %vm500, %v478, 0
      %v511 = vsel %vm500, %v479, 0
      %v514 = vsel %vm500, %v480, 0
      %v517 = vsel %vm500, %v481, 0
      %v520 = vsel %vm500, %v482, 0
      %v523 = vsel %vm500, %v483, 0
      %v526 = vsel %vm500, %v484, 0
      %v529 = vsel %vm500, %v485, 0
      %v532 = vsel %vm500, %v486, 0
      %v535 = vsel %vm500, %v487, 0
      %v538 = vsel %vm500, %v488, 0
      %v541 = vsel %vm500, %v489, 0
      %v544 = vsel %vm500, %v490, 0
      %v547 = vsel %vm500, %v491, 0
      %vm549 = vcmask 1043456
      %v551 = vsel %vm549, %v492, 0
      %553 = vmatprep.subr.bf16.mxu0 0
      %554 = vmatpush1.bf16.msra.mxu0 0
      %555 = vmatprep.subr.bf16.mxu0 0
      %556 = vmatpush1.bf16.msra.mxu0 0
      %557 = vmatprep.subr.bf16.mxu0 0
      %558 = vmatpush1.bf16.msra.mxu0 0
      %559 = vmatprep.subr.bf16.mxu0 0
      %560 = vmatpush1.bf16.msra.mxu0 0
      %561 = vmatprep.subr.bf16.mxu0 0
      %562 = vmatpush1.bf16.msra.mxu0 0
      %563 = vmatprep.subr.bf16.mxu0 0
      %564 = vmatpush1.bf16.msra.mxu0 0
      %565 = vmatprep.subr.bf16.mxu0 0
      %566 = vmatpush1.bf16.msra.mxu0 0
      %567 = vmatprep.subr.bf16.mxu0 0
      %568 = vmatpush1.bf16.msra.mxu0 %v551
      %569 = vmatprep.subr.bf16.mxu0 0
      %570 = vmatpush2.bf16.msra.mxu0 0
      %571 = vmatprep.subr.bf16.mxu0 0
      %572 = vmatpush2.bf16.msra.mxu0 0
      %573 = vmatprep.subr.bf16.mxu0 0
      %574 = vmatpush2.bf16.msra.mxu0 0
      %575 = vmatprep.subr.bf16.mxu0 0
      %576 = vmatpush2.bf16.msra.mxu0 0
      %577 = vmatprep.subr.bf16.mxu0 0
      %578 = vmatpush2.bf16.msra.mxu0 0
      %579 = vmatprep.subr.bf16.mxu0 0
      %580 = vmatpush2.bf16.msra.mxu0 0
      %581 = vmatprep.subr.bf16.mxu0 0
      %582 = vmatpush2.bf16.msra.mxu0 0
      %583 = vmatprep.subr.bf16.mxu0 0
      %584 = vmatpush2.bf16.msra.mxu0 0
      %585 = vmatprep.mubr.bf16.mxu0 0
      %586 = vmatmul.mubr.bf16.gmra.mxu0 %v502
      %v587 = vpop.f32.mrf.mxu0
      %v588 = vadd.f32 %v498, %v587
      %v589 = vpop.f32.mrf.mxu0
      %v590 = vpop.f32.mrf.mxu0
      %v591 = vadd.f32 %v498, %v590
      %v592 = vpop.f32.mrf.mxu0
      %593 = vmatprep.mubr.bf16.mxu0 0
      %594 = vmatmul.mubr.bf16.gmra.mxu0 %v505
      %v595 = vpop.f32.mrf.mxu0
      %v596 = vadd.f32 %v498, %v595
      %v597 = vpop.f32.mrf.mxu0
      %v598 = vpop.f32.mrf.mxu0
      %v599 = vadd.f32 %v498, %v598
      %v600 = vpop.f32.mrf.mxu0
      %601 = vmatprep.mubr.bf16.mxu0 0
      %602 = vmatmul.mubr.bf16.gmra.mxu0 %v508
      %v603 = vpop.f32.mrf.mxu0
      %v604 = vadd.f32 %v498, %v603
      %v605 = vpop.f32.mrf.mxu0
      %v606 = vpop.f32.mrf.mxu0
      %v607 = vadd.f32 %v498, %v606
      %v608 = vpop.f32.mrf.mxu0
      %609 = vmatprep.mubr.bf16.mxu0 0
      %610 = vmatmul.mubr.bf16.gmra.mxu0 %v511
      %v611 = vpop.f32.mrf.mxu0
      %v612 = vadd.f32 %v498, %v611
      %v613 = vpop.f32.mrf.mxu0
      %v614 = vpop.f32.mrf.mxu0
      %v615 = vadd.f32 %v498, %v614
      %v616 = vpop.f32.mrf.mxu0
      %617 = vmatprep.mubr.bf16.mxu0 0
      %618 = vmatmul.mubr.bf16.gmra.mxu0 %v514
      %v619 = vpop.f32.mrf.mxu0
      %v620 = vadd.f32 %v498, %v619
      %v621 = vpop.f32.mrf.mxu0
      %v622 = vpop.f32.mrf.mxu0
      %v623 = vadd.f32 %v498, %v622
      %v624 = vpop.f32.mrf.mxu0
      %625 = vmatprep.mubr.bf16.mxu0 0
      %626 = vmatmul.mubr.bf16.gmra.mxu0 %v517
      %v627 = vpop.f32.mrf.mxu0
      %v628 = vadd.f32 %v498, %v627
      %v629 = vpop.f32.mrf.mxu0
      %v630 = vpop.f32.mrf.mxu0
      %v631 = vadd.f32 %v498, %v630
      %v632 = vpop.f32.mrf.mxu0
      %633 = vmatprep.mubr.bf16.mxu0 0
      %634 = vmatmul.mubr.bf16.gmra.mxu0 %v520
      %v635 = vpop.f32.mrf.mxu0
      %v636 = vadd.f32 %v498, %v635
      %v637 = vpop.f32.mrf.mxu0
      %v638 = vpop.f32.mrf.mxu0
      %v639 = vadd.f32 %v498, %v638
      %v640 = vpop.f32.mrf.mxu0
      %641 = vmatprep.mubr.bf16.mxu0 0
      %642 = vmatmul.mubr.bf16.gmra.mxu0 %v523
      %v643 = vpop.f32.mrf.mxu0
      %v644 = vadd.f32 %v498, %v643
      %v645 = vpop.f32.mrf.mxu0
      %v646 = vpop.f32.mrf.mxu0
      %v647 = vadd.f32 %v498, %v646
      %v648 = vpop.f32.mrf.mxu0
      %649 = vmatprep.mubr.bf16.mxu0 0
      %650 = vmatmul.mubr.bf16.gmra.mxu0 %v526
      %v651 = vpop.f32.mrf.mxu0
      %v652 = vadd.f32 %v498, %v651
      %v653 = vpop.f32.mrf.mxu0
      %v654 = vpop.f32.mrf.mxu0
      %v655 = vadd.f32 %v498, %v654
      %v656 = vpop.f32.mrf.mxu0
      %657 = vmatprep.mubr.bf16.mxu0 0
      %658 = vmatmul.mubr.bf16.gmra.mxu0 %v529
      %v659 = vpop.f32.mrf.mxu0
      %v660 = vadd.f32 %v498, %v659
      %v661 = vpop.f32.mrf.mxu0
      %v662 = vpop.f32.mrf.mxu0
      %v663 = vadd.f32 %v498, %v662
      %v664 = vpop.f32.mrf.mxu0
      %665 = vmatprep.mubr.bf16.mxu0 0
      %666 = vmatmul.mubr.bf16.gmra.mxu0 %v532
      %v667 = vpop.f32.mrf.mxu0
      %v668 = vadd.f32 %v498, %v667
      %v669 = vpop.f32.mrf.mxu0
      %v670 = vpop.f32.mrf.mxu0
      %v671 = vadd.f32 %v498, %v670
      %v672 = vpop.f32.mrf.mxu0
      %673 = vmatprep.mubr.bf16.mxu0 0
      %674 = vmatmul.mubr.bf16.gmra.mxu0 %v535
      %v675 = vpop.f32.mrf.mxu0
      %v676 = vadd.f32 %v498, %v675
      %v677 = vpop.f32.mrf.mxu0
      %v678 = vpop.f32.mrf.mxu0
      %v679 = vadd.f32 %v498, %v678
      %v680 = vpop.f32.mrf.mxu0
      %681 = vmatprep.mubr.bf16.mxu0 0
      %682 = vmatmul.mubr.bf16.gmra.mxu0 %v538
      %v683 = vpop.f32.mrf.mxu0
      %v684 = vadd.f32 %v498, %v683
      %v685 = vpop.f32.mrf.mxu0
      %v686 = vpop.f32.mrf.mxu0
      %v687 = vadd.f32 %v498, %v686
      %v688 = vpop.f32.mrf.mxu0
      %689 = vmatprep.mubr.bf16.mxu0 0
      %690 = vmatmul.mubr.bf16.gmra.mxu0 %v541
      %v691 = vpop.f32.mrf.mxu0
      %v692 = vadd.f32 %v498, %v691
      %v693 = vpop.f32.mrf.mxu0
      %v694 = vpop.f32.mrf.mxu0
      %v695 = vadd.f32 %v498, %v694
      %v696 = vpop.f32.mrf.mxu0
      %697 = vmatprep.mubr.bf16.mxu0 0
      %698 = vmatmul.mubr.bf16.gmra.mxu0 %v544
      %v699 = vpop.f32.mrf.mxu0
      %v700 = vadd.f32 %v498, %v699
      %v701 = vpop.f32.mrf.mxu0
      %v702 = vpop.f32.mrf.mxu0
      %v703 = vadd.f32 %v498, %v702
      %v704 = vpop.f32.mrf.mxu0
      %705 = vmatprep.mubr.bf16.mxu0 0
      %706 = vmatmul.mubr.bf16.gmra.mxu0 %v547
      %v707 = vpop.f32.mrf.mxu0
      %v708 = vadd.f32 %v498, %v707
      %v709 = vpop.f32.mrf.mxu0
      %v710 = vpop.f32.mrf.mxu0
      %v711 = vadd.f32 %v498, %v710
      %v712 = vpop.f32.mrf.mxu0
      %713 = vdwg.mxu0
      %v714 = vmax.f32 %v588, 0.0
      %v715 = vmax.f32 %v591, 0.0
      %v716 = vmax.f32 %v596, 0.0
      %v717 = vmax.f32 %v599, 0.0
      %v718 = vmax.f32 %v604, 0.0
      %v719 = vmax.f32 %v607, 0.0
      %v720 = vmax.f32 %v612, 0.0
      %v721 = vmax.f32 %v615, 0.0
      %v722 = vmax.f32 %v620, 0.0
      %v723 = vmax.f32 %v623, 0.0
      %v724 = vmax.f32 %v628, 0.0
      %v725 = vmax.f32 %v631, 0.0
      %v726 = vmax.f32 %v636, 0.0
      %v727 = vmax.f32 %v639, 0.0
      %v728 = vmax.f32 %v644, 0.0
      %v729 = vmax.f32 %v647, 0.0
      %v730 = vmax.f32 %v652, 0.0
      %v731 = vmax.f32 %v655, 0.0
      %v732 = vmax.f32 %v660, 0.0
      %v733 = vmax.f32 %v663, 0.0
      %v734 = vmax.f32 %v668, 0.0
      %v735 = vmax.f32 %v671, 0.0
      %v736 = vmax.f32 %v676, 0.0
      %v737 = vmax.f32 %v679, 0.0
      %v738 = vmax.f32 %v684, 0.0
      %v739 = vmax.f32 %v687, 0.0
      %v740 = vmax.f32 %v692, 0.0
      %v741 = vmax.f32 %v695, 0.0
      %v742 = vmax.f32 %v700, 0.0
      %v743 = vmax.f32 %v703, 0.0
      %v744 = vmax.f32 %v708, 0.0
      %v745 = vmax.f32 %v711, 0.0
      %v746 = vld [vmem:[%s432] sm:$0xf]
      %v747 = vpack.c.bf16 %v715, %v714
      %v748 = vpack.c.bf16 %v717, %v716
      %v749 = vpack.c.bf16 %v719, %v718
      %v750 = vpack.c.bf16 %v721, %v720
      %v751 = vpack.c.bf16 %v723, %v722
      %v752 = vpack.c.bf16 %v725, %v724
      %v753 = vpack.c.bf16 %v727, %v726
      %v754 = vpack.c.bf16 %v729, %v728
      %v755 = vpack.c.bf16 %v731, %v730
      %v756 = vpack.c.bf16 %v733, %v732
      %v757 = vpack.c.bf16 %v735, %v734
      %v758 = vpack.c.bf16 %v737, %v736
      %v759 = vpack.c.bf16 %v739, %v738
      %v760 = vpack.c.bf16 %v741, %v740
      %v761 = vpack.c.bf16 %v743, %v742
      %v762 = vpack.c.bf16 %v745, %v744
      %v763 = vld [vmem:[%s3] sm:$0xff]
      %v764 = vld [vmem:[%s3 + $0x8] sm:$0xff]
      %v765 = vld [vmem:[%s3 + $0x10] sm:$0xff]
      %v766 = vld [vmem:[%s3 + $0x18] sm:$0xff]
      %v767 = vld [vmem:[%s3 + $0x20] sm:$0xff]
      %v768 = vld [vmem:[%s3 + $0x28] sm:$0xff]
      %v769 = vld [vmem:[%s3 + $0x30] sm:$0xff]
      %v770 = vld [vmem:[%s3 + $0x38] sm:$0xff]
      %v771 = vld [vmem:[%s3 + $0x40] sm:$0xff]
      %v772 = vld [vmem:[%s3 + $0x48] sm:$0xff]
      %v773 = vld [vmem:[%s3 + $0x50] sm:$0xff]
      %v774 = vld [vmem:[%s3 + $0x58] sm:$0xff]
      %v775 = vld [vmem:[%s3 + $0x60] sm:$0xff]
      %v776 = vld [vmem:[%s3 + $0x68] sm:$0xff]
      %v777 = vld [vmem:[%s3 + $0x70] sm:$0xff]
      %v778 = vld [vmem:[%s3 + $0x78] sm:$0xff]
      %v780 = vlaneseq
      %v781 = vshrl.u32 %v780, 7
      %v782 = vsub.s32 0, %v781
      %v783 = vrot.slane %v746, %v782
      %v784 = vlaneseq
      %v785 = vshrl.u32 %v784, 7
      %v786 = vsub.s32 1, %v785
      %v787 = vrot.slane %v746, %v786
      %v788 = vlaneseq
      %v789 = vshrl.u32 %v788, 7
      %v790 = vsub.s32 2, %v789
      %v791 = vrot.slane %v746, %v790
      %v792 = vlaneseq
      %v793 = vshrl.u32 %v792, 7
      %v794 = vsub.s32 3, %v793
      %v795 = vrot.slane %v746, %v794
      %v816 = vunpack.c.l.b16 %v763
      %v817 = vunpack.c.h.b16 %v763
      %v818 = vunpack.c.l.b16 %v764
      %v819 = vunpack.c.h.b16 %v764
      %v820 = vunpack.c.l.b16 %v765
      %v821 = vunpack.c.h.b16 %v765
      %v822 = vunpack.c.l.b16 %v766
      %v823 = vunpack.c.h.b16 %v766
      %v824 = vunpack.c.l.b16 %v767
      %v825 = vunpack.c.h.b16 %v767
      %v826 = vunpack.c.l.b16 %v768
      %v827 = vunpack.c.h.b16 %v768
      %v828 = vunpack.c.l.b16 %v769
      %v829 = vunpack.c.h.b16 %v769
      %v830 = vunpack.c.l.b16 %v770
      %v831 = vunpack.c.h.b16 %v770
      %v832 = vunpack.c.l.b16 %v771
      %v833 = vunpack.c.h.b16 %v771
      %v834 = vunpack.c.l.b16 %v772
      %v835 = vunpack.c.h.b16 %v772
      %v836 = vunpack.c.l.b16 %v773
      %v837 = vunpack.c.h.b16 %v773
      %v838 = vunpack.c.l.b16 %v774
      %v839 = vunpack.c.h.b16 %v774
      %v840 = vunpack.c.l.b16 %v775
      %v841 = vunpack.c.h.b16 %v775
      %v842 = vunpack.c.l.b16 %v776
      %v843 = vunpack.c.h.b16 %v776
      %v844 = vunpack.c.l.b16 %v777
      %v845 = vunpack.c.h.b16 %v777
      %v846 = vunpack.c.l.b16 %v778
      %v847 = vunpack.c.h.b16 %v778
      %v848 = vpack.c.b16 %v820, %v816
      %v849 = vpack.c.b16 %v821, %v817
      %v850 = vpack.c.b16 %v822, %v818
      %v851 = vpack.c.b16 %v823, %v819
      %v852 = vpack.c.b16 %v828, %v824
      %v853 = vpack.c.b16 %v829, %v825
      %v854 = vpack.c.b16 %v830, %v826
      %v855 = vpack.c.b16 %v831, %v827
      %v856 = vpack.c.b16 %v836, %v832
      %v857 = vpack.c.b16 %v837, %v833
      %v858 = vpack.c.b16 %v838, %v834
      %v859 = vpack.c.b16 %v839, %v835
      %v860 = vpack.c.b16 %v844, %v840
      %v861 = vpack.c.b16 %v845, %v841
      %v862 = vpack.c.b16 %v846, %v842
      %v863 = vpack.c.b16 %v847, %v843
      %vm880 = vcmask 523264
      %v882 = vsel %vm880, %v747, 0
      %v885 = vsel %vm880, %v748, 0
      %v888 = vsel %vm880, %v749, 0
      %v891 = vsel %vm880, %v750, 0
      %v894 = vsel %vm880, %v751, 0
      %v897 = vsel %vm880, %v752, 0
      %v900 = vsel %vm880, %v753, 0
      %v903 = vsel %vm880, %v754, 0
      %v906 = vsel %vm880, %v755, 0
      %v909 = vsel %vm880, %v756, 0
      %v912 = vsel %vm880, %v757, 0
      %v915 = vsel %vm880, %v758, 0
      %v918 = vsel %vm880, %v759, 0
      %v921 = vsel %vm880, %v760, 0
      %v924 = vsel %vm880, %v761, 0
      %v927 = vsel %vm880, %v762, 0
      %929 = vmatprep.subr.bf16.mxu0 0
      %930 = vmatpush1.bf16.msra.mxu0 0
      %931 = vmatprep.subr.bf16.mxu0 0
      %932 = vmatpush1.bf16.msra.mxu0 0
      %933 = vmatprep.subr.bf16.mxu0 0
      %934 = vmatpush1.bf16.msra.mxu0 0
      %935 = vmatprep.subr.bf16.mxu0 0
      %936 = vmatpush1.bf16.msra.mxu0 0
      %937 = vmatprep.subr.bf16.mxu0 %v861
      %938 = vmatpush1.bf16.msra.mxu0 %v860
      %939 = vmatprep.subr.bf16.mxu0 %v857
      %940 = vmatpush1.bf16.msra.mxu0 %v856
      %941 = vmatprep.subr.bf16.mxu0 %v853
      %942 = vmatpush1.bf16.msra.mxu0 %v852
      %943 = vmatprep.subr.bf16.mxu0 %v849
      %944 = vmatpush1.bf16.msra.mxu0 %v848
      %945 = vmatprep.subr.bf16.mxu0 0
      %946 = vmatpush2.bf16.msra.mxu0 0
      %947 = vmatprep.subr.bf16.mxu0 0
      %948 = vmatpush2.bf16.msra.mxu0 0
      %949 = vmatprep.subr.bf16.mxu0 0
      %950 = vmatpush2.bf16.msra.mxu0 0
      %951 = vmatprep.subr.bf16.mxu0 0
      %952 = vmatpush2.bf16.msra.mxu0 0
      %953 = vmatprep.subr.bf16.mxu0 0
      %954 = vmatpush2.bf16.msra.mxu0 0
      %955 = vmatprep.subr.bf16.mxu0 0
      %956 = vmatpush2.bf16.msra.mxu0 0
      %957 = vmatprep.subr.bf16.mxu0 0
      %958 = vmatpush2.bf16.msra.mxu0 0
      %959 = vmatprep.subr.bf16.mxu0 0
      %960 = vmatpush2.bf16.msra.mxu0 0
      %961 = vmatprep.mubr.bf16.mxu0 0
      %962 = vmatmul.mubr.bf16.gmra.mxu0 %v882
      %v963 = vpop.f32.mrf.mxu0
      %v964 = vadd.f32 %v783, %v963
      %v965 = vpop.f32.mrf.mxu0
      %v966 = vadd.f32 %v787, %v965
      %v967 = vpop.f32.mrf.mxu0
      %v968 = vadd.f32 %v783, %v967
      %v969 = vpop.f32.mrf.mxu0
      %v970 = vadd.f32 %v787, %v969
      %971 = vmatprep.mubr.bf16.mxu0 0
      %972 = vmatmul.mubr.bf16.gmra.mxu0 %v885
      %v973 = vpop.f32.mrf.mxu0
      %v974 = vadd.f32 %v783, %v973
      %v975 = vpop.f32.mrf.mxu0
      %v976 = vadd.f32 %v787, %v975
      %v977 = vpop.f32.mrf.mxu0
      %v978 = vadd.f32 %v783, %v977
      %v979 = vpop.f32.mrf.mxu0
      %v980 = vadd.f32 %v787, %v979
      %981 = vmatprep.mubr.bf16.mxu0 0
      %982 = vmatmul.mubr.bf16.gmra.mxu0 %v888
      %v983 = vpop.f32.mrf.mxu0
      %v984 = vadd.f32 %v783, %v983
      %v985 = vpop.f32.mrf.mxu0
      %v986 = vadd.f32 %v787, %v985
      %v987 = vpop.f32.mrf.mxu0
      %v988 = vadd.f32 %v783, %v987
      %v989 = vpop.f32.mrf.mxu0
      %v990 = vadd.f32 %v787, %v989
      %991 = vmatprep.mubr.bf16.mxu0 0
      %992 = vmatmul.mubr.bf16.gmra.mxu0 %v891
      %v993 = vpop.f32.mrf.mxu0
      %v994 = vadd.f32 %v783, %v993
      %v995 = vpop.f32.mrf.mxu0
      %v996 = vadd.f32 %v787, %v995
      %v997 = vpop.f32.mrf.mxu0
      %v998 = vadd.f32 %v783, %v997
      %v999 = vpop.f32.mrf.mxu0
      %v1000 = vadd.f32 %v787, %v999
      %1001 = vmatprep.mubr.bf16.mxu0 0
      %1002 = vmatmul.mubr.bf16.gmra.mxu0 %v894
      %v1003 = vpop.f32.mrf.mxu0
      %v1004 = vadd.f32 %v783, %v1003
      %v1005 = vpop.f32.mrf.mxu0
      %v1006 = vadd.f32 %v787, %v1005
      %v1007 = vpop.f32.mrf.mxu0
      %v1008 = vadd.f32 %v783, %v1007
      %v1009 = vpop.f32.mrf.mxu0
      %v1010 = vadd.f32 %v787, %v1009
      %1011 = vmatprep.mubr.bf16.mxu0 0
      %1012 = vmatmul.mubr.bf16.gmra.mxu0 %v897
      %v1013 = vpop.f32.mrf.mxu0
      %v1014 = vadd.f32 %v783, %v1013
      %v1015 = vpop.f32.mrf.mxu0
      %v1016 = vadd.f32 %v787, %v1015
      %v1017 = vpop.f32.mrf.mxu0
      %v1018 = vadd.f32 %v783, %v1017
      %v1019 = vpop.f32.mrf.mxu0
      %v1020 = vadd.f32 %v787, %v1019
      %1021 = vmatprep.mubr.bf16.mxu0 0
      %1022 = vmatmul.mubr.bf16.gmra.mxu0 %v900
      %v1023 = vpop.f32.mrf.mxu0
      %v1024 = vadd.f32 %v783, %v1023
      %v1025 = vpop.f32.mrf.mxu0
      %v1026 = vadd.f32 %v787, %v1025
      %v1027 = vpop.f32.mrf.mxu0
      %v1028 = vadd.f32 %v783, %v1027
      %v1029 = vpop.f32.mrf.mxu0
      %v1030 = vadd.f32 %v787, %v1029
      %1031 = vmatprep.mubr.bf16.mxu0 0
      %1032 = vmatmul.mubr.bf16.gmra.mxu0 %v903
      %v1033 = vpop.f32.mrf.mxu0
      %v1034 = vadd.f32 %v783, %v1033
      %v1035 = vpop.f32.mrf.mxu0
      %v1036 = vadd.f32 %v787, %v1035
      %v1037 = vpop.f32.mrf.mxu0
      %v1038 = vadd.f32 %v783, %v1037
      %v1039 = vpop.f32.mrf.mxu0
      %v1040 = vadd.f32 %v787, %v1039
      %1041 = vmatprep.mubr.bf16.mxu0 0
      %1042 = vmatmul.mubr.bf16.gmra.mxu0 %v906
      %v1043 = vpop.f32.mrf.mxu0
      %v1044 = vadd.f32 %v783, %v1043
      %v1045 = vpop.f32.mrf.mxu0
      %v1046 = vadd.f32 %v787, %v1045
      %v1047 = vpop.f32.mrf.mxu0
      %v1048 = vadd.f32 %v783, %v1047
      %v1049 = vpop.f32.mrf.mxu0
      %v1050 = vadd.f32 %v787, %v1049
      %1051 = vmatprep.mubr.bf16.mxu0 0
      %1052 = vmatmul.mubr.bf16.gmra.mxu0 %v909
      %v1053 = vpop.f32.mrf.mxu0
      %v1054 = vadd.f32 %v783, %v1053
      %v1055 = vpop.f32.mrf.mxu0
      %v1056 = vadd.f32 %v787, %v1055
      %v1057 = vpop.f32.mrf.mxu0
      %v1058 = vadd.f32 %v783, %v1057
      %v1059 = vpop.f32.mrf.mxu0
      %v1060 = vadd.f32 %v787, %v1059
      %1061 = vmatprep.mubr.bf16.mxu0 0
      %1062 = vmatmul.mubr.bf16.gmra.mxu0 %v912
      %v1063 = vpop.f32.mrf.mxu0
      %v1064 = vadd.f32 %v783, %v1063
      %v1065 = vpop.f32.mrf.mxu0
      %v1066 = vadd.f32 %v787, %v1065
      %v1067 = vpop.f32.mrf.mxu0
      %v1068 = vadd.f32 %v783, %v1067
      %v1069 = vpop.f32.mrf.mxu0
      %v1070 = vadd.f32 %v787, %v1069
      %1071 = vmatprep.mubr.bf16.mxu0 0
      %1072 = vmatmul.mubr.bf16.gmra.mxu0 %v915
      %v1073 = vpop.f32.mrf.mxu0
      %v1074 = vadd.f32 %v783, %v1073
      %v1075 = vpop.f32.mrf.mxu0
      %v1076 = vadd.f32 %v787, %v1075
      %v1077 = vpop.f32.mrf.mxu0
      %v1078 = vadd.f32 %v783, %v1077
      %v1079 = vpop.f32.mrf.mxu0
      %v1080 = vadd.f32 %v787, %v1079
      %1081 = vmatprep.mubr.bf16.mxu0 0
      %1082 = vmatmul.mubr.bf16.gmra.mxu0 %v918
      %v1083 = vpop.f32.mrf.mxu0
      %v1084 = vadd.f32 %v783, %v1083
      %v1085 = vpop.f32.mrf.mxu0
      %v1086 = vadd.f32 %v787, %v1085
      %v1087 = vpop.f32.mrf.mxu0
      %v1088 = vadd.f32 %v783, %v1087
      %v1089 = vpop.f32.mrf.mxu0
      %v1090 = vadd.f32 %v787, %v1089
      %1091 = vmatprep.mubr.bf16.mxu0 0
      %1092 = vmatmul.mubr.bf16.gmra.mxu0 %v921
      %v1093 = vpop.f32.mrf.mxu0
      %v1094 = vadd.f32 %v783, %v1093
      %v1095 = vpop.f32.mrf.mxu0
      %v1096 = vadd.f32 %v787, %v1095
      %v1097 = vpop.f32.mrf.mxu0
      %v1098 = vadd.f32 %v783, %v1097
      %v1099 = vpop.f32.mrf.mxu0
      %v1100 = vadd.f32 %v787, %v1099
      %1101 = vmatprep.mubr.bf16.mxu0 0
      %1102 = vmatmul.mubr.bf16.gmra.mxu0 %v924
      %v1103 = vpop.f32.mrf.mxu0
      %v1104 = vadd.f32 %v783, %v1103
      %v1105 = vpop.f32.mrf.mxu0
      %v1106 = vadd.f32 %v787, %v1105
      %v1107 = vpop.f32.mrf.mxu0
      %v1108 = vadd.f32 %v783, %v1107
      %v1109 = vpop.f32.mrf.mxu0
      %v1110 = vadd.f32 %v787, %v1109
      %1111 = vmatprep.mubr.bf16.mxu0 0
      %1112 = vmatmul.mubr.bf16.gmra.mxu0 %v927
      %v1113 = vpop.f32.mrf.mxu0
      %v1114 = vadd.f32 %v783, %v1113
      %v1115 = vpop.f32.mrf.mxu0
      %v1116 = vadd.f32 %v787, %v1115
      %v1117 = vpop.f32.mrf.mxu0
      %v1118 = vadd.f32 %v783, %v1117
      %v1119 = vpop.f32.mrf.mxu0
      %v1120 = vadd.f32 %v787, %v1119
      %1121 = vdwg.mxu0
      %1122 = vmatprep.subr.bf16.mxu0 0
      %1123 = vmatpush1.bf16.msra.mxu0 0
      %1124 = vmatprep.subr.bf16.mxu0 0
      %1125 = vmatpush1.bf16.msra.mxu0 0
      %1126 = vmatprep.subr.bf16.mxu0 0
      %1127 = vmatpush1.bf16.msra.mxu0 0
      %1128 = vmatprep.subr.bf16.mxu0 0
      %1129 = vmatpush1.bf16.msra.mxu0 0
      %1130 = vmatprep.subr.bf16.mxu0 %v863
      %1131 = vmatpush1.bf16.msra.mxu0 %v862
      %1132 = vmatprep.subr.bf16.mxu0 %v859
      %1133 = vmatpush1.bf16.msra.mxu0 %v858
      %1134 = vmatprep.subr.bf16.mxu0 %v855
      %1135 = vmatpush1.bf16.msra.mxu0 %v854
      %1136 = vmatprep.subr.bf16.mxu0 %v851
      %1137 = vmatpush1.bf16.msra.mxu0 %v850
      %1138 = vmatprep.subr.bf16.mxu0 0
      %1139 = vmatpush2.bf16.msra.mxu0 0
      %1140 = vmatprep.subr.bf16.mxu0 0
      %1141 = vmatpush2.bf16.msra.mxu0 0
      %1142 = vmatprep.subr.bf16.mxu0 0
      %1143 = vmatpush2.bf16.msra.mxu0 0
      %1144 = vmatprep.subr.bf16.mxu0 0
      %1145 = vmatpush2.bf16.msra.mxu0 0
      %1146 = vmatprep.subr.bf16.mxu0 0
      %1147 = vmatpush2.bf16.msra.mxu0 0
      %1148 = vmatprep.subr.bf16.mxu0 0
      %1149 = vmatpush2.bf16.msra.mxu0 0
      %1150 = vmatprep.subr.bf16.mxu0 0
      %1151 = vmatpush2.bf16.msra.mxu0 0
      %1152 = vmatprep.subr.bf16.mxu0 0
      %1153 = vmatpush2.bf16.msra.mxu0 0
      %1154 = vmatprep.mubr.bf16.mxu0 0
      %1155 = vmatmul.mubr.bf16.gmra.mxu0 %v882
      %v1156 = vpop.f32.mrf.mxu0
      %v1157 = vadd.f32 %v791, %v1156
      %v1158 = vpop.f32.mrf.mxu0
      %v1159 = vadd.f32 %v795, %v1158
      %v1160 = vpop.f32.mrf.mxu0
      %v1161 = vadd.f32 %v791, %v1160
      %v1162 = vpop.f32.mrf.mxu0
      %v1163 = vadd.f32 %v795, %v1162
      %1164 = vmatprep.mubr.bf16.mxu0 0
      %1165 = vmatmul.mubr.bf16.gmra.mxu0 %v885
      %v1166 = vpop.f32.mrf.mxu0
      %v1167 = vadd.f32 %v791, %v1166
      %v1168 = vpop.f32.mrf.mxu0
      %v1169 = vadd.f32 %v795, %v1168
      %v1170 = vpop.f32.mrf.mxu0
      %v1171 = vadd.f32 %v791, %v1170
      %v1172 = vpop.f32.mrf.mxu0
      %v1173 = vadd.f32 %v795, %v1172
      %1174 = vmatprep.mubr.bf16.mxu0 0
      %1175 = vmatmul.mubr.bf16.gmra.mxu0 %v888
      %v1176 = vpop.f32.mrf.mxu0
      %v1177 = vadd.f32 %v791, %v1176
      %v1178 = vpop.f32.mrf.mxu0
      %v1179 = vadd.f32 %v795, %v1178
      %v1180 = vpop.f32.mrf.mxu0
      %v1181 = vadd.f32 %v791, %v1180
      %v1182 = vpop.f32.mrf.mxu0
      %v1183 = vadd.f32 %v795, %v1182
      %1184 = vmatprep.mubr.bf16.mxu0 0
      %1185 = vmatmul.mubr.bf16.gmra.mxu0 %v891
      %v1186 = vpop.f32.mrf.mxu0
      %v1187 = vadd.f32 %v791, %v1186
      %v1188 = vpop.f32.mrf.mxu0
      %v1189 = vadd.f32 %v795, %v1188
      %v1190 = vpop.f32.mrf.mxu0
      %v1191 = vadd.f32 %v791, %v1190
      %v1192 = vpop.f32.mrf.mxu0
      %v1193 = vadd.f32 %v795, %v1192
      %1194 = vmatprep.mubr.bf16.mxu0 0
      %1195 = vmatmul.mubr.bf16.gmra.mxu0 %v894
      %v1196 = vpop.f32.mrf.mxu0
      %v1197 = vadd.f32 %v791, %v1196
      %v1198 = vpop.f32.mrf.mxu0
      %v1199 = vadd.f32 %v795, %v1198
      %v1200 = vpop.f32.mrf.mxu0
      %v1201 = vadd.f32 %v791, %v1200
      %v1202 = vpop.f32.mrf.mxu0
      %v1203 = vadd.f32 %v795, %v1202
      %1204 = vmatprep.mubr.bf16.mxu0 0
      %1205 = vmatmul.mubr.bf16.gmra.mxu0 %v897
      %v1206 = vpop.f32.mrf.mxu0
      %v1207 = vadd.f32 %v791, %v1206
      %v1208 = vpop.f32.mrf.mxu0
      %v1209 = vadd.f32 %v795, %v1208
      %v1210 = vpop.f32.mrf.mxu0
      %v1211 = vadd.f32 %v791, %v1210
      %v1212 = vpop.f32.mrf.mxu0
      %v1213 = vadd.f32 %v795, %v1212
      %1214 = vmatprep.mubr.bf16.mxu0 0
      %1215 = vmatmul.mubr.bf16.gmra.mxu0 %v900
      %v1216 = vpop.f32.mrf.mxu0
      %v1217 = vadd.f32 %v791, %v1216
      %v1218 = vpop.f32.mrf.mxu0
      %v1219 = vadd.f32 %v795, %v1218
      %v1220 = vpop.f32.mrf.mxu0
      %v1221 = vadd.f32 %v791, %v1220
      %v1222 = vpop.f32.mrf.mxu0
      %v1223 = vadd.f32 %v795, %v1222
      %1224 = vmatprep.mubr.bf16.mxu0 0
      %1225 = vmatmul.mubr.bf16.gmra.mxu0 %v903
      %v1226 = vpop.f32.mrf.mxu0
      %v1227 = vadd.f32 %v791, %v1226
      %v1228 = vpop.f32.mrf.mxu0
      %v1229 = vadd.f32 %v795, %v1228
      %v1230 = vpop.f32.mrf.mxu0
      %v1231 = vadd.f32 %v791, %v1230
      %v1232 = vpop.f32.mrf.mxu0
      %v1233 = vadd.f32 %v795, %v1232
      %1234 = vmatprep.mubr.bf16.mxu0 0
      %1235 = vmatmul.mubr.bf16.gmra.mxu0 %v906
      %v1236 = vpop.f32.mrf.mxu0
      %v1237 = vadd.f32 %v791, %v1236
      %v1238 = vpop.f32.mrf.mxu0
      %v1239 = vadd.f32 %v795, %v1238
      %v1240 = vpop.f32.mrf.mxu0
      %v1241 = vadd.f32 %v791, %v1240
      %v1242 = vpop.f32.mrf.mxu0
      %v1243 = vadd.f32 %v795, %v1242
      %1244 = vmatprep.mubr.bf16.mxu0 0
      %1245 = vmatmul.mubr.bf16.gmra.mxu0 %v909
      %v1246 = vpop.f32.mrf.mxu0
      %v1247 = vadd.f32 %v791, %v1246
      %v1248 = vpop.f32.mrf.mxu0
      %v1249 = vadd.f32 %v795, %v1248
      %v1250 = vpop.f32.mrf.mxu0
      %v1251 = vadd.f32 %v791, %v1250
      %v1252 = vpop.f32.mrf.mxu0
      %v1253 = vadd.f32 %v795, %v1252
      %1254 = vmatprep.mubr.bf16.mxu0 0
      %1255 = vmatmul.mubr.bf16.gmra.mxu0 %v912
      %v1256 = vpop.f32.mrf.mxu0
      %v1257 = vadd.f32 %v791, %v1256
      %v1258 = vpop.f32.mrf.mxu0
      %v1259 = vadd.f32 %v795, %v1258
      %v1260 = vpop.f32.mrf.mxu0
      %v1261 = vadd.f32 %v791, %v1260
      %v1262 = vpop.f32.mrf.mxu0
      %v1263 = vadd.f32 %v795, %v1262
      %1264 = vmatprep.mubr.bf16.mxu0 0
      %1265 = vmatmul.mubr.bf16.gmra.mxu0 %v915
      %v1266 = vpop.f32.mrf.mxu0
      %v1267 = vadd.f32 %v791, %v1266
      %v1268 = vpop.f32.mrf.mxu0
      %v1269 = vadd.f32 %v795, %v1268
      %v1270 = vpop.f32.mrf.mxu0
      %v1271 = vadd.f32 %v791, %v1270
      %v1272 = vpop.f32.mrf.mxu0
      %v1273 = vadd.f32 %v795, %v1272
      %1274 = vmatprep.mubr.bf16.mxu0 0
      %1275 = vmatmul.mubr.bf16.gmra.mxu0 %v918
      %v1276 = vpop.f32.mrf.mxu0
      %v1277 = vadd.f32 %v791, %v1276
      %v1278 = vpop.f32.mrf.mxu0
      %v1279 = vadd.f32 %v795, %v1278
      %v1280 = vpop.f32.mrf.mxu0
      %v1281 = vadd.f32 %v791, %v1280
      %v1282 = vpop.f32.mrf.mxu0
      %v1283 = vadd.f32 %v795, %v1282
      %1284 = vmatprep.mubr.bf16.mxu0 0
      %1285 = vmatmul.mubr.bf16.gmra.mxu0 %v921
      %v1286 = vpop.f32.mrf.mxu0
      %v1287 = vadd.f32 %v791, %v1286
      %v1288 = vpop.f32.mrf.mxu0
      %v1289 = vadd.f32 %v795, %v1288
      %v1290 = vpop.f32.mrf.mxu0
      %v1291 = vadd.f32 %v791, %v1290
      %v1292 = vpop.f32.mrf.mxu0
      %v1293 = vadd.f32 %v795, %v1292
      %1294 = vmatprep.mubr.bf16.mxu0 0
      %1295 = vmatmul.mubr.bf16.gmra.mxu0 %v924
      %v1296 = vpop.f32.mrf.mxu0
      %v1297 = vadd.f32 %v791, %v1296
      %v1298 = vpop.f32.mrf.mxu0
      %v1299 = vadd.f32 %v795, %v1298
      %v1300 = vpop.f32.mrf.mxu0
      %v1301 = vadd.f32 %v791, %v1300
      %v1302 = vpop.f32.mrf.mxu0
      %v1303 = vadd.f32 %v795, %v1302
      %1304 = vmatprep.mubr.bf16.mxu0 0
      %1305 = vmatmul.mubr.bf16.gmra.mxu0 %v927
      %v1306 = vpop.f32.mrf.mxu0
      %v1307 = vadd.f32 %v791, %v1306
      %v1308 = vpop.f32.mrf.mxu0
      %v1309 = vadd.f32 %v795, %v1308
      %v1310 = vpop.f32.mrf.mxu0
      %v1311 = vadd.f32 %v791, %v1310
      %v1312 = vpop.f32.mrf.mxu0
      %v1313 = vadd.f32 %v795, %v1312
      %1314 = vdwg.mxu0
      %v1315 = vmax.f32 %v964, 0.0
      %v1316 = vmax.f32 %v966, 0.0
      %v1317 = vmax.f32 %v1157, 0.0
      %v1318 = vmax.f32 %v1159, 0.0
      %v1319 = vmax.f32 %v968, 0.0
      %v1320 = vmax.f32 %v970, 0.0
      %v1321 = vmax.f32 %v1161, 0.0
      %v1322 = vmax.f32 %v1163, 0.0
      %v1323 = vmax.f32 %v974, 0.0
      %v1324 = vmax.f32 %v976, 0.0
      %v1325 = vmax.f32 %v1167, 0.0
      %v1326 = vmax.f32 %v1169, 0.0
      %v1327 = vmax.f32 %v978, 0.0
      %v1328 = vmax.f32 %v980, 0.0
      %v1329 = vmax.f32 %v1171, 0.0
      %v1330 = vmax.f32 %v1173, 0.0
      %v1331 = vmax.f32 %v984, 0.0
      %v1332 = vmax.f32 %v986, 0.0
      %v1333 = vmax.f32 %v1177, 0.0
      %v1334 = vmax.f32 %v1179, 0.0
      %v1335 = vmax.f32 %v988, 0.0
      %v1336 = vmax.f32 %v990, 0.0
      %v1337 = vmax.f32 %v1181, 0.0
      %v1338 = vmax.f32 %v1183, 0.0
      %v1339 = vmax.f32 %v994, 0.0
      %v1340 = vmax.f32 %v996, 0.0
      %v1341 = vmax.f32 %v1187, 0.0
      %v1342 = vmax.f32 %v1189, 0.0
      %v1343 = vmax.f32 %v998, 0.0
      %v1344 = vmax.f32 %v1000, 0.0
      %v1345 = vmax.f32 %v1191, 0.0
      %v1346 = vmax.f32 %v1193, 0.0
      %v1347 = vmax.f32 %v1004, 0.0
      %v1348 = vmax.f32 %v1006, 0.0
      %v1349 = vmax.f32 %v1197, 0.0
      %v1350 = vmax.f32 %v1199, 0.0
      %v1351 = vmax.f32 %v1008, 0.0
      %v1352 = vmax.f32 %v1010, 0.0
      %v1353 = vmax.f32 %v1201, 0.0
      %v1354 = vmax.f32 %v1203, 0.0
      %v1355 = vmax.f32 %v1014, 0.0
      %v1356 = vmax.f32 %v1016, 0.0
      %v1357 = vmax.f32 %v1207, 0.0
      %v1358 = vmax.f32 %v1209, 0.0
      %v1359 = vmax.f32 %v1018, 0.0
      %v1360 = vmax.f32 %v1020, 0.0
      %v1361 = vmax.f32 %v1211, 0.0
      %v1362 = vmax.f32 %v1213, 0.0
      %v1363 = vmax.f32 %v1024, 0.0
      %v1364 = vmax.f32 %v1026, 0.0
      %v1365 = vmax.f32 %v1217, 0.0
      %v1366 = vmax.f32 %v1219, 0.0
      %v1367 = vmax.f32 %v1028, 0.0
      %v1368 = vmax.f32 %v1030, 0.0
      %v1369 = vmax.f32 %v1221, 0.0
      %v1370 = vmax.f32 %v1223, 0.0
      %v1371 = vmax.f32 %v1034, 0.0
      %v1372 = vmax.f32 %v1036, 0.0
      %v1373 = vmax.f32 %v1227, 0.0
      %v1374 = vmax.f32 %v1229, 0.0
      %v1375 = vmax.f32 %v1038, 0.0
      %v1376 = vmax.f32 %v1040, 0.0
      %v1377 = vmax.f32 %v1231, 0.0
      %v1378 = vmax.f32 %v1233, 0.0
      %v1379 = vmax.f32 %v1044, 0.0
      %v1380 = vmax.f32 %v1046, 0.0
      %v1381 = vmax.f32 %v1237, 0.0
      %v1382 = vmax.f32 %v1239, 0.0
      %v1383 = vmax.f32 %v1048, 0.0
      %v1384 = vmax.f32 %v1050, 0.0
      %v1385 = vmax.f32 %v1241, 0.0
      %v1386 = vmax.f32 %v1243, 0.0
      %v1387 = vmax.f32 %v1054, 0.0
      %v1388 = vmax.f32 %v1056, 0.0
      %v1389 = vmax.f32 %v1247, 0.0
      %v1390 = vmax.f32 %v1249, 0.0
      %v1391 = vmax.f32 %v1058, 0.0
      %v1392 = vmax.f32 %v1060, 0.0
      %v1393 = vmax.f32 %v1251, 0.0
      %v1394 = vmax.f32 %v1253, 0.0
      %v1395 = vmax.f32 %v1064, 0.0
      %v1396 = vmax.f32 %v1066, 0.0
      %v1397 = vmax.f32 %v1257, 0.0
      %v1398 = vmax.f32 %v1259, 0.0
      %v1399 = vmax.f32 %v1068, 0.0
      %v1400 = vmax.f32 %v1070, 0.0
      %v1401 = vmax.f32 %v1261, 0.0
      %v1402 = vmax.f32 %v1263, 0.0
      %v1403 = vmax.f32 %v1074, 0.0
      %v1404 = vmax.f32 %v1076, 0.0
      %v1405 = vmax.f32 %v1267, 0.0
      %v1406 = vmax.f32 %v1269, 0.0
      %v1407 = vmax.f32 %v1078, 0.0
      %v1408 = vmax.f32 %v1080, 0.0
      %v1409 = vmax.f32 %v1271, 0.0
      %v1410 = vmax.f32 %v1273, 0.0
      %v1411 = vmax.f32 %v1084, 0.0
      %v1412 = vmax.f32 %v1086, 0.0
      %v1413 = vmax.f32 %v1277, 0.0
      %v1414 = vmax.f32 %v1279, 0.0
      %v1415 = vmax.f32 %v1088, 0.0
      %v1416 = vmax.f32 %v1090, 0.0
      %v1417 = vmax.f32 %v1281, 0.0
      %v1418 = vmax.f32 %v1283, 0.0
      %v1419 = vmax.f32 %v1094, 0.0
      %v1420 = vmax.f32 %v1096, 0.0
      %v1421 = vmax.f32 %v1287, 0.0
      %v1422 = vmax.f32 %v1289, 0.0
      %v1423 = vmax.f32 %v1098, 0.0
      %v1424 = vmax.f32 %v1100, 0.0
      %v1425 = vmax.f32 %v1291, 0.0
      %v1426 = vmax.f32 %v1293, 0.0
      %v1427 = vmax.f32 %v1104, 0.0
      %v1428 = vmax.f32 %v1106, 0.0
      %v1429 = vmax.f32 %v1297, 0.0
      %v1430 = vmax.f32 %v1299, 0.0
      %v1431 = vmax.f32 %v1108, 0.0
      %v1432 = vmax.f32 %v1110, 0.0
      %v1433 = vmax.f32 %v1301, 0.0
      %v1434 = vmax.f32 %v1303, 0.0
      %v1435 = vmax.f32 %v1114, 0.0
      %v1436 = vmax.f32 %v1116, 0.0
      %v1437 = vmax.f32 %v1307, 0.0
      %v1438 = vmax.f32 %v1309, 0.0
      %v1439 = vmax.f32 %v1118, 0.0
      %v1440 = vmax.f32 %v1120, 0.0
      %v1441 = vmax.f32 %v1311, 0.0
      %v1442 = vmax.f32 %v1313, 0.0
      %v1443 = vpack.c.bf16 %v1319, %v1315
      %v1444 = vpack.c.bf16 %v1320, %v1316
      %v1445 = vpack.c.bf16 %v1321, %v1317
      %v1446 = vpack.c.bf16 %v1322, %v1318
      %v1447 = vpack.c.bf16 %v1327, %v1323
      %v1448 = vpack.c.bf16 %v1328, %v1324
      %v1449 = vpack.c.bf16 %v1329, %v1325
      %v1450 = vpack.c.bf16 %v1330, %v1326
      %v1451 = vpack.c.bf16 %v1335, %v1331
      %v1452 = vpack.c.bf16 %v1336, %v1332
      %v1453 = vpack.c.bf16 %v1337, %v1333
      %v1454 = vpack.c.bf16 %v1338, %v1334
      %v1455 = vpack.c.bf16 %v1343, %v1339
      %v1456 = vpack.c.bf16 %v1344, %v1340
      %v1457 = vpack.c.bf16 %v1345, %v1341
      %v1458 = vpack.c.bf16 %v1346, %v1342
      %v1459 = vpack.c.bf16 %v1351, %v1347
      %v1460 = vpack.c.bf16 %v1352, %v1348
      %v1461 = vpack.c.bf16 %v1353, %v1349
      %v1462 = vpack.c.bf16 %v1354, %v1350
      %v1463 = vpack.c.bf16 %v1359, %v1355
      %v1464 = vpack.c.bf16 %v1360, %v1356
      %v1465 = vpack.c.bf16 %v1361, %v1357
      %v1466 = vpack.c.bf16 %v1362, %v1358
      %v1467 = vpack.c.bf16 %v1367, %v1363
      %v1468 = vpack.c.bf16 %v1368, %v1364
      %v1469 = vpack.c.bf16 %v1369, %v1365
      %v1470 = vpack.c.bf16 %v1370, %v1366
      %v1471 = vpack.c.bf16 %v1375, %v1371
      %v1472 = vpack.c.bf16 %v1376, %v1372
      %v1473 = vpack.c.bf16 %v1377, %v1373
      %v1474 = vpack.c.bf16 %v1378, %v1374
      %v1475 = vpack.c.bf16 %v1383, %v1379
      %v1476 = vpack.c.bf16 %v1384, %v1380
      %v1477 = vpack.c.bf16 %v1385, %v1381
      %v1478 = vpack.c.bf16 %v1386, %v1382
      %v1479 = vpack.c.bf16 %v1391, %v1387
      %v1480 = vpack.c.bf16 %v1392, %v1388
      %v1481 = vpack.c.bf16 %v1393, %v1389
      %v1482 = vpack.c.bf16 %v1394, %v1390
      %v1483 = vpack.c.bf16 %v1399, %v1395
      %v1484 = vpack.c.bf16 %v1400, %v1396
      %v1485 = vpack.c.bf16 %v1401, %v1397
      %v1486 = vpack.c.bf16 %v1402, %v1398
      %v1487 = vpack.c.bf16 %v1407, %v1403
      %v1488 = vpack.c.bf16 %v1408, %v1404
      %v1489 = vpack.c.bf16 %v1409, %v1405
      %v1490 = vpack.c.bf16 %v1410, %v1406
      %v1491 = vpack.c.bf16 %v1415, %v1411
      %v1492 = vpack.c.bf16 %v1416, %v1412
      %v1493 = vpack.c.bf16 %v1417, %v1413
      %v1494 = vpack.c.bf16 %v1418, %v1414
      %v1495 = vpack.c.bf16 %v1423, %v1419
      %v1496 = vpack.c.bf16 %v1424, %v1420
      %v1497 = vpack.c.bf16 %v1425, %v1421
      %v1498 = vpack.c.bf16 %v1426, %v1422
      %v1499 = vpack.c.bf16 %v1431, %v1427
      %v1500 = vpack.c.bf16 %v1432, %v1428
      %v1501 = vpack.c.bf16 %v1433, %v1429
      %v1502 = vpack.c.bf16 %v1434, %v1430
      %v1503 = vpack.c.bf16 %v1439, %v1435
      %v1504 = vpack.c.bf16 %v1440, %v1436
      %v1505 = vpack.c.bf16 %v1441, %v1437
      %v1506 = vpack.c.bf16 %v1442, %v1438
      %v1507 = vld [vmem:[%s5] sm:$0xff]
      %v1508 = vld [vmem:[%s5 + $0x8] sm:$0xff]
      %v1509 = vld [vmem:[%s5 + $0x10] sm:$0xff]
      %v1510 = vld [vmem:[%s5 + $0x18] sm:$0xff]
      %v1511 = vld [vmem:[%s5 + $0x20] sm:$0xff]
      %v1512 = vld [vmem:[%s5 + $0x28] sm:$0xff]
      %v1513 = vld [vmem:[%s5 + $0x30] sm:$0xff]
      %v1514 = vld [vmem:[%s5 + $0x38] sm:$0xff]
      %v1515 = vld [vmem:[%s5 + $0x40] sm:$0xff]
      %v1516 = vld [vmem:[%s5 + $0x48] sm:$0xff]
      %v1517 = vld [vmem:[%s5 + $0x50] sm:$0xff]
      %v1518 = vld [vmem:[%s5 + $0x58] sm:$0xff]
      %v1519 = vld [vmem:[%s5 + $0x60] sm:$0xff]
      %v1520 = vld [vmem:[%s5 + $0x68] sm:$0xff]
      %v1521 = vld [vmem:[%s5 + $0x70] sm:$0xff]
      %v1522 = vld [vmem:[%s5 + $0x78] sm:$0xff]
      %v1523 = vld [vmem:[%s5 + $0x80] sm:$0xff]
      %v1524 = vld [vmem:[%s5 + $0x88] sm:$0xff]
      %v1525 = vld [vmem:[%s5 + $0x90] sm:$0xff]
      %v1526 = vld [vmem:[%s5 + $0x98] sm:$0xff]
      %v1527 = vld [vmem:[%s5 + $0xa0] sm:$0xff]
      %v1528 = vld [vmem:[%s5 + $0xa8] sm:$0xff]
      %v1529 = vld [vmem:[%s5 + $0xb0] sm:$0xff]
      %v1530 = vld [vmem:[%s5 + $0xb8] sm:$0xff]
      %v1531 = vld [vmem:[%s5 + $0xc0] sm:$0xff]
      %v1532 = vld [vmem:[%s5 + $0xc8] sm:$0xff]
      %v1533 = vld [vmem:[%s5 + $0xd0] sm:$0xff]
      %v1534 = vld [vmem:[%s5 + $0xd8] sm:$0xff]
      %v1535 = vld [vmem:[%s5 + $0xe0] sm:$0xff]
      %v1536 = vld [vmem:[%s5 + $0xe8] sm:$0xff]
      %v1537 = vld [vmem:[%s5 + $0xf0] sm:$0xff]
      %v1538 = vld [vmem:[%s5 + $0xf8] sm:$0xff]
      %v1539 = vld [vmem:[%s5 + $0x100] sm:$0xff]
      %v1540 = vld [vmem:[%s5 + $0x108] sm:$0xff]
      %v1541 = vld [vmem:[%s5 + $0x110] sm:$0xff]
      %v1542 = vld [vmem:[%s5 + $0x118] sm:$0xff]
      %v1543 = vld [vmem:[%s5 + $0x120] sm:$0xff]
      %v1544 = vld [vmem:[%s5 + $0x128] sm:$0xff]
      %v1545 = vld [vmem:[%s5 + $0x130] sm:$0xff]
      %v1546 = vld [vmem:[%s5 + $0x138] sm:$0xff]
      %v1547 = vld [vmem:[%s5 + $0x140] sm:$0xff]
      %v1548 = vld [vmem:[%s5 + $0x148] sm:$0xff]
      %v1549 = vld [vmem:[%s5 + $0x150] sm:$0xff]
      %v1550 = vld [vmem:[%s5 + $0x158] sm:$0xff]
      %v1551 = vld [vmem:[%s5 + $0x160] sm:$0xff]
      %v1552 = vld [vmem:[%s5 + $0x168] sm:$0xff]
      %v1553 = vld [vmem:[%s5 + $0x170] sm:$0xff]
      %v1554 = vld [vmem:[%s5 + $0x178] sm:$0xff]
      %v1555 = vld [vmem:[%s5 + $0x180] sm:$0xff]
      %v1556 = vld [vmem:[%s5 + $0x188] sm:$0xff]
      %v1557 = vld [vmem:[%s5 + $0x190] sm:$0xff]
      %v1558 = vld [vmem:[%s5 + $0x198] sm:$0xff]
      %v1559 = vld [vmem:[%s5 + $0x1a0] sm:$0xff]
      %v1560 = vld [vmem:[%s5 + $0x1a8] sm:$0xff]
      %v1561 = vld [vmem:[%s5 + $0x1b0] sm:$0xff]
      %v1562 = vld [vmem:[%s5 + $0x1b8] sm:$0xff]
      %v1563 = vld [vmem:[%s5 + $0x1c0] sm:$0xff]
      %v1564 = vld [vmem:[%s5 + $0x1c8] sm:$0xff]
      %v1565 = vld [vmem:[%s5 + $0x1d0] sm:$0xff]
      %v1566 = vld [vmem:[%s5 + $0x1d8] sm:$0xff]
      %v1567 = vld [vmem:[%s5 + $0x1e0] sm:$0xff]
      %v1568 = vld [vmem:[%s5 + $0x1e8] sm:$0xff]
      %v1569 = vld [vmem:[%s5 + $0x1f0] sm:$0xff]
      %v1570 = vld [vmem:[%s5 + $0x1f8] sm:$0xff]
      %v1571 = vld [vmem:[%s6] sm:$0x3]
      %v1573 = vlaneseq
      %v1574 = vshrl.u32 %v1573, 7
      %v1575 = vsub.s32 0, %v1574
      %v1576 = vrot.slane %v1571, %v1575
      %v1577 = vlaneseq
      %v1578 = vshrl.u32 %v1577, 7
      %v1579 = vsub.s32 1, %v1578
      %v1580 = vrot.slane %v1571, %v1579
      %v1647 = vunpack.c.l.b16 %v1507
      %v1648 = vunpack.c.h.b16 %v1507
      %v1649 = vunpack.c.l.b16 %v1508
      %v1650 = vunpack.c.h.b16 %v1508
      %v1651 = vunpack.c.l.b16 %v1509
      %v1652 = vunpack.c.h.b16 %v1509
      %v1653 = vunpack.c.l.b16 %v1510
      %v1654 = vunpack.c.h.b16 %v1510
      %v1655 = vunpack.c.l.b16 %v1511
      %v1656 = vunpack.c.h.b16 %v1511
      %v1657 = vunpack.c.l.b16 %v1512
      %v1658 = vunpack.c.h.b16 %v1512
      %v1659 = vunpack.c.l.b16 %v1513
      %v1660 = vunpack.c.h.b16 %v1513
      %v1661 = vunpack.c.l.b16 %v1514
      %v1662 = vunpack.c.h.b16 %v1514
      %v1663 = vunpack.c.l.b16 %v1515
      %v1664 = vunpack.c.h.b16 %v1515
      %v1665 = vunpack.c.l.b16 %v1516
      %v1666 = vunpack.c.h.b16 %v1516
      %v1667 = vunpack.c.l.b16 %v1517
      %v1668 = vunpack.c.h.b16 %v1517
      %v1669 = vunpack.c.l.b16 %v1518
      %v1670 = vunpack.c.h.b16 %v1518
      %v1671 = vunpack.c.l.b16 %v1519
      %v1672 = vunpack.c.h.b16 %v1519
      %v1673 = vunpack.c.l.b16 %v1520
      %v1674 = vunpack.c.h.b16 %v1520
      %v1675 = vunpack.c.l.b16 %v1521
      %v1676 = vunpack.c.h.b16 %v1521
      %v1677 = vunpack.c.l.b16 %v1522
      %v1678 = vunpack.c.h.b16 %v1522
      %v1679 = vunpack.c.l.b16 %v1523
      %v1680 = vunpack.c.h.b16 %v1523
      %v1681 = vunpack.c.l.b16 %v1524
      %v1682 = vunpack.c.h.b16 %v1524
      %v1683 = vunpack.c.l.b16 %v1525
      %v1684 = vunpack.c.h.b16 %v1525
      %v1685 = vunpack.c.l.b16 %v1526
      %v1686 = vunpack.c.h.b16 %v1526
      %v1687 = vunpack.c.l.b16 %v1527
      %v1688 = vunpack.c.h.b16 %v1527
      %v1689 = vunpack.c.l.b16 %v1528
      %v1690 = vunpack.c.h.b16 %v1528
      %v1691 = vunpack.c.l.b16 %v1529
      %v1692 = vunpack.c.h.b16 %v1529
      %v1693 = vunpack.c.l.b16 %v1530
      %v1694 = vunpack.c.h.b16 %v1530
      %v1695 = vunpack.c.l.b16 %v1531
      %v1696 = vunpack.c.h.b16 %v1531
      %v1697 = vunpack.c.l.b16 %v1532
      %v1698 = vunpack.c.h.b16 %v1532
      %v1699 = vunpack.c.l.b16 %v1533
      %v1700 = vunpack.c.h.b16 %v1533
      %v1701 = vunpack.c.l.b16 %v1534
      %v1702 = vunpack.c.h.b16 %v1534
      %v1703 = vunpack.c.l.b16 %v1535
      %v1704 = vunpack.c.h.b16 %v1535
      %v1705 = vunpack.c.l.b16 %v1536
      %v1706 = vunpack.c.h.b16 %v1536
      %v1707 = vunpack.c.l.b16 %v1537
      %v1708 = vunpack.c.h.b16 %v1537
      %v1709 = vunpack.c.l.b16 %v1538
      %v1710 = vunpack.c.h.b16 %v1538
      %v1711 = vunpack.c.l.b16 %v1539
      %v1712 = vunpack.c.h.b16 %v1539
      %v1713 = vunpack.c.l.b16 %v1540
      %v1714 = vunpack.c.h.b16 %v1540
      %v1715 = vunpack.c.l.b16 %v1541
      %v1716 = vunpack.c.h.b16 %v1541
      %v1717 = vunpack.c.l.b16 %v1542
      %v1718 = vunpack.c.h.b16 %v1542
      %v1719 = vunpack.c.l.b16 %v1543
      %v1720 = vunpack.c.h.b16 %v1543
      %v1721 = vunpack.c.l.b16 %v1544
      %v1722 = vunpack.c.h.b16 %v1544
      %v1723 = vunpack.c.l.b16 %v1545
      %v1724 = vunpack.c.h.b16 %v1545
      %v1725 = vunpack.c.l.b16 %v1546
      %v1726 = vunpack.c.h.b16 %v1546
      %v1727 = vunpack.c.l.b16 %v1547
      %v1728 = vunpack.c.h.b16 %v1547
      %v1729 = vunpack.c.l.b16 %v1548
      %v1730 = vunpack.c.h.b16 %v1548
      %v1731 = vunpack.c.l.b16 %v1549
      %v1732 = vunpack.c.h.b16 %v1549
      %v1733 = vunpack.c.l.b16 %v1550
      %v1734 = vunpack.c.h.b16 %v1550
      %v1735 = vunpack.c.l.b16 %v1551
      %v1736 = vunpack.c.h.b16 %v1551
      %v1737 = vunpack.c.l.b16 %v1552
      %v1738 = vunpack.c.h.b16 %v1552
      %v1739 = vunpack.c.l.b16 %v1553
      %v1740 = vunpack.c.h.b16 %v1553
      %v1741 = vunpack.c.l.b16 %v1554
      %v1742 = vunpack.c.h.b16 %v1554
      %v1743 = vunpack.c.l.b16 %v1555
      %v1744 = vunpack.c.h.b16 %v1555
      %v1745 = vunpack.c.l.b16 %v1556
      %v1746 = vunpack.c.h.b16 %v1556
      %v1747 = vunpack.c.l.b16 %v1557
      %v1748 = vunpack.c.h.b16 %v1557
      %v1749 = vunpack.c.l.b16 %v1558
      %v1750 = vunpack.c.h.b16 %v1558
      %v1751 = vunpack.c.l.b16 %v1559
      %v1752 = vunpack.c.h.b16 %v1559
      %v1753 = vunpack.c.l.b16 %v1560
      %v1754 = vunpack.c.h.b16 %v1560
      %v1755 = vunpack.c.l.b16 %v1561
      %v1756 = vunpack.c.h.b16 %v1561
      %v1757 = vunpack.c.l.b16 %v1562
      %v1758 = vunpack.c.h.b16 %v1562
      %v1759 = vunpack.c.l.b16 %v1563
      %v1760 = vunpack.c.h.b16 %v1563
      %v1761 = vunpack.c.l.b16 %v1564
      %v1762 = vunpack.c.h.b16 %v1564
      %v1763 = vunpack.c.l.b16 %v1565
      %v1764 = vunpack.c.h.b16 %v1565
      %v1765 = vunpack.c.l.b16 %v1566
      %v1766 = vunpack.c.h.b16 %v1566
      %v1767 = vunpack.c.l.b16 %v1567
      %v1768 = vunpack.c.h.b16 %v1567
      %v1769 = vunpack.c.l.b16 %v1568
      %v1770 = vunpack.c.h.b16 %v1568
      %v1771 = vunpack.c.l.b16 %v1569
      %v1772 = vunpack.c.h.b16 %v1569
      %v1773 = vunpack.c.l.b16 %v1570
      %v1774 = vunpack.c.h.b16 %v1570
      %v1775 = vpack.c.b16 %v1649, %v1647
      %v1776 = vpack.c.b16 %v1650, %v1648
      %v1777 = vpack.c.b16 %v1653, %v1651
      %v1778 = vpack.c.b16 %v1654, %v1652
      %v1779 = vpack.c.b16 %v1657, %v1655
      %v1780 = vpack.c.b16 %v1658, %v1656
      %v1781 = vpack.c.b16 %v1661, %v1659
      %v1782 = vpack.c.b16 %v1662, %v1660
      %v1783 = vpack.c.b16 %v1665, %v1663
      %v1784 = vpack.c.b16 %v1666, %v1664
      %v1785 = vpack.c.b16 %v1669, %v1667
      %v1786 = vpack.c.b16 %v1670, %v1668
      %v1787 = vpack.c.b16 %v1673, %v1671
      %v1788 = vpack.c.b16 %v1674, %v1672
      %v1789 = vpack.c.b16 %v1677, %v1675
      %v1790 = vpack.c.b16 %v1678, %v1676
      %v1791 = vpack.c.b16 %v1681, %v1679
      %v1792 = vpack.c.b16 %v1682, %v1680
      %v1793 = vpack.c.b16 %v1685, %v1683
      %v1794 = vpack.c.b16 %v1686, %v1684
      %v1795 = vpack.c.b16 %v1689, %v1687
      %v1796 = vpack.c.b16 %v1690, %v1688
      %v1797 = vpack.c.b16 %v1693, %v1691
      %v1798 = vpack.c.b16 %v1694, %v1692
      %v1799 = vpack.c.b16 %v1697, %v1695
      %v1800 = vpack.c.b16 %v1698, %v1696
      %v1801 = vpack.c.b16 %v1701, %v1699
      %v1802 = vpack.c.b16 %v1702, %v1700
      %v1803 = vpack.c.b16 %v1705, %v1703
      %v1804 = vpack.c.b16 %v1706, %v1704
      %v1805 = vpack.c.b16 %v1709, %v1707
      %v1806 = vpack.c.b16 %v1710, %v1708
      %v1807 = vpack.c.b16 %v1713, %v1711
      %v1808 = vpack.c.b16 %v1714, %v1712
      %v1809 = vpack.c.b16 %v1717, %v1715
      %v1810 = vpack.c.b16 %v1718, %v1716
      %v1811 = vpack.c.b16 %v1721, %v1719
      %v1812 = vpack.c.b16 %v1722, %v1720
      %v1813 = vpack.c.b16 %v1725, %v1723
      %v1814 = vpack.c.b16 %v1726, %v1724
      %v1815 = vpack.c.b16 %v1729, %v1727
      %v1816 = vpack.c.b16 %v1730, %v1728
      %v1817 = vpack.c.b16 %v1733, %v1731
      %v1818 = vpack.c.b16 %v1734, %v1732
      %v1819 = vpack.c.b16 %v1737, %v1735
      %v1820 = vpack.c.b16 %v1738, %v1736
      %v1821 = vpack.c.b16 %v1741, %v1739
      %v1822 = vpack.c.b16 %v1742, %v1740
      %v1823 = vpack.c.b16 %v1745, %v1743
      %v1824 = vpack.c.b16 %v1746, %v1744
      %v1825 = vpack.c.b16 %v1749, %v1747
      %v1826 = vpack.c.b16 %v1750, %v1748
      %v1827 = vpack.c.b16 %v1753, %v1751
      %v1828 = vpack.c.b16 %v1754, %v1752
      %v1829 = vpack.c.b16 %v1757, %v1755
      %v1830 = vpack.c.b16 %v1758, %v1756
      %v1831 = vpack.c.b16 %v1761, %v1759
      %v1832 = vpack.c.b16 %v1762, %v1760
      %v1833 = vpack.c.b16 %v1765, %v1763
      %v1834 = vpack.c.b16 %v1766, %v1764
      %v1835 = vpack.c.b16 %v1769, %v1767
      %v1836 = vpack.c.b16 %v1770, %v1768
      %v1837 = vpack.c.b16 %v1773, %v1771
      %v1838 = vpack.c.b16 %v1774, %v1772
      %1903 = vmatprep.subr.bf16.mxu0 %v1790
      %1904 = vmatpush1.bf16.msra.mxu0 %v1789
      %1905 = vmatprep.subr.bf16.mxu0 %v1788
      %1906 = vmatpush1.bf16.msra.mxu0 %v1787
      %1907 = vmatprep.subr.bf16.mxu0 %v1786
      %1908 = vmatpush1.bf16.msra.mxu0 %v1785
      %1909 = vmatprep.subr.bf16.mxu0 %v1784
      %1910 = vmatpush1.bf16.msra.mxu0 %v1783
      %1911 = vmatprep.subr.bf16.mxu0 %v1782
      %1912 = vmatpush1.bf16.msra.mxu0 %v1781
      %1913 = vmatprep.subr.bf16.mxu0 %v1780
      %1914 = vmatpush1.bf16.msra.mxu0 %v1779
      %1915 = vmatprep.subr.bf16.mxu0 %v1778
      %1916 = vmatpush1.bf16.msra.mxu0 %v1777
      %1917 = vmatprep.subr.bf16.mxu0 %v1776
      %1918 = vmatpush1.bf16.msra.mxu0 %v1775
      %1919 = vmatprep.subr.bf16.mxu0 %v1806
      %1920 = vmatpush2.bf16.msra.mxu0 %v1805
      %1921 = vmatprep.subr.bf16.mxu0 %v1804
      %1922 = vmatpush2.bf16.msra.mxu0 %v1803
      %1923 = vmatprep.subr.bf16.mxu0 %v1802
      %1924 = vmatpush2.bf16.msra.mxu0 %v1801
      %1925 = vmatprep.subr.bf16.mxu0 %v1800
      %1926 = vmatpush2.bf16.msra.mxu0 %v1799
      %1927 = vmatprep.subr.bf16.mxu0 %v1798
      %1928 = vmatpush2.bf16.msra.mxu0 %v1797
      %1929 = vmatprep.subr.bf16.mxu0 %v1796
      %1930 = vmatpush2.bf16.msra.mxu0 %v1795
      %1931 = vmatprep.subr.bf16.mxu0 %v1794
      %1932 = vmatpush2.bf16.msra.mxu0 %v1793
      %1933 = vmatprep.subr.bf16.mxu0 %v1792
      %1934 = vmatpush2.bf16.msra.mxu0 %v1791
      %1935 = vmatprep.mubr.bf16.mxu0 %v1444
      %1936 = vmatmul.mubr.bf16.gmra.mxu0 %v1443
      %v1937 = vpop.f32.mrf.mxu0
      %v1938 = vadd.f32 %v1576, %v1937
      %v1939 = vpop.f32.mrf.mxu0
      %v1940 = vadd.f32 %v1580, %v1939
      %v1941 = vpop.f32.mrf.mxu0
      %v1942 = vadd.f32 %v1576, %v1941
      %v1943 = vpop.f32.mrf.mxu0
      %v1944 = vadd.f32 %v1580, %v1943
      %1945 = vmatprep.mubr.bf16.mxu0 %v1448
      %1946 = vmatmul.mubr.bf16.gmra.mxu0 %v1447
      %v1947 = vpop.f32.mrf.mxu0
      %v1948 = vadd.f32 %v1576, %v1947
      %v1949 = vpop.f32.mrf.mxu0
      %v1950 = vadd.f32 %v1580, %v1949
      %v1951 = vpop.f32.mrf.mxu0
      %v1952 = vadd.f32 %v1576, %v1951
      %v1953 = vpop.f32.mrf.mxu0
      %v1954 = vadd.f32 %v1580, %v1953
      %1955 = vmatprep.mubr.bf16.mxu0 %v1452
      %1956 = vmatmul.mubr.bf16.gmra.mxu0 %v1451
      %v1957 = vpop.f32.mrf.mxu0
      %v1958 = vadd.f32 %v1576, %v1957
      %v1959 = vpop.f32.mrf.mxu0
      %v1960 = vadd.f32 %v1580, %v1959
      %v1961 = vpop.f32.mrf.mxu0
      %v1962 = vadd.f32 %v1576, %v1961
      %v1963 = vpop.f32.mrf.mxu0
      %v1964 = vadd.f32 %v1580, %v1963
      %1965 = vmatprep.mubr.bf16.mxu0 %v1456
      %1966 = vmatmul.mubr.bf16.gmra.mxu0 %v1455
      %v1967 = vpop.f32.mrf.mxu0
      %v1968 = vadd.f32 %v1576, %v1967
      %v1969 = vpop.f32.mrf.mxu0
      %v1970 = vadd.f32 %v1580, %v1969
      %v1971 = vpop.f32.mrf.mxu0
      %v1972 = vadd.f32 %v1576, %v1971
      %v1973 = vpop.f32.mrf.mxu0
      %v1974 = vadd.f32 %v1580, %v1973
      %1975 = vmatprep.mubr.bf16.mxu0 %v1460
      %1976 = vmatmul.mubr.bf16.gmra.mxu0 %v1459
      %v1977 = vpop.f32.mrf.mxu0
      %v1978 = vadd.f32 %v1576, %v1977
      %v1979 = vpop.f32.mrf.mxu0
      %v1980 = vadd.f32 %v1580, %v1979
      %v1981 = vpop.f32.mrf.mxu0
      %v1982 = vadd.f32 %v1576, %v1981
      %v1983 = vpop.f32.mrf.mxu0
      %v1984 = vadd.f32 %v1580, %v1983
      %1985 = vmatprep.mubr.bf16.mxu0 %v1464
      %1986 = vmatmul.mubr.bf16.gmra.mxu0 %v1463
      %v1987 = vpop.f32.mrf.mxu0
      %v1988 = vadd.f32 %v1576, %v1987
      %v1989 = vpop.f32.mrf.mxu0
      %v1990 = vadd.f32 %v1580, %v1989
      %v1991 = vpop.f32.mrf.mxu0
      %v1992 = vadd.f32 %v1576, %v1991
      %v1993 = vpop.f32.mrf.mxu0
      %v1994 = vadd.f32 %v1580, %v1993
      %1995 = vmatprep.mubr.bf16.mxu0 %v1468
      %1996 = vmatmul.mubr.bf16.gmra.mxu0 %v1467
      %v1997 = vpop.f32.mrf.mxu0
      %v1998 = vadd.f32 %v1576, %v1997
      %v1999 = vpop.f32.mrf.mxu0
      %v2000 = vadd.f32 %v1580, %v1999
      %v2001 = vpop.f32.mrf.mxu0
      %v2002 = vadd.f32 %v1576, %v2001
      %v2003 = vpop.f32.mrf.mxu0
      %v2004 = vadd.f32 %v1580, %v2003
      %2005 = vmatprep.mubr.bf16.mxu0 %v1472
      %2006 = vmatmul.mubr.bf16.gmra.mxu0 %v1471
      %v2007 = vpop.f32.mrf.mxu0
      %v2008 = vadd.f32 %v1576, %v2007
      %v2009 = vpop.f32.mrf.mxu0
      %v2010 = vadd.f32 %v1580, %v2009
      %v2011 = vpop.f32.mrf.mxu0
      %v2012 = vadd.f32 %v1576, %v2011
      %v2013 = vpop.f32.mrf.mxu0
      %v2014 = vadd.f32 %v1580, %v2013
      %2015 = vmatprep.mubr.bf16.mxu0 %v1476
      %2016 = vmatmul.mubr.bf16.gmra.mxu0 %v1475
      %v2017 = vpop.f32.mrf.mxu0
      %v2018 = vadd.f32 %v1576, %v2017
      %v2019 = vpop.f32.mrf.mxu0
      %v2020 = vadd.f32 %v1580, %v2019
      %v2021 = vpop.f32.mrf.mxu0
      %v2022 = vadd.f32 %v1576, %v2021
      %v2023 = vpop.f32.mrf.mxu0
      %v2024 = vadd.f32 %v1580, %v2023
      %2025 = vmatprep.mubr.bf16.mxu0 %v1480
      %2026 = vmatmul.mubr.bf16.gmra.mxu0 %v1479
      %v2027 = vpop.f32.mrf.mxu0
      %v2028 = vadd.f32 %v1576, %v2027
      %v2029 = vpop.f32.mrf.mxu0
      %v2030 = vadd.f32 %v1580, %v2029
      %v2031 = vpop.f32.mrf.mxu0
      %v2032 = vadd.f32 %v1576, %v2031
      %v2033 = vpop.f32.mrf.mxu0
      %v2034 = vadd.f32 %v1580, %v2033
      %2035 = vmatprep.mubr.bf16.mxu0 %v1484
      %2036 = vmatmul.mubr.bf16.gmra.mxu0 %v1483
      %v2037 = vpop.f32.mrf.mxu0
      %v2038 = vadd.f32 %v1576, %v2037
      %v2039 = vpop.f32.mrf.mxu0
      %v2040 = vadd.f32 %v1580, %v2039
      %v2041 = vpop.f32.mrf.mxu0
      %v2042 = vadd.f32 %v1576, %v2041
      %v2043 = vpop.f32.mrf.mxu0
      %v2044 = vadd.f32 %v1580, %v2043
      %2045 = vmatprep.mubr.bf16.mxu0 %v1488
      %2046 = vmatmul.mubr.bf16.gmra.mxu0 %v1487
      %v2047 = vpop.f32.mrf.mxu0
      %v2048 = vadd.f32 %v1576, %v2047
      %v2049 = vpop.f32.mrf.mxu0
      %v2050 = vadd.f32 %v1580, %v2049
      %v2051 = vpop.f32.mrf.mxu0
      %v2052 = vadd.f32 %v1576, %v2051
      %v2053 = vpop.f32.mrf.mxu0
      %v2054 = vadd.f32 %v1580, %v2053
      %2055 = vmatprep.mubr.bf16.mxu0 %v1492
      %2056 = vmatmul.mubr.bf16.gmra.mxu0 %v1491
      %v2057 = vpop.f32.mrf.mxu0
      %v2058 = vadd.f32 %v1576, %v2057
      %v2059 = vpop.f32.mrf.mxu0
      %v2060 = vadd.f32 %v1580, %v2059
      %v2061 = vpop.f32.mrf.mxu0
      %v2062 = vadd.f32 %v1576, %v2061
      %v2063 = vpop.f32.mrf.mxu0
      %v2064 = vadd.f32 %v1580, %v2063
      %2065 = vmatprep.mubr.bf16.mxu0 %v1496
      %2066 = vmatmul.mubr.bf16.gmra.mxu0 %v1495
      %v2067 = vpop.f32.mrf.mxu0
      %v2068 = vadd.f32 %v1576, %v2067
      %v2069 = vpop.f32.mrf.mxu0
      %v2070 = vadd.f32 %v1580, %v2069
      %v2071 = vpop.f32.mrf.mxu0
      %v2072 = vadd.f32 %v1576, %v2071
      %v2073 = vpop.f32.mrf.mxu0
      %v2074 = vadd.f32 %v1580, %v2073
      %2075 = vmatprep.mubr.bf16.mxu0 %v1500
      %2076 = vmatmul.mubr.bf16.gmra.mxu0 %v1499
      %v2077 = vpop.f32.mrf.mxu0
      %v2078 = vadd.f32 %v1576, %v2077
      %v2079 = vpop.f32.mrf.mxu0
      %v2080 = vadd.f32 %v1580, %v2079
      %v2081 = vpop.f32.mrf.mxu0
      %v2082 = vadd.f32 %v1576, %v2081
      %v2083 = vpop.f32.mrf.mxu0
      %v2084 = vadd.f32 %v1580, %v2083
      %2085 = vmatprep.mubr.bf16.mxu0 %v1504
      %2086 = vmatmul.mubr.bf16.gmra.mxu0 %v1503
      %v2087 = vpop.f32.mrf.mxu0
      %v2088 = vadd.f32 %v1576, %v2087
      %v2089 = vpop.f32.mrf.mxu0
      %v2090 = vadd.f32 %v1580, %v2089
      %v2091 = vpop.f32.mrf.mxu0
      %v2092 = vadd.f32 %v1576, %v2091
      %v2093 = vpop.f32.mrf.mxu0
      %v2094 = vadd.f32 %v1580, %v2093
      %2095 = vdwg.mxu0
      %2096 = vmatprep.subr.bf16.mxu0 %v1822
      %2097 = vmatpush1.bf16.msra.mxu0 %v1821
      %2098 = vmatprep.subr.bf16.mxu0 %v1820
      %2099 = vmatpush1.bf16.msra.mxu0 %v1819
      %2100 = vmatprep.subr.bf16.mxu0 %v1818
      %2101 = vmatpush1.bf16.msra.mxu0 %v1817
      %2102 = vmatprep.subr.bf16.mxu0 %v1816
      %2103 = vmatpush1.bf16.msra.mxu0 %v1815
      %2104 = vmatprep.subr.bf16.mxu0 %v1814
      %2105 = vmatpush1.bf16.msra.mxu0 %v1813
      %2106 = vmatprep.subr.bf16.mxu0 %v1812
      %2107 = vmatpush1.bf16.msra.mxu0 %v1811
      %2108 = vmatprep.subr.bf16.mxu0 %v1810
      %2109 = vmatpush1.bf16.msra.mxu0 %v1809
      %2110 = vmatprep.subr.bf16.mxu0 %v1808
      %2111 = vmatpush1.bf16.msra.mxu0 %v1807
      %2112 = vmatprep.subr.bf16.mxu0 %v1838
      %2113 = vmatpush2.bf16.msra.mxu0 %v1837
      %2114 = vmatprep.subr.bf16.mxu0 %v1836
      %2115 = vmatpush2.bf16.msra.mxu0 %v1835
      %2116 = vmatprep.subr.bf16.mxu0 %v1834
      %2117 = vmatpush2.bf16.msra.mxu0 %v1833
      %2118 = vmatprep.subr.bf16.mxu0 %v1832
      %2119 = vmatpush2.bf16.msra.mxu0 %v1831
      %2120 = vmatprep.subr.bf16.mxu0 %v1830
      %2121 = vmatpush2.bf16.msra.mxu0 %v1829
      %2122 = vmatprep.subr.bf16.mxu0 %v1828
      %2123 = vmatpush2.bf16.msra.mxu0 %v1827
      %2124 = vmatprep.subr.bf16.mxu0 %v1826
      %2125 = vmatpush2.bf16.msra.mxu0 %v1825
      %2126 = vmatprep.subr.bf16.mxu0 %v1824
      %2127 = vmatpush2.bf16.msra.mxu0 %v1823
      %2128 = vmatprep.mubr.bf16.mxu0 %v1446
      %2129 = vmatmul.mubr.bf16.gmra.mxu0 %v1445
      %v2130 = vpop.f32.mrf.mxu0
      %v2131 = vadd.f32 %v1938, %v2130
      %v2132 = vpop.f32.mrf.mxu0
      %v2133 = vadd.f32 %v1940, %v2132
      %v2134 = vpop.f32.mrf.mxu0
      %v2135 = vadd.f32 %v1942, %v2134
      %v2136 = vpop.f32.mrf.mxu0
      %v2137 = vadd.f32 %v1944, %v2136
      %2138 = vmatprep.mubr.bf16.mxu0 %v1450
      %2139 = vmatmul.mubr.bf16.gmra.mxu0 %v1449
      %v2140 = vpop.f32.mrf.mxu0
      %v2141 = vadd.f32 %v1948, %v2140
      %v2142 = vpop.f32.mrf.mxu0
      %v2143 = vadd.f32 %v1950, %v2142
      %v2144 = vpop.f32.mrf.mxu0
      %v2145 = vadd.f32 %v1952, %v2144
      %v2146 = vpop.f32.mrf.mxu0
      %v2147 = vadd.f32 %v1954, %v2146
      %2148 = vmatprep.mubr.bf16.mxu0 %v1454
      %2149 = vmatmul.mubr.bf16.gmra.mxu0 %v1453
      %v2150 = vpop.f32.mrf.mxu0
      %v2151 = vadd.f32 %v1958, %v2150
      %v2152 = vpop.f32.mrf.mxu0
      %v2153 = vadd.f32 %v1960, %v2152
      %v2154 = vpop.f32.mrf.mxu0
      %v2155 = vadd.f32 %v1962, %v2154
      %v2156 = vpop.f32.mrf.mxu0
      %v2157 = vadd.f32 %v1964, %v2156
      %2158 = vmatprep.mubr.bf16.mxu0 %v1458
      %2159 = vmatmul.mubr.bf16.gmra.mxu0 %v1457
      %v2160 = vpop.f32.mrf.mxu0
      %v2161 = vadd.f32 %v1968, %v2160
      %v2162 = vpop.f32.mrf.mxu0
      %v2163 = vadd.f32 %v1970, %v2162
      %v2164 = vpop.f32.mrf.mxu0
      %v2165 = vadd.f32 %v1972, %v2164
      %v2166 = vpop.f32.mrf.mxu0
      %v2167 = vadd.f32 %v1974, %v2166
      %2168 = vmatprep.mubr.bf16.mxu0 %v1462
      %2169 = vmatmul.mubr.bf16.gmra.mxu0 %v1461
      %v2170 = vpop.f32.mrf.mxu0
      %v2171 = vadd.f32 %v1978, %v2170
      %v2172 = vpop.f32.mrf.mxu0
      %v2173 = vadd.f32 %v1980, %v2172
      %v2174 = vpop.f32.mrf.mxu0
      %v2175 = vadd.f32 %v1982, %v2174
      %v2176 = vpop.f32.mrf.mxu0
      %v2177 = vadd.f32 %v1984, %v2176
      %2178 = vmatprep.mubr.bf16.mxu0 %v1466
      %2179 = vmatmul.mubr.bf16.gmra.mxu0 %v1465
      %v2180 = vpop.f32.mrf.mxu0
      %v2181 = vadd.f32 %v1988, %v2180
      %v2182 = vpop.f32.mrf.mxu0
      %v2183 = vadd.f32 %v1990, %v2182
      %v2184 = vpop.f32.mrf.mxu0
      %v2185 = vadd.f32 %v1992, %v2184
      %v2186 = vpop.f32.mrf.mxu0
      %v2187 = vadd.f32 %v1994, %v2186
      %2188 = vmatprep.mubr.bf16.mxu0 %v1470
      %2189 = vmatmul.mubr.bf16.gmra.mxu0 %v1469
      %v2190 = vpop.f32.mrf.mxu0
      %v2191 = vadd.f32 %v1998, %v2190
      %v2192 = vpop.f32.mrf.mxu0
      %v2193 = vadd.f32 %v2000, %v2192
      %v2194 = vpop.f32.mrf.mxu0
      %v2195 = vadd.f32 %v2002, %v2194
      %v2196 = vpop.f32.mrf.mxu0
      %v2197 = vadd.f32 %v2004, %v2196
      %2198 = vmatprep.mubr.bf16.mxu0 %v1474
      %2199 = vmatmul.mubr.bf16.gmra.mxu0 %v1473
      %v2200 = vpop.f32.mrf.mxu0
      %v2201 = vadd.f32 %v2008, %v2200
      %v2202 = vpop.f32.mrf.mxu0
      %v2203 = vadd.f32 %v2010, %v2202
      %v2204 = vpop.f32.mrf.mxu0
      %v2205 = vadd.f32 %v2012, %v2204
      %v2206 = vpop.f32.mrf.mxu0
      %v2207 = vadd.f32 %v2014, %v2206
      %2208 = vmatprep.mubr.bf16.mxu0 %v1478
      %2209 = vmatmul.mubr.bf16.gmra.mxu0 %v1477
      %v2210 = vpop.f32.mrf.mxu0
      %v2211 = vadd.f32 %v2018, %v2210
      %v2212 = vpop.f32.mrf.mxu0
      %v2213 = vadd.f32 %v2020, %v2212
      %v2214 = vpop.f32.mrf.mxu0
      %v2215 = vadd.f32 %v2022, %v2214
      %v2216 = vpop.f32.mrf.mxu0
      %v2217 = vadd.f32 %v2024, %v2216
      %2218 = vmatprep.mubr.bf16.mxu0 %v1482
      %2219 = vmatmul.mubr.bf16.gmra.mxu0 %v1481
      %v2220 = vpop.f32.mrf.mxu0
      %v2221 = vadd.f32 %v2028, %v2220
      %v2222 = vpop.f32.mrf.mxu0
      %v2223 = vadd.f32 %v2030, %v2222
      %v2224 = vpop.f32.mrf.mxu0
      %v2225 = vadd.f32 %v2032, %v2224
      %v2226 = vpop.f32.mrf.mxu0
      %v2227 = vadd.f32 %v2034, %v2226
      %2228 = vmatprep.mubr.bf16.mxu0 %v1486
      %2229 = vmatmul.mubr.bf16.gmra.mxu0 %v1485
      %v2230 = vpop.f32.mrf.mxu0
      %v2231 = vadd.f32 %v2038, %v2230
      %v2232 = vpop.f32.mrf.mxu0
      %v2233 = vadd.f32 %v2040, %v2232
      %v2234 = vpop.f32.mrf.mxu0
      %v2235 = vadd.f32 %v2042, %v2234
      %v2236 = vpop.f32.mrf.mxu0
      %v2237 = vadd.f32 %v2044, %v2236
      %2238 = vmatprep.mubr.bf16.mxu0 %v1490
      %2239 = vmatmul.mubr.bf16.gmra.mxu0 %v1489
      %v2240 = vpop.f32.mrf.mxu0
      %v2241 = vadd.f32 %v2048, %v2240
      %v2242 = vpop.f32.mrf.mxu0
      %v2243 = vadd.f32 %v2050, %v2242
      %v2244 = vpop.f32.mrf.mxu0
      %v2245 = vadd.f32 %v2052, %v2244
      %v2246 = vpop.f32.mrf.mxu0
      %v2247 = vadd.f32 %v2054, %v2246
      %2248 = vmatprep.mubr.bf16.mxu0 %v1494
      %2249 = vmatmul.mubr.bf16.gmra.mxu0 %v1493
      %v2250 = vpop.f32.mrf.mxu0
      %v2251 = vadd.f32 %v2058, %v2250
      %v2252 = vpop.f32.mrf.mxu0
      %v2253 = vadd.f32 %v2060, %v2252
      %v2254 = vpop.f32.mrf.mxu0
      %v2255 = vadd.f32 %v2062, %v2254
      %v2256 = vpop.f32.mrf.mxu0
      %v2257 = vadd.f32 %v2064, %v2256
      %2258 = vmatprep.mubr.bf16.mxu0 %v1498
      %2259 = vmatmul.mubr.bf16.gmra.mxu0 %v1497
      %v2260 = vpop.f32.mrf.mxu0
      %v2261 = vadd.f32 %v2068, %v2260
      %v2262 = vpop.f32.mrf.mxu0
      %v2263 = vadd.f32 %v2070, %v2262
      %v2264 = vpop.f32.mrf.mxu0
      %v2265 = vadd.f32 %v2072, %v2264
      %v2266 = vpop.f32.mrf.mxu0
      %v2267 = vadd.f32 %v2074, %v2266
      %2268 = vmatprep.mubr.bf16.mxu0 %v1502
      %2269 = vmatmul.mubr.bf16.gmra.mxu0 %v1501
      %v2270 = vpop.f32.mrf.mxu0
      %v2271 = vadd.f32 %v2078, %v2270
      %v2272 = vpop.f32.mrf.mxu0
      %v2273 = vadd.f32 %v2080, %v2272
      %v2274 = vpop.f32.mrf.mxu0
      %v2275 = vadd.f32 %v2082, %v2274
      %v2276 = vpop.f32.mrf.mxu0
      %v2277 = vadd.f32 %v2084, %v2276
      %2278 = vmatprep.mubr.bf16.mxu0 %v1506
      %2279 = vmatmul.mubr.bf16.gmra.mxu0 %v1505
      %v2280 = vpop.f32.mrf.mxu0
      %v2281 = vadd.f32 %v2088, %v2280
      %v2282 = vpop.f32.mrf.mxu0
      %v2283 = vadd.f32 %v2090, %v2282
      %v2284 = vpop.f32.mrf.mxu0
      %v2285 = vadd.f32 %v2092, %v2284
      %v2286 = vpop.f32.mrf.mxu0
      %v2287 = vadd.f32 %v2094, %v2286
      %2288 = vdwg.mxu0
      %v2289 = vmax.f32 %v2131, 0.0
      %v2290 = vmax.f32 %v2133, 0.0
      %v2291 = vmax.f32 %v2135, 0.0
      %v2292 = vmax.f32 %v2137, 0.0
      %v2293 = vmax.f32 %v2141, 0.0
      %v2294 = vmax.f32 %v2143, 0.0
      %v2295 = vmax.f32 %v2145, 0.0
      %v2296 = vmax.f32 %v2147, 0.0
      %v2297 = vmax.f32 %v2151, 0.0
      %v2298 = vmax.f32 %v2153, 0.0
      %v2299 = vmax.f32 %v2155, 0.0
      %v2300 = vmax.f32 %v2157, 0.0
      %v2301 = vmax.f32 %v2161, 0.0
      %v2302 = vmax.f32 %v2163, 0.0
      %v2303 = vmax.f32 %v2165, 0.0
      %v2304 = vmax.f32 %v2167, 0.0
      %v2305 = vmax.f32 %v2171, 0.0
      %v2306 = vmax.f32 %v2173, 0.0
      %v2307 = vmax.f32 %v2175, 0.0
      %v2308 = vmax.f32 %v2177, 0.0
      %v2309 = vmax.f32 %v2181, 0.0
      %v2310 = vmax.f32 %v2183, 0.0
      %v2311 = vmax.f32 %v2185, 0.0
      %v2312 = vmax.f32 %v2187, 0.0
      %v2313 = vmax.f32 %v2191, 0.0
      %v2314 = vmax.f32 %v2193, 0.0
      %v2315 = vmax.f32 %v2195, 0.0
      %v2316 = vmax.f32 %v2197, 0.0
      %v2317 = vmax.f32 %v2201, 0.0
      %v2318 = vmax.f32 %v2203, 0.0
      %v2319 = vmax.f32 %v2205, 0.0
      %v2320 = vmax.f32 %v2207, 0.0
      %v2321 = vmax.f32 %v2211, 0.0
      %v2322 = vmax.f32 %v2213, 0.0
      %v2323 = vmax.f32 %v2215, 0.0
      %v2324 = vmax.f32 %v2217, 0.0
      %v2325 = vmax.f32 %v2221, 0.0
      %v2326 = vmax.f32 %v2223, 0.0
      %v2327 = vmax.f32 %v2225, 0.0
      %v2328 = vmax.f32 %v2227, 0.0
      %v2329 = vmax.f32 %v2231, 0.0
      %v2330 = vmax.f32 %v2233, 0.0
      %v2331 = vmax.f32 %v2235, 0.0
      %v2332 = vmax.f32 %v2237, 0.0
      %v2333 = vmax.f32 %v2241, 0.0
      %v2334 = vmax.f32 %v2243, 0.0
      %v2335 = vmax.f32 %v2245, 0.0
      %v2336 = vmax.f32 %v2247, 0.0
      %v2337 = vmax.f32 %v2251, 0.0
      %v2338 = vmax.f32 %v2253, 0.0
      %v2339 = vmax.f32 %v2255, 0.0
      %v2340 = vmax.f32 %v2257, 0.0
      %v2341 = vmax.f32 %v2261, 0.0
      %v2342 = vmax.f32 %v2263, 0.0
      %v2343 = vmax.f32 %v2265, 0.0
      %v2344 = vmax.f32 %v2267, 0.0
      %v2345 = vmax.f32 %v2271, 0.0
      %v2346 = vmax.f32 %v2273, 0.0
      %v2347 = vmax.f32 %v2275, 0.0
      %v2348 = vmax.f32 %v2277, 0.0
      %v2349 = vmax.f32 %v2281, 0.0
      %v2350 = vmax.f32 %v2283, 0.0
      %v2351 = vmax.f32 %v2285, 0.0
      %v2352 = vmax.f32 %v2287, 0.0
      %v2353 = vpack.c.bf16 %v2291, %v2289
      %v2354 = vpack.c.bf16 %v2292, %v2290
      %v2355 = vpack.c.bf16 %v2295, %v2293
      %v2356 = vpack.c.bf16 %v2296, %v2294
      %v2357 = vpack.c.bf16 %v2299, %v2297
      %v2358 = vpack.c.bf16 %v2300, %v2298
      %v2359 = vpack.c.bf16 %v2303, %v2301
      %v2360 = vpack.c.bf16 %v2304, %v2302
      %v2361 = vpack.c.bf16 %v2307, %v2305
      %v2362 = vpack.c.bf16 %v2308, %v2306
      %v2363 = vpack.c.bf16 %v2311, %v2309
      %v2364 = vpack.c.bf16 %v2312, %v2310
      %v2365 = vpack.c.bf16 %v2315, %v2313
      %v2366 = vpack.c.bf16 %v2316, %v2314
      %v2367 = vpack.c.bf16 %v2319, %v2317
      %v2368 = vpack.c.bf16 %v2320, %v2318
      %v2369 = vpack.c.bf16 %v2323, %v2321
      %v2370 = vpack.c.bf16 %v2324, %v2322
      %v2371 = vpack.c.bf16 %v2327, %v2325
      %v2372 = vpack.c.bf16 %v2328, %v2326
      %v2373 = vpack.c.bf16 %v2331, %v2329
      %v2374 = vpack.c.bf16 %v2332, %v2330
      %v2375 = vpack.c.bf16 %v2335, %v2333
      %v2376 = vpack.c.bf16 %v2336, %v2334
      %v2377 = vpack.c.bf16 %v2339, %v2337
      %v2378 = vpack.c.bf16 %v2340, %v2338
      %v2379 = vpack.c.bf16 %v2343, %v2341
      %v2380 = vpack.c.bf16 %v2344, %v2342
      %v2381 = vpack.c.bf16 %v2347, %v2345
      %v2382 = vpack.c.bf16 %v2348, %v2346
      %v2383 = vpack.c.bf16 %v2351, %v2349
      %v2384 = vpack.c.bf16 %v2352, %v2350
      %v2385 = vld [vmem:[%s7] sm:$0xf]
      %v2386 = vld [vmem:[%s7 + $0x4] sm:$0xf]
      %v2387 = vld [vmem:[%s7 + $0x8] sm:$0xf]
      %v2388 = vld [vmem:[%s7 + $0xc] sm:$0xf]
      %v2389 = vld [vmem:[%s7 + $0x10] sm:$0xf]
      %v2390 = vld [vmem:[%s7 + $0x14] sm:$0xf]
      %v2391 = vld [vmem:[%s7 + $0x18] sm:$0xf]
      %v2392 = vld [vmem:[%s7 + $0x1c] sm:$0xf]
      %v2393 = vld [vmem:[%s7 + $0x20] sm:$0xf]
      %v2394 = vld [vmem:[%s7 + $0x24] sm:$0xf]
      %v2395 = vld [vmem:[%s7 + $0x28] sm:$0xf]
      %v2396 = vld [vmem:[%s7 + $0x2c] sm:$0xf]
      %v2397 = vld [vmem:[%s7 + $0x30] sm:$0xf]
      %v2398 = vld [vmem:[%s7 + $0x34] sm:$0xf]
      %v2399 = vld [vmem:[%s7 + $0x38] sm:$0xf]
      %v2400 = vld [vmem:[%s7 + $0x3c] sm:$0xf]
      %v2401 = vld [vmem:[%s7 + $0x40] sm:$0xf]
      %v2402 = vld [vmem:[%s7 + $0x44] sm:$0xf]
      %v2403 = vld [vmem:[%s7 + $0x48] sm:$0xf]
      %v2404 = vld [vmem:[%s7 + $0x4c] sm:$0xf]
      %v2405 = vld [vmem:[%s7 + $0x50] sm:$0xf]
      %v2406 = vld [vmem:[%s7 + $0x54] sm:$0xf]
      %v2407 = vld [vmem:[%s7 + $0x58] sm:$0xf]
      %v2408 = vld [vmem:[%s7 + $0x5c] sm:$0xf]
      %v2409 = vld [vmem:[%s7 + $0x60] sm:$0xf]
      %v2410 = vld [vmem:[%s7 + $0x64] sm:$0xf]
      %v2411 = vld [vmem:[%s7 + $0x68] sm:$0xf]
      %v2412 = vld [vmem:[%s7 + $0x6c] sm:$0xf]
      %v2413 = vld [vmem:[%s7 + $0x70] sm:$0xf]
      %v2414 = vld [vmem:[%s7 + $0x74] sm:$0xf]
      %v2415 = vld [vmem:[%s7 + $0x78] sm:$0xf]
      %v2416 = vld [vmem:[%s7 + $0x7c] sm:$0xf]
      %v2417 = vld [vmem:[%s8] sm:$0x1]
      %v2419 = vlaneseq
      %v2420 = vshrl.u32 %v2419, 7
      %v2421 = vsub.s32 0, %v2420
      %v2422 = vrot.slane %v2417, %v2421
      %v2456 = vunpack.c.l.b16 %v2385
      %v2457 = vunpack.c.l.b16 %v2386
      %v2458 = vunpack.c.l.b16 %v2387
      %v2459 = vunpack.c.l.b16 %v2388
      %v2460 = vunpack.c.l.b16 %v2389
      %v2461 = vunpack.c.l.b16 %v2390
      %v2462 = vunpack.c.l.b16 %v2391
      %v2463 = vunpack.c.l.b16 %v2392
      %v2464 = vunpack.c.l.b16 %v2393
      %v2465 = vunpack.c.l.b16 %v2394
      %v2466 = vunpack.c.l.b16 %v2395
      %v2467 = vunpack.c.l.b16 %v2396
      %v2468 = vunpack.c.l.b16 %v2397
      %v2469 = vunpack.c.l.b16 %v2398
      %v2470 = vunpack.c.l.b16 %v2399
      %v2471 = vunpack.c.l.b16 %v2400
      %v2472 = vunpack.c.l.b16 %v2401
      %v2473 = vunpack.c.l.b16 %v2402
      %v2474 = vunpack.c.l.b16 %v2403
      %v2475 = vunpack.c.l.b16 %v2404
      %v2476 = vunpack.c.l.b16 %v2405
      %v2477 = vunpack.c.l.b16 %v2406
      %v2478 = vunpack.c.l.b16 %v2407
      %v2479 = vunpack.c.l.b16 %v2408
      %v2480 = vunpack.c.l.b16 %v2409
      %v2481 = vunpack.c.l.b16 %v2410
      %v2482 = vunpack.c.l.b16 %v2411
      %v2483 = vunpack.c.l.b16 %v2412
      %v2484 = vunpack.c.l.b16 %v2413
      %v2485 = vunpack.c.l.b16 %v2414
      %v2486 = vunpack.c.l.b16 %v2415
      %v2487 = vunpack.c.l.b16 %v2416
      %v2488 = vpack.c.b16 %v2457, %v2456
      %v2489 = vpack.c.b16 %v2459, %v2458
      %v2490 = vpack.c.b16 %v2461, %v2460
      %v2491 = vpack.c.b16 %v2463, %v2462
      %v2492 = vpack.c.b16 %v2465, %v2464
      %v2493 = vpack.c.b16 %v2467, %v2466
      %v2494 = vpack.c.b16 %v2469, %v2468
      %v2495 = vpack.c.b16 %v2471, %v2470
      %v2496 = vpack.c.b16 %v2473, %v2472
      %v2497 = vpack.c.b16 %v2475, %v2474
      %v2498 = vpack.c.b16 %v2477, %v2476
      %v2499 = vpack.c.b16 %v2479, %v2478
      %v2500 = vpack.c.b16 %v2481, %v2480
      %v2501 = vpack.c.b16 %v2483, %v2482
      %v2502 = vpack.c.b16 %v2485, %v2484
      %v2503 = vpack.c.b16 %v2487, %v2486
      %2520 = vmatprep.subr.bf16.mxu0 0
      %2521 = vmatpush1.bf16.msra.mxu0 %v2495
      %2522 = vmatprep.subr.bf16.mxu0 0
      %2523 = vmatpush1.bf16.msra.mxu0 %v2494
      %2524 = vmatprep.subr.bf16.mxu0 0
      %2525 = vmatpush1.bf16.msra.mxu0 %v2493
      %2526 = vmatprep.subr.bf16.mxu0 0
      %2527 = vmatpush1.bf16.msra.mxu0 %v2492
      %2528 = vmatprep.subr.bf16.mxu0 0
      %2529 = vmatpush1.bf16.msra.mxu0 %v2491
      %2530 = vmatprep.subr.bf16.mxu0 0
      %2531 = vmatpush1.bf16.msra.mxu0 %v2490
      %2532 = vmatprep.subr.bf16.mxu0 0
      %2533 = vmatpush1.bf16.msra.mxu0 %v2489
      %2534 = vmatprep.subr.bf16.mxu0 0
      %2535 = vmatpush1.bf16.msra.mxu0 %v2488
      %2536 = vmatprep.subr.bf16.mxu0 0
      %2537 = vmatpush2.bf16.msra.mxu0 %v2503
      %2538 = vmatprep.subr.bf16.mxu0 0
      %2539 = vmatpush2.bf16.msra.mxu0 %v2502
      %2540 = vmatprep.subr.bf16.mxu0 0
      %2541 = vmatpush2.bf16.msra.mxu0 %v2501
      %2542 = vmatprep.subr.bf16.mxu0 0
      %2543 = vmatpush2.bf16.msra.mxu0 %v2500
      %2544 = vmatprep.subr.bf16.mxu0 0
      %2545 = vmatpush2.bf16.msra.mxu0 %v2499
      %2546 = vmatprep.subr.bf16.mxu0 0
      %2547 = vmatpush2.bf16.msra.mxu0 %v2498
      %2548 = vmatprep.subr.bf16.mxu0 0
      %2549 = vmatpush2.bf16.msra.mxu0 %v2497
      %2550 = vmatprep.subr.bf16.mxu0 0
      %2551 = vmatpush2.bf16.msra.mxu0 %v2496
      %2552 = vmatprep.mubr.bf16.mxu0 %v2354
      %2553 = vmatmul.mubr.bf16.gmra.mxu0 %v2353
      %v2554 = vpop.f32.mrf.mxu0
      %v2555 = vadd.f32 %v2422, %v2554
      %v2556 = vpop.f32.mrf.mxu0
      %v2557 = vpop.f32.mrf.mxu0
      %v2558 = vadd.f32 %v2422, %v2557
      %v2559 = vpop.f32.mrf.mxu0
      %2560 = vmatprep.mubr.bf16.mxu0 %v2356
      %2561 = vmatmul.mubr.bf16.gmra.mxu0 %v2355
      %v2562 = vpop.f32.mrf.mxu0
      %v2563 = vadd.f32 %v2422, %v2562
      %v2564 = vpop.f32.mrf.mxu0
      %v2565 = vpop.f32.mrf.mxu0
      %v2566 = vadd.f32 %v2422, %v2565
      %v2567 = vpop.f32.mrf.mxu0
      %2568 = vmatprep.mubr.bf16.mxu0 %v2358
      %2569 = vmatmul.mubr.bf16.gmra.mxu0 %v2357
      %v2570 = vpop.f32.mrf.mxu0
      %v2571 = vadd.f32 %v2422, %v2570
      %v2572 = vpop.f32.mrf.mxu0
      %v2573 = vpop.f32.mrf.mxu0
      %v2574 = vadd.f32 %v2422, %v2573
      %v2575 = vpop.f32.mrf.mxu0
      %2576 = vmatprep.mubr.bf16.mxu0 %v2360
      %2577 = vmatmul.mubr.bf16.gmra.mxu0 %v2359
      %v2578 = vpop.f32.mrf.mxu0
      %v2579 = vadd.f32 %v2422, %v2578
      %v2580 = vpop.f32.mrf.mxu0
      %v2581 = vpop.f32.mrf.mxu0
      %v2582 = vadd.f32 %v2422, %v2581
      %v2583 = vpop.f32.mrf.mxu0
      %2584 = vmatprep.mubr.bf16.mxu0 %v2362
      %2585 = vmatmul.mubr.bf16.gmra.mxu0 %v2361
      %v2586 = vpop.f32.mrf.mxu0
      %v2587 = vadd.f32 %v2422, %v2586
      %v2588 = vpop.f32.mrf.mxu0
      %v2589 = vpop.f32.mrf.mxu0
      %v2590 = vadd.f32 %v2422, %v2589
      %v2591 = vpop.f32.mrf.mxu0
      %2592 = vmatprep.mubr.bf16.mxu0 %v2364
      %2593 = vmatmul.mubr.bf16.gmra.mxu0 %v2363
      %v2594 = vpop.f32.mrf.mxu0
      %v2595 = vadd.f32 %v2422, %v2594
      %v2596 = vpop.f32.mrf.mxu0
      %v2597 = vpop.f32.mrf.mxu0
      %v2598 = vadd.f32 %v2422, %v2597
      %v2599 = vpop.f32.mrf.mxu0
      %2600 = vmatprep.mubr.bf16.mxu0 %v2366
      %2601 = vmatmul.mubr.bf16.gmra.mxu0 %v2365
      %v2602 = vpop.f32.mrf.mxu0
      %v2603 = vadd.f32 %v2422, %v2602
      %v2604 = vpop.f32.mrf.mxu0
      %v2605 = vpop.f32.mrf.mxu0
      %v2606 = vadd.f32 %v2422, %v2605
      %v2607 = vpop.f32.mrf.mxu0
      %2608 = vmatprep.mubr.bf16.mxu0 %v2368
      %2609 = vmatmul.mubr.bf16.gmra.mxu0 %v2367
      %v2610 = vpop.f32.mrf.mxu0
      %v2611 = vadd.f32 %v2422, %v2610
      %v2612 = vpop.f32.mrf.mxu0
      %v2613 = vpop.f32.mrf.mxu0
      %v2614 = vadd.f32 %v2422, %v2613
      %v2615 = vpop.f32.mrf.mxu0
      %2616 = vmatprep.mubr.bf16.mxu0 %v2370
      %2617 = vmatmul.mubr.bf16.gmra.mxu0 %v2369
      %v2618 = vpop.f32.mrf.mxu0
      %v2619 = vadd.f32 %v2422, %v2618
      %v2620 = vpop.f32.mrf.mxu0
      %v2621 = vpop.f32.mrf.mxu0
      %v2622 = vadd.f32 %v2422, %v2621
      %v2623 = vpop.f32.mrf.mxu0
      %2624 = vmatprep.mubr.bf16.mxu0 %v2372
      %2625 = vmatmul.mubr.bf16.gmra.mxu0 %v2371
      %v2626 = vpop.f32.mrf.mxu0
      %v2627 = vadd.f32 %v2422, %v2626
      %v2628 = vpop.f32.mrf.mxu0
      %v2629 = vpop.f32.mrf.mxu0
      %v2630 = vadd.f32 %v2422, %v2629
      %v2631 = vpop.f32.mrf.mxu0
      %2632 = vmatprep.mubr.bf16.mxu0 %v2374
      %2633 = vmatmul.mubr.bf16.gmra.mxu0 %v2373
      %v2634 = vpop.f32.mrf.mxu0
      %v2635 = vadd.f32 %v2422, %v2634
      %v2636 = vpop.f32.mrf.mxu0
      %v2637 = vpop.f32.mrf.mxu0
      %v2638 = vadd.f32 %v2422, %v2637
      %v2639 = vpop.f32.mrf.mxu0
      %2640 = vmatprep.mubr.bf16.mxu0 %v2376
      %2641 = vmatmul.mubr.bf16.gmra.mxu0 %v2375
      %v2642 = vpop.f32.mrf.mxu0
      %v2643 = vadd.f32 %v2422, %v2642
      %v2644 = vpop.f32.mrf.mxu0
      %v2645 = vpop.f32.mrf.mxu0
      %v2646 = vadd.f32 %v2422, %v2645
      %v2647 = vpop.f32.mrf.mxu0
      %2648 = vmatprep.mubr.bf16.mxu0 %v2378
      %2649 = vmatmul.mubr.bf16.gmra.mxu0 %v2377
      %v2650 = vpop.f32.mrf.mxu0
      %v2651 = vadd.f32 %v2422, %v2650
      %v2652 = vpop.f32.mrf.mxu0
      %v2653 = vpop.f32.mrf.mxu0
      %v2654 = vadd.f32 %v2422, %v2653
      %v2655 = vpop.f32.mrf.mxu0
      %2656 = vmatprep.mubr.bf16.mxu0 %v2380
      %2657 = vmatmul.mubr.bf16.gmra.mxu0 %v2379
      %v2658 = vpop.f32.mrf.mxu0
      %v2659 = vadd.f32 %v2422, %v2658
      %v2660 = vpop.f32.mrf.mxu0
      %v2661 = vpop.f32.mrf.mxu0
      %v2662 = vadd.f32 %v2422, %v2661
      %v2663 = vpop.f32.mrf.mxu0
      %2664 = vmatprep.mubr.bf16.mxu0 %v2382
      %2665 = vmatmul.mubr.bf16.gmra.mxu0 %v2381
      %v2666 = vpop.f32.mrf.mxu0
      %v2667 = vadd.f32 %v2422, %v2666
      %v2668 = vpop.f32.mrf.mxu0
      %v2669 = vpop.f32.mrf.mxu0
      %v2670 = vadd.f32 %v2422, %v2669
      %v2671 = vpop.f32.mrf.mxu0
      %2672 = vmatprep.mubr.bf16.mxu0 %v2384
      %2673 = vmatmul.mubr.bf16.gmra.mxu0 %v2383
      %v2674 = vpop.f32.mrf.mxu0
      %v2675 = vadd.f32 %v2422, %v2674
      %v2676 = vpop.f32.mrf.mxu0
      %v2677 = vpop.f32.mrf.mxu0
      %v2678 = vadd.f32 %v2422, %v2677
      %v2679 = vpop.f32.mrf.mxu0
      %2680 = vdwg.mxu0
      %v2681 = vmax.f32 %v2555, 0.0
      %v2682 = vmax.f32 %v2558, 0.0
      %v2683 = vmax.f32 %v2563, 0.0
      %v2684 = vmax.f32 %v2566, 0.0
      %v2685 = vmax.f32 %v2571, 0.0
      %v2686 = vmax.f32 %v2574, 0.0
      %v2687 = vmax.f32 %v2579, 0.0
      %v2688 = vmax.f32 %v2582, 0.0
      %v2689 = vmax.f32 %v2587, 0.0
      %v2690 = vmax.f32 %v2590, 0.0
      %v2691 = vmax.f32 %v2595, 0.0
      %v2692 = vmax.f32 %v2598, 0.0
      %v2693 = vmax.f32 %v2603, 0.0
      %v2694 = vmax.f32 %v2606, 0.0
      %v2695 = vmax.f32 %v2611, 0.0
      %v2696 = vmax.f32 %v2614, 0.0
      %v2697 = vmax.f32 %v2619, 0.0
      %v2698 = vmax.f32 %v2622, 0.0
      %v2699 = vmax.f32 %v2627, 0.0
      %v2700 = vmax.f32 %v2630, 0.0
      %v2701 = vmax.f32 %v2635, 0.0
      %v2702 = vmax.f32 %v2638, 0.0
      %v2703 = vmax.f32 %v2643, 0.0
      %v2704 = vmax.f32 %v2646, 0.0
      %v2705 = vmax.f32 %v2651, 0.0
      %v2706 = vmax.f32 %v2654, 0.0
      %v2707 = vmax.f32 %v2659, 0.0
      %v2708 = vmax.f32 %v2662, 0.0
      %v2709 = vmax.f32 %v2667, 0.0
      %v2710 = vmax.f32 %v2670, 0.0
      %v2711 = vmax.f32 %v2675, 0.0
      %v2712 = vmax.f32 %v2678, 0.0
      %v2713 = vpack.c.bf16 %v2682, %v2681
      %v2714 = vpack.c.bf16 %v2684, %v2683
      %v2715 = vpack.c.bf16 %v2686, %v2685
      %v2716 = vpack.c.bf16 %v2688, %v2687
      %v2717 = vpack.c.bf16 %v2690, %v2689
      %v2718 = vpack.c.bf16 %v2692, %v2691
      %v2719 = vpack.c.bf16 %v2694, %v2693
      %v2720 = vpack.c.bf16 %v2696, %v2695
      %v2721 = vpack.c.bf16 %v2698, %v2697
      %v2722 = vpack.c.bf16 %v2700, %v2699
      %v2723 = vpack.c.bf16 %v2702, %v2701
      %v2724 = vpack.c.bf16 %v2704, %v2703
      %v2725 = vpack.c.bf16 %v2706, %v2705
      %v2726 = vpack.c.bf16 %v2708, %v2707
      %v2727 = vpack.c.bf16 %v2710, %v2709
      %v2728 = vpack.c.bf16 %v2712, %v2711
      %v2729 = vld [vmem:[%s9] sm:$0xf]
      %v2730 = vld [vmem:[%s9 + $0x4] sm:$0xf]
      %v2731 = vld [vmem:[%s9 + $0x8] sm:$0xf]
      %v2732 = vld [vmem:[%s9 + $0xc] sm:$0xf]
      %v2733 = vld [vmem:[%s9 + $0x10] sm:$0xf]
      %v2734 = vld [vmem:[%s9 + $0x14] sm:$0xf]
      %v2735 = vld [vmem:[%s9 + $0x18] sm:$0xf]
      %v2736 = vld [vmem:[%s9 + $0x1c] sm:$0xf]
      %v2737 = vld [vmem:[%s9 + $0x20] sm:$0xf]
      %v2738 = vld [vmem:[%s9 + $0x24] sm:$0xf]
      %v2739 = vld [vmem:[%s9 + $0x28] sm:$0xf]
      %v2740 = vld [vmem:[%s9 + $0x2c] sm:$0xf]
      %v2741 = vld [vmem:[%s9 + $0x30] sm:$0xf]
      %v2742 = vld [vmem:[%s9 + $0x34] sm:$0xf]
      %v2743 = vld [vmem:[%s9 + $0x38] sm:$0xf]
      %v2744 = vld [vmem:[%s9 + $0x3c] sm:$0xf]
      %v2745 = vld [vmem:[%s10] sm:$0x1]
      %v2747 = vlaneseq
      %v2748 = vshrl.u32 %v2747, 7
      %v2749 = vsub.s32 0, %v2748
      %v2750 = vrot.slane %v2745, %v2749
      %v2768 = vunpack.c.l.b16 %v2729
      %v2769 = vunpack.c.l.b16 %v2730
      %v2770 = vunpack.c.l.b16 %v2731
      %v2771 = vunpack.c.l.b16 %v2732
      %v2772 = vunpack.c.l.b16 %v2733
      %v2773 = vunpack.c.l.b16 %v2734
      %v2774 = vunpack.c.l.b16 %v2735
      %v2775 = vunpack.c.l.b16 %v2736
      %v2776 = vunpack.c.l.b16 %v2737
      %v2777 = vunpack.c.l.b16 %v2738
      %v2778 = vunpack.c.l.b16 %v2739
      %v2779 = vunpack.c.l.b16 %v2740
      %v2780 = vunpack.c.l.b16 %v2741
      %v2781 = vunpack.c.l.b16 %v2742
      %v2782 = vunpack.c.l.b16 %v2743
      %v2783 = vunpack.c.l.b16 %v2744
      %v2784 = vpack.c.b16 %v2769, %v2768
      %v2785 = vpack.c.b16 %v2771, %v2770
      %v2786 = vpack.c.b16 %v2773, %v2772
      %v2787 = vpack.c.b16 %v2775, %v2774
      %v2788 = vpack.c.b16 %v2777, %v2776
      %v2789 = vpack.c.b16 %v2779, %v2778
      %v2790 = vpack.c.b16 %v2781, %v2780
      %v2791 = vpack.c.b16 %v2783, %v2782
      %2800 = vmatprep.subr.bf16.mxu0 0
      %2801 = vmatpush1.bf16.msra.mxu0 %v2791
      %2802 = vmatprep.subr.bf16.mxu0 0
      %2803 = vmatpush1.bf16.msra.mxu0 %v2790
      %2804 = vmatprep.subr.bf16.mxu0 0
      %2805 = vmatpush1.bf16.msra.mxu0 %v2789
      %2806 = vmatprep.subr.bf16.mxu0 0
      %2807 = vmatpush1.bf16.msra.mxu0 %v2788
      %2808 = vmatprep.subr.bf16.mxu0 0
      %2809 = vmatpush1.bf16.msra.mxu0 %v2787
      %2810 = vmatprep.subr.bf16.mxu0 0
      %2811 = vmatpush1.bf16.msra.mxu0 %v2786
      %2812 = vmatprep.subr.bf16.mxu0 0
      %2813 = vmatpush1.bf16.msra.mxu0 %v2785
      %2814 = vmatprep.subr.bf16.mxu0 0
      %2815 = vmatpush1.bf16.msra.mxu0 %v2784
      %2816 = vmatprep.subr.bf16.mxu0 0
      %2817 = vmatpush2.bf16.msra.mxu0 0
      %2818 = vmatprep.subr.bf16.mxu0 0
      %2819 = vmatpush2.bf16.msra.mxu0 0
      %2820 = vmatprep.subr.bf16.mxu0 0
      %2821 = vmatpush2.bf16.msra.mxu0 0
      %2822 = vmatprep.subr.bf16.mxu0 0
      %2823 = vmatpush2.bf16.msra.mxu0 0
      %2824 = vmatprep.subr.bf16.mxu0 0
      %2825 = vmatpush2.bf16.msra.mxu0 0
      %2826 = vmatprep.subr.bf16.mxu0 0
      %2827 = vmatpush2.bf16.msra.mxu0 0
      %2828 = vmatprep.subr.bf16.mxu0 0
      %2829 = vmatpush2.bf16.msra.mxu0 0
      %2830 = vmatprep.subr.bf16.mxu0 0
      %2831 = vmatpush2.bf16.msra.mxu0 0
      %2832 = vmatprep.mubr.bf16.mxu0 0
      %2833 = vmatmul.mubr.bf16.gmra.mxu0 %v2713
      %v2834 = vpop.f32.mrf.mxu0
      %v2835 = vadd.f32 %v2750, %v2834
      %v2836 = vpop.f32.mrf.mxu0
      %v2837 = vpop.f32.mrf.mxu0
      %v2838 = vadd.f32 %v2750, %v2837
      %v2839 = vpop.f32.mrf.mxu0
      %2840 = vmatprep.mubr.bf16.mxu0 0
      %2841 = vmatmul.mubr.bf16.gmra.mxu0 %v2714
      %v2842 = vpop.f32.mrf.mxu0
      %v2843 = vadd.f32 %v2750, %v2842
      %v2844 = vpop.f32.mrf.mxu0
      %v2845 = vpop.f32.mrf.mxu0
      %v2846 = vadd.f32 %v2750, %v2845
      %v2847 = vpop.f32.mrf.mxu0
      %2848 = vmatprep.mubr.bf16.mxu0 0
      %2849 = vmatmul.mubr.bf16.gmra.mxu0 %v2715
      %v2850 = vpop.f32.mrf.mxu0
      %v2851 = vadd.f32 %v2750, %v2850
      %v2852 = vpop.f32.mrf.mxu0
      %v2853 = vpop.f32.mrf.mxu0
      %v2854 = vadd.f32 %v2750, %v2853
      %v2855 = vpop.f32.mrf.mxu0
      %2856 = vmatprep.mubr.bf16.mxu0 0
      %2857 = vmatmul.mubr.bf16.gmra.mxu0 %v2716
      %v2858 = vpop.f32.mrf.mxu0
      %v2859 = vadd.f32 %v2750, %v2858
      %v2860 = vpop.f32.mrf.mxu0
      %v2861 = vpop.f32.mrf.mxu0
      %v2862 = vadd.f32 %v2750, %v2861
      %v2863 = vpop.f32.mrf.mxu0
      %2864 = vmatprep.mubr.bf16.mxu0 0
      %2865 = vmatmul.mubr.bf16.gmra.mxu0 %v2717
      %v2866 = vpop.f32.mrf.mxu0
      %v2867 = vadd.f32 %v2750, %v2866
      %v2868 = vpop.f32.mrf.mxu0
      %v2869 = vpop.f32.mrf.mxu0
      %v2870 = vadd.f32 %v2750, %v2869
      %v2871 = vpop.f32.mrf.mxu0
      %2872 = vmatprep.mubr.bf16.mxu0 0
      %2873 = vmatmul.mubr.bf16.gmra.mxu0 %v2718
      %v2874 = vpop.f32.mrf.mxu0
      %v2875 = vadd.f32 %v2750, %v2874
      %v2876 = vpop.f32.mrf.mxu0
      %v2877 = vpop.f32.mrf.mxu0
      %v2878 = vadd.f32 %v2750, %v2877
      %v2879 = vpop.f32.mrf.mxu0
      %2880 = vmatprep.mubr.bf16.mxu0 0
      %2881 = vmatmul.mubr.bf16.gmra.mxu0 %v2719
      %v2882 = vpop.f32.mrf.mxu0
      %v2883 = vadd.f32 %v2750, %v2882
      %v2884 = vpop.f32.mrf.mxu0
      %v2885 = vpop.f32.mrf.mxu0
      %v2886 = vadd.f32 %v2750, %v2885
      %v2887 = vpop.f32.mrf.mxu0
      %2888 = vmatprep.mubr.bf16.mxu0 0
      %2889 = vmatmul.mubr.bf16.gmra.mxu0 %v2720
      %v2890 = vpop.f32.mrf.mxu0
      %v2891 = vadd.f32 %v2750, %v2890
      %v2892 = vpop.f32.mrf.mxu0
      %v2893 = vpop.f32.mrf.mxu0
      %v2894 = vadd.f32 %v2750, %v2893
      %v2895 = vpop.f32.mrf.mxu0
      %2896 = vmatprep.mubr.bf16.mxu0 0
      %2897 = vmatmul.mubr.bf16.gmra.mxu0 %v2721
      %v2898 = vpop.f32.mrf.mxu0
      %v2899 = vadd.f32 %v2750, %v2898
      %v2900 = vpop.f32.mrf.mxu0
      %v2901 = vpop.f32.mrf.mxu0
      %v2902 = vadd.f32 %v2750, %v2901
      %v2903 = vpop.f32.mrf.mxu0
      %2904 = vmatprep.mubr.bf16.mxu0 0
      %2905 = vmatmul.mubr.bf16.gmra.mxu0 %v2722
      %v2906 = vpop.f32.mrf.mxu0
      %v2907 = vadd.f32 %v2750, %v2906
      %v2908 = vpop.f32.mrf.mxu0
      %v2909 = vpop.f32.mrf.mxu0
      %v2910 = vadd.f32 %v2750, %v2909
      %v2911 = vpop.f32.mrf.mxu0
      %2912 = vmatprep.mubr.bf16.mxu0 0
      %2913 = vmatmul.mubr.bf16.gmra.mxu0 %v2723
      %v2914 = vpop.f32.mrf.mxu0
      %v2915 = vadd.f32 %v2750, %v2914
      %v2916 = vpop.f32.mrf.mxu0
      %v2917 = vpop.f32.mrf.mxu0
      %v2918 = vadd.f32 %v2750, %v2917
      %v2919 = vpop.f32.mrf.mxu0
      %2920 = vmatprep.mubr.bf16.mxu0 0
      %2921 = vmatmul.mubr.bf16.gmra.mxu0 %v2724
      %v2922 = vpop.f32.mrf.mxu0
      %v2923 = vadd.f32 %v2750, %v2922
      %v2924 = vpop.f32.mrf.mxu0
      %v2925 = vpop.f32.mrf.mxu0
      %v2926 = vadd.f32 %v2750, %v2925
      %v2927 = vpop.f32.mrf.mxu0
      %2928 = vmatprep.mubr.bf16.mxu0 0
      %2929 = vmatmul.mubr.bf16.gmra.mxu0 %v2725
      %v2930 = vpop.f32.mrf.mxu0
      %v2931 = vadd.f32 %v2750, %v2930
      %v2932 = vpop.f32.mrf.mxu0
      %v2933 = vpop.f32.mrf.mxu0
      %v2934 = vadd.f32 %v2750, %v2933
      %v2935 = vpop.f32.mrf.mxu0
      %2936 = vmatprep.mubr.bf16.mxu0 0
      %2937 = vmatmul.mubr.bf16.gmra.mxu0 %v2726
      %v2938 = vpop.f32.mrf.mxu0
      %v2939 = vadd.f32 %v2750, %v2938
      %v2940 = vpop.f32.mrf.mxu0
      %v2941 = vpop.f32.mrf.mxu0
      %v2942 = vadd.f32 %v2750, %v2941
      %v2943 = vpop.f32.mrf.mxu0
      %2944 = vmatprep.mubr.bf16.mxu0 0
      %2945 = vmatmul.mubr.bf16.gmra.mxu0 %v2727
      %v2946 = vpop.f32.mrf.mxu0
      %v2947 = vadd.f32 %v2750, %v2946
      %v2948 = vpop.f32.mrf.mxu0
      %v2949 = vpop.f32.mrf.mxu0
      %v2950 = vadd.f32 %v2750, %v2949
      %v2951 = vpop.f32.mrf.mxu0
      %2952 = vmatprep.mubr.bf16.mxu0 0
      %2953 = vmatmul.mubr.bf16.gmra.mxu0 %v2728
      %v2954 = vpop.f32.mrf.mxu0
      %v2955 = vadd.f32 %v2750, %v2954
      %v2956 = vpop.f32.mrf.mxu0
      %v2957 = vpop.f32.mrf.mxu0
      %v2958 = vadd.f32 %v2750, %v2957
      %v2959 = vpop.f32.mrf.mxu0
      %2960 = vdwg.mxu0
      %2961 = vmax.xlane.f32.xlu0 %v2835
      %v2962 = vpop.xlane.xlu0 %2961
      %2963 = vmax.xlane.f32.xlu0 %v2838
      %v2964 = vpop.xlane.xlu0 %2963
      %2965 = vmax.xlane.f32.xlu0 %v2843
      %v2966 = vpop.xlane.xlu0 %2965
      %2967 = vmax.xlane.f32.xlu0 %v2846
      %v2968 = vpop.xlane.xlu0 %2967
      %2969 = vmax.xlane.f32.xlu0 %v2851
      %v2970 = vpop.xlane.xlu0 %2969
      %2971 = vmax.xlane.f32.xlu0 %v2854
      %v2972 = vpop.xlane.xlu0 %2971
      %2973 = vmax.xlane.f32.xlu0 %v2859
      %v2974 = vpop.xlane.xlu0 %2973
      %2975 = vmax.xlane.f32.xlu0 %v2862
      %v2976 = vpop.xlane.xlu0 %2975
      %2977 = vmax.xlane.f32.xlu0 %v2867
      %v2978 = vpop.xlane.xlu0 %2977
      %2979 = vmax.xlane.f32.xlu0 %v2870
      %v2980 = vpop.xlane.xlu0 %2979
      %2981 = vmax.xlane.f32.xlu0 %v2875
      %v2982 = vpop.xlane.xlu0 %2981
      %2983 = vmax.xlane.f32.xlu0 %v2878
      %v2984 = vpop.xlane.xlu0 %2983
      %2985 = vmax.xlane.f32.xlu0 %v2883
      %v2986 = vpop.xlane.xlu0 %2985
      %2987 = vmax.xlane.f32.xlu0 %v2886
      %v2988 = vpop.xlane.xlu0 %2987
      %2989 = vmax.xlane.f32.xlu0 %v2891
      %v2990 = vpop.xlane.xlu0 %2989
      %2991 = vmax.xlane.f32.xlu0 %v2894
      %v2992 = vpop.xlane.xlu0 %2991
      %2993 = vmax.xlane.f32.xlu0 %v2899
      %v2994 = vpop.xlane.xlu0 %2993
      %2995 = vmax.xlane.f32.xlu0 %v2902
      %v2996 = vpop.xlane.xlu0 %2995
      %2997 = vmax.xlane.f32.xlu0 %v2907
      %v2998 = vpop.xlane.xlu0 %2997
      %2999 = vmax.xlane.f32.xlu0 %v2910
      %v3000 = vpop.xlane.xlu0 %2999
      %3001 = vmax.xlane.f32.xlu0 %v2915
      %v3002 = vpop.xlane.xlu0 %3001
      %3003 = vmax.xlane.f32.xlu0 %v2918
      %v3004 = vpop.xlane.xlu0 %3003
      %3005 = vmax.xlane.f32.xlu0 %v2923
      %v3006 = vpop.xlane.xlu0 %3005
      %3007 = vmax.xlane.f32.xlu0 %v2926
      %v3008 = vpop.xlane.xlu0 %3007
      %3009 = vmax.xlane.f32.xlu0 %v2931
      %v3010 = vpop.xlane.xlu0 %3009
      %3011 = vmax.xlane.f32.xlu0 %v2934
      %v3012 = vpop.xlane.xlu0 %3011
      %3013 = vmax.xlane.f32.xlu0 %v2939
      %v3014 = vpop.xlane.xlu0 %3013
      %3015 = vmax.xlane.f32.xlu0 %v2942
      %v3016 = vpop.xlane.xlu0 %3015
      %3017 = vmax.xlane.f32.xlu0 %v2947
      %v3018 = vpop.xlane.xlu0 %3017
      %3019 = vmax.xlane.f32.xlu0 %v2950
      %v3020 = vpop.xlane.xlu0 %3019
      %3021 = vmax.xlane.f32.xlu0 %v2955
      %v3022 = vpop.xlane.xlu0 %3021
      %3023 = vmax.xlane.f32.xlu0 %v2958
      %v3024 = vpop.xlane.xlu0 %3023
      %v3025 = vsub.f32 %v2835, %v2962
      %v3026 = vsub.f32 %v2838, %v2964
      %v3027 = vsub.f32 %v2843, %v2966
      %v3028 = vsub.f32 %v2846, %v2968
      %v3029 = vsub.f32 %v2851, %v2970
      %v3030 = vsub.f32 %v2854, %v2972
      %v3031 = vsub.f32 %v2859, %v2974
      %v3032 = vsub.f32 %v2862, %v2976
      %v3033 = vsub.f32 %v2867, %v2978
      %v3034 = vsub.f32 %v2870, %v2980
      %v3035 = vsub.f32 %v2875, %v2982
      %v3036 = vsub.f32 %v2878, %v2984
      %v3037 = vsub.f32 %v2883, %v2986
      %v3038 = vsub.f32 %v2886, %v2988
      %v3039 = vsub.f32 %v2891, %v2990
      %v3040 = vsub.f32 %v2894, %v2992
      %v3041 = vsub.f32 %v2899, %v2994
      %v3042 = vsub.f32 %v2902, %v2996
      %v3043 = vsub.f32 %v2907, %v2998
      %v3044 = vsub.f32 %v2910, %v3000
      %v3045 = vsub.f32 %v2915, %v3002
      %v3046 = vsub.f32 %v2918, %v3004
      %v3047 = vsub.f32 %v2923, %v3006
      %v3048 = vsub.f32 %v2926, %v3008
      %v3049 = vsub.f32 %v2931, %v3010
      %v3050 = vsub.f32 %v2934, %v3012
      %v3051 = vsub.f32 %v2939, %v3014
      %v3052 = vsub.f32 %v2942, %v3016
      %v3053 = vsub.f32 %v2947, %v3018
      %v3054 = vsub.f32 %v2950, %v3020
      %v3055 = vsub.f32 %v2955, %v3022
      %v3056 = vsub.f32 %v2958, %v3024
      %v3057 = vmul.f32 %v3025, 1.442695
      %v3058 = vpow.pop %v3057
      %v3059 = vmul.f32 %v3026, 1.442695
      %v3060 = vpow.pop %v3059
      %v3061 = vmul.f32 %v3027, 1.442695
      %v3062 = vpow.pop %v3061
      %v3063 = vmul.f32 %v3028, 1.442695
      %v3064 = vpow.pop %v3063
      %v3065 = vmul.f32 %v3029, 1.442695
      %v3066 = vpow.pop %v3065
      %v3067 = vmul.f32 %v3030, 1.442695
      %v3068 = vpow.pop %v3067
      %v3069 = vmul.f32 %v3031, 1.442695
      %v3070 = vpow.pop %v3069
      %v3071 = vmul.f32 %v3032, 1.442695
      %v3072 = vpow.pop %v3071
      %v3073 = vmul.f32 %v3033, 1.442695
      %v3074 = vpow.pop %v3073
      %v3075 = vmul.f32 %v3034, 1.442695
      %v3076 = vpow.pop %v3075
      %v3077 = vmul.f32 %v3035, 1.442695
      %v3078 = vpow.pop %v3077
      %v3079 = vmul.f32 %v3036, 1.442695
      %v3080 = vpow.pop %v3079
      %v3081 = vmul.f32 %v3037, 1.442695
      %v3082 = vpow.pop %v3081
      %v3083 = vmul.f32 %v3038, 1.442695
      %v3084 = vpow.pop %v3083
      %v3085 = vmul.f32 %v3039, 1.442695
      %v3086 = vpow.pop %v3085
      %v3087 = vmul.f32 %v3040, 1.442695
      %v3088 = vpow.pop %v3087
      %v3089 = vmul.f32 %v3041, 1.442695
      %v3090 = vpow.pop %v3089
      %v3091 = vmul.f32 %v3042, 1.442695
      %v3092 = vpow.pop %v3091
      %v3093 = vmul.f32 %v3043, 1.442695
      %v3094 = vpow.pop %v3093
      %v3095 = vmul.f32 %v3044, 1.442695
      %v3096 = vpow.pop %v3095
      %v3097 = vmul.f32 %v3045, 1.442695
      %v3098 = vpow.pop %v3097
      %v3099 = vmul.f32 %v3046, 1.442695
      %v3100 = vpow.pop %v3099
      %v3101 = vmul.f32 %v3047, 1.442695
      %v3102 = vpow.pop %v3101
      %v3103 = vmul.f32 %v3048, 1.442695
      %v3104 = vpow.pop %v3103
      %v3105 = vmul.f32 %v3049, 1.442695
      %v3106 = vpow.pop %v3105
      %v3107 = vmul.f32 %v3050, 1.442695
      %v3108 = vpow.pop %v3107
      %v3109 = vmul.f32 %v3051, 1.442695
      %v3110 = vpow.pop %v3109
      %v3111 = vmul.f32 %v3052, 1.442695
      %v3112 = vpow.pop %v3111
      %v3113 = vmul.f32 %v3053, 1.442695
      %v3114 = vpow.pop %v3113
      %v3115 = vmul.f32 %v3054, 1.442695
      %v3116 = vpow.pop %v3115
      %v3117 = vmul.f32 %v3055, 1.442695
      %v3118 = vpow.pop %v3117
      %v3119 = vmul.f32 %v3056, 1.442695
      %v3120 = vpow.pop %v3119
      %3121 = vadd.xlane.f32.xlu0 %v3058
      %v3122 = vpop.xlane.xlu0 %3121
      %3123 = vadd.xlane.f32.xlu0 %v3060
      %v3124 = vpop.xlane.xlu0 %3123
      %3125 = vadd.xlane.f32.xlu0 %v3062
      %v3126 = vpop.xlane.xlu0 %3125
      %3127 = vadd.xlane.f32.xlu0 %v3064
      %v3128 = vpop.xlane.xlu0 %3127
      %3129 = vadd.xlane.f32.xlu0 %v3066
      %v3130 = vpop.xlane.xlu0 %3129
      %3131 = vadd.xlane.f32.xlu0 %v3068
      %v3132 = vpop.xlane.xlu0 %3131
      %3133 = vadd.xlane.f32.xlu0 %v3070
      %v3134 = vpop.xlane.xlu0 %3133
      %3135 = vadd.xlane.f32.xlu0 %v3072
      %v3136 = vpop.xlane.xlu0 %3135
      %3137 = vadd.xlane.f32.xlu0 %v3074
      %v3138 = vpop.xlane.xlu0 %3137
      %3139 = vadd.xlane.f32.xlu0 %v3076
      %v3140 = vpop.xlane.xlu0 %3139
      %3141 = vadd.xlane.f32.xlu0 %v3078
      %v3142 = vpop.xlane.xlu0 %3141
      %3143 = vadd.xlane.f32.xlu0 %v3080
      %v3144 = vpop.xlane.xlu0 %3143
      %3145 = vadd.xlane.f32.xlu0 %v3082
      %v3146 = vpop.xlane.xlu0 %3145
      %3147 = vadd.xlane.f32.xlu0 %v3084
      %v3148 = vpop.xlane.xlu0 %3147
      %3149 = vadd.xlane.f32.xlu0 %v3086
      %v3150 = vpop.xlane.xlu0 %3149
      %3151 = vadd.xlane.f32.xlu0 %v3088
      %v3152 = vpop.xlane.xlu0 %3151
      %3153 = vadd.xlane.f32.xlu0 %v3090
      %v3154 = vpop.xlane.xlu0 %3153
      %3155 = vadd.xlane.f32.xlu0 %v3092
      %v3156 = vpop.xlane.xlu0 %3155
      %3157 = vadd.xlane.f32.xlu0 %v3094
      %v3158 = vpop.xlane.xlu0 %3157
      %3159 = vadd.xlane.f32.xlu0 %v3096
      %v3160 = vpop.xlane.xlu0 %3159
      %3161 = vadd.xlane.f32.xlu0 %v3098
      %v3162 = vpop.xlane.xlu0 %3161
      %3163 = vadd.xlane.f32.xlu0 %v3100
      %v3164 = vpop.xlane.xlu0 %3163
      %3165 = vadd.xlane.f32.xlu0 %v3102
      %v3166 = vpop.xlane.xlu0 %3165
      %3167 = vadd.xlane.f32.xlu0 %v3104
      %v3168 = vpop.xlane.xlu0 %3167
      %3169 = vadd.xlane.f32.xlu0 %v3106
      %v3170 = vpop.xlane.xlu0 %3169
      %3171 = vadd.xlane.f32.xlu0 %v3108
      %v3172 = vpop.xlane.xlu0 %3171
      %3173 = vadd.xlane.f32.xlu0 %v3110
      %v3174 = vpop.xlane.xlu0 %3173
      %3175 = vadd.xlane.f32.xlu0 %v3112
      %v3176 = vpop.xlane.xlu0 %3175
      %3177 = vadd.xlane.f32.xlu0 %v3114
      %v3178 = vpop.xlane.xlu0 %3177
      %3179 = vadd.xlane.f32.xlu0 %v3116
      %v3180 = vpop.xlane.xlu0 %3179
      %3181 = vadd.xlane.f32.xlu0 %v3118
      %v3182 = vpop.xlane.xlu0 %3181
      %3183 = vadd.xlane.f32.xlu0 %v3120
      %v3184 = vpop.xlane.xlu0 %3183
      %v3185 = vlog2.pop %v3122
      %v3186 = vmul.f32 %v3185, 0.6931472
      %v3187 = vlog2.pop %v3124
      %v3188 = vmul.f32 %v3187, 0.6931472
      %v3189 = vlog2.pop %v3126
      %v3190 = vmul.f32 %v3189, 0.6931472
      %v3191 = vlog2.pop %v3128
      %v3192 = vmul.f32 %v3191, 0.6931472
      %v3193 = vlog2.pop %v3130
      %v3194 = vmul.f32 %v3193, 0.6931472
      %v3195 = vlog2.pop %v3132
      %v3196 = vmul.f32 %v3195, 0.6931472
      %v3197 = vlog2.pop %v3134
      %v3198 = vmul.f32 %v3197, 0.6931472
      %v3199 = vlog2.pop %v3136
      %v3200 = vmul.f32 %v3199, 0.6931472
      %v3201 = vlog2.pop %v3138
      %v3202 = vmul.f32 %v3201, 0.6931472
      %v3203 = vlog2.pop %v3140
      %v3204 = vmul.f32 %v3203, 0.6931472
      %v3205 = vlog2.pop %v3142
      %v3206 = vmul.f32 %v3205, 0.6931472
      %v3207 = vlog2.pop %v3144
      %v3208 = vmul.f32 %v3207, 0.6931472
      %v3209 = vlog2.pop %v3146
      %v3210 = vmul.f32 %v3209, 0.6931472
      %v3211 = vlog2.pop %v3148
      %v3212 = vmul.f32 %v3211, 0.6931472
      %v3213 = vlog2.pop %v3150
      %v3214 = vmul.f32 %v3213, 0.6931472
      %v3215 = vlog2.pop %v3152
      %v3216 = vmul.f32 %v3215, 0.6931472
      %v3217 = vlog2.pop %v3154
      %v3218 = vmul.f32 %v3217, 0.6931472
      %v3219 = vlog2.pop %v3156
      %v3220 = vmul.f32 %v3219, 0.6931472
      %v3221 = vlog2.pop %v3158
      %v3222 = vmul.f32 %v3221, 0.6931472
      %v3223 = vlog2.pop %v3160
      %v3224 = vmul.f32 %v3223, 0.6931472
      %v3225 = vlog2.pop %v3162
      %v3226 = vmul.f32 %v3225, 0.6931472
      %v3227 = vlog2.pop %v3164
      %v3228 = vmul.f32 %v3227, 0.6931472
      %v3229 = vlog2.pop %v3166
      %v3230 = vmul.f32 %v3229, 0.6931472
      %v3231 = vlog2.pop %v3168
      %v3232 = vmul.f32 %v3231, 0.6931472
      %v3233 = vlog2.pop %v3170
      %v3234 = vmul.f32 %v3233, 0.6931472
      %v3235 = vlog2.pop %v3172
      %v3236 = vmul.f32 %v3235, 0.6931472
      %v3237 = vlog2.pop %v3174
      %v3238 = vmul.f32 %v3237, 0.6931472
      %v3239 = vlog2.pop %v3176
      %v3240 = vmul.f32 %v3239, 0.6931472
      %v3241 = vlog2.pop %v3178
      %v3242 = vmul.f32 %v3241, 0.6931472
      %v3243 = vlog2.pop %v3180
      %v3244 = vmul.f32 %v3243, 0.6931472
      %v3245 = vlog2.pop %v3182
      %v3246 = vmul.f32 %v3245, 0.6931472
      %v3247 = vlog2.pop %v3184
      %v3248 = vmul.f32 %v3247, 0.6931472
      %v3249 = vsub.f32 %v3025, %v3186
      %v3250 = vsub.f32 %v3026, %v3188
      %v3251 = vsub.f32 %v3027, %v3190
      %v3252 = vsub.f32 %v3028, %v3192
      %v3253 = vsub.f32 %v3029, %v3194
      %v3254 = vsub.f32 %v3030, %v3196
      %v3255 = vsub.f32 %v3031, %v3198
      %v3256 = vsub.f32 %v3032, %v3200
      %v3257 = vsub.f32 %v3033, %v3202
      %v3258 = vsub.f32 %v3034, %v3204
      %v3259 = vsub.f32 %v3035, %v3206
      %v3260 = vsub.f32 %v3036, %v3208
      %v3261 = vsub.f32 %v3037, %v3210
      %v3262 = vsub.f32 %v3038, %v3212
      %v3263 = vsub.f32 %v3039, %v3214
      %v3264 = vsub.f32 %v3040, %v3216
      %v3265 = vsub.f32 %v3041, %v3218
      %v3266 = vsub.f32 %v3042, %v3220
      %v3267 = vsub.f32 %v3043, %v3222
      %v3268 = vsub.f32 %v3044, %v3224
      %v3269 = vsub.f32 %v3045, %v3226
      %v3270 = vsub.f32 %v3046, %v3228
      %v3271 = vsub.f32 %v3047, %v3230
      %v3272 = vsub.f32 %v3048, %v3232
      %v3273 = vsub.f32 %v3049, %v3234
      %v3274 = vsub.f32 %v3050, %v3236
      %v3275 = vsub.f32 %v3051, %v3238
      %v3276 = vsub.f32 %v3052, %v3240
      %v3277 = vsub.f32 %v3053, %v3242
      %v3278 = vsub.f32 %v3054, %v3244
      %v3279 = vsub.f32 %v3055, %v3246
      %v3280 = vsub.f32 %v3056, %v3248
      %3281 = vst [vmem:[%s441] sm:$0xff] %v3249
      %3282 = vst [vmem:[%s441 + $0x8] sm:$0xff] %v3250
      %3283 = vst [vmem:[%s441 + $0x10] sm:$0xff] %v3251
      %3284 = vst [vmem:[%s441 + $0x18] sm:$0xff] %v3252
      %3285 = vst [vmem:[%s441 + $0x20] sm:$0xff] %v3253
      %3286 = vst [vmem:[%s441 + $0x28] sm:$0xff] %v3254
      %3287 = vst [vmem:[%s441 + $0x30] sm:$0xff] %v3255
      %3288 = vst [vmem:[%s441 + $0x38] sm:$0xff] %v3256
      %3289 = vst [vmem:[%s441 + $0x40] sm:$0xff] %v3257
      %3290 = vst [vmem:[%s441 + $0x48] sm:$0xff] %v3258
      %3291 = vst [vmem:[%s441 + $0x50] sm:$0xff] %v3259
      %3292 = vst [vmem:[%s441 + $0x58] sm:$0xff] %v3260
      %3293 = vst [vmem:[%s441 + $0x60] sm:$0xff] %v3261
      %3294 = vst [vmem:[%s441 + $0x68] sm:$0xff] %v3262
      %3295 = vst [vmem:[%s441 + $0x70] sm:$0xff] %v3263
      %3296 = vst [vmem:[%s441 + $0x78] sm:$0xff] %v3264
      %3297 = vst [vmem:[%s441 + $0x80] sm:$0xff] %v3265
      %3298 = vst [vmem:[%s441 + $0x88] sm:$0xff] %v3266
      %3299 = vst [vmem:[%s441 + $0x90] sm:$0xff] %v3267
      %3300 = vst [vmem:[%s441 + $0x98] sm:$0xff] %v3268
      %3301 = vst [vmem:[%s441 + $0xa0] sm:$0xff] %v3269
      %3302 = vst [vmem:[%s441 + $0xa8] sm:$0xff] %v3270
      %3303 = vst [vmem:[%s441 + $0xb0] sm:$0xff] %v3271
      %3304 = vst [vmem:[%s441 + $0xb8] sm:$0xff] %v3272
      %3305 = vst [vmem:[%s441 + $0xc0] sm:$0xff] %v3273
      %3306 = vst [vmem:[%s441 + $0xc8] sm:$0xff] %v3274
      %3307 = vst [vmem:[%s441 + $0xd0] sm:$0xff] %v3275
      %3308 = vst [vmem:[%s441 + $0xd8] sm:$0xff] %v3276
      %3309 = vst [vmem:[%s441 + $0xe0] sm:$0xff] %v3277
      %3310 = vst [vmem:[%s441 + $0xe8] sm:$0xff] %v3278
      %3311 = vst [vmem:[%s441 + $0xf0] sm:$0xff] %v3279
      %3312 = vst [vmem:[%s441 + $0xf8] sm:$0xff] %v3280
      %s3313 = smul.u32 32, %s27
      %p3314 = scmp.lt.s32.totalorder %s26, 1
      %s3315 = scalar_select %p3314, %s26, 1
      %p3316 = scmp.lt.s32.totalorder %s3313, 31
      %s3317 = scalar_select %p3316, %s3313, 31
      %s3318 = smul.addr %s3315, 32
      %s3319 = sadd.s32 %s3317, %s3318
      %s3320 = smul.addr %s3319, 8
      %s3321 = scalar_lea.vmem %s11, %s3320
      // Predicated region
      $region65: #{pointnet_seg_forward.3} parent=63 // pred_check
        %p3322 = pneg %p297
      $region66: #{pointnet_seg_forward.3} parent=63 // pred_check_branch
        %3324 = sbr.rel (%p3322) target = $region68
      $region67: #{pointnet_seg_forward.3} parent=63 // pred_region
        %s3325 = smul.u32 32, %s27
      $region68: #{pointnet_seg_forward.3} parent=63 // pred_fallthru
        _
    $region64: #{pointnet_seg_forward.3} parent=5 // pred_fallthru
      _
    %p3326 = scmp.le.s32.totalorder 2, %s17
    // Predicated region
    $region69: #{pointnet_seg_forward.3} parent=5 // pred_check
      %p3327 = pneg %p3326
    $region70: #{pointnet_seg_forward.3} parent=5 // pred_check_branch
      %3329 = sbr.rel (%p3327) target = $region72
    $region71: #{pointnet_seg_forward.3} parent=5 // pred_region
      %s3330 = ssub.s32 %s17, 2
      // Predicated region
      $region73: #{pointnet_seg_forward.3} parent=71 // pred_check
        %p3331 = pneg %p303
      $region74: #{pointnet_seg_forward.3} parent=71 // pred_check_branch
        %3333 = sbr.rel (%p3331) target = $region76
      $region75: #{pointnet_seg_forward.3} parent=71 // pred_region
        %s3334 = smul.u32 32, %s29
        %p3335 = scmp.lt.s32.totalorder %s28, 1
        %s3336 = scalar_select %p3335, %s28, 1
        %p3337 = scmp.lt.s32.totalorder %s3334, 31
        %s3338 = scalar_select %p3337, %s3334, 31
        %s3339 = smul.addr %s3336, 32
        %s3340 = sadd.s32 %s3338, %s3339
        %s3341 = smul.addr %s3340, 8
        %s3342 = scalar_lea.vmem %s11, %s3341
      $region76: #{pointnet_seg_forward.3} parent=71 // pred_fallthru
        _
    $region72: #{pointnet_seg_forward.3} parent=5 // pred_fallthru
      _
  $region6: #{pointnet_seg_forward.3} parent=0 // loop_footer
    %s21 = sadd.s32 1, %s17
  $region7: #{pointnet_seg_forward.3} parent=0 // loop_footer_branch
    %16 = sbr.rel target = $region3
  $region8: #{pointnet_seg_forward.3} parent=0 // loop_exit
    _

</llo_original>
